<compile_context>
chip_gen: v6e
topology: v6e:2x2x1
jax: 0.10.0
libtpu: 0.0.40
codegen_flags: <defaults>
</compile_context>

<pallas_src>
from dataclasses import dataclass
from functools import partial

import jax
import jax.numpy as jnp
from jax.experimental import pallas as pl
from jax.experimental.pallas import tpu as pltpu


@dataclass
class Config:
    vocab_size: int = 64
    cw_size: int = 16
    n_embd: int = 32
    n_blocks: int = 2
    n_head: int = 4  # assumed field used by tm.TransformerBlock


# ---------------------------------------------------------------------------
# Shared math helper (usable in-kernel and in the pure-JAX reference)
# ---------------------------------------------------------------------------

def _layer_norm(x, g, b, eps=1e-5):
    mu = jnp.mean(x, axis=-1, keepdims=True)
    var = jnp.mean((x - mu) ** 2, axis=-1, keepdims=True)
    return (x - mu) * jax.lax.rsqrt(var + eps) * g + b


# ---------------------------------------------------------------------------
# Fused forward kernel: embeddings + blocks + lm_head (+ cross-entropy)
# ---------------------------------------------------------------------------

def lm_forward_kernel(n_head, n_blocks, B, T, with_loss, *refs):
    if with_loss:
        (ids_ref, tgt_ref, tok_ref, pos_ref, ln_ref, wqkvh_ref, woh_ref,
         w1_ref, w2_ref, bdd_ref, b1_ref, lmw_ref, lmb_ref,
         logits_ref, loss_ref) = refs
    else:
        (ids_ref, tok_ref, pos_ref, ln_ref, wqkvh_ref, woh_ref,
         w1_ref, w2_ref, bdd_ref, b1_ref, lmw_ref, lmb_ref,
         logits_ref) = refs
        tgt_ref = loss_ref = None

    nh = n_head
    BT = B * T
    tok_tab = tok_ref[...].astype(jnp.float32)            # (V, D)
    V, D = tok_tab.shape
    dh = D // nh
    scale = dh ** -0.5

    # ---- fused embedding lookups: one-hot @ table (MXU; no XLA gather) ----
    ids = ids_ref[...]                                     # (BT, 1) int32
    vcol = jax.lax.broadcasted_iota(jnp.int32, (BT, V), 1)
    tok_oh = (vcol == ids).astype(jnp.float32)
    x = jnp.dot(tok_oh, tok_tab, preferred_element_type=jnp.float32)     # (BT, D)

    pos_tab = pos_ref[...].astype(jnp.float32)             # (CW, D)
    CW = pos_tab.shape[0]
    pcol = jax.lax.broadcasted_iota(jnp.int32, (BT, CW), 1)
    pidx = jax.lax.broadcasted_iota(jnp.int32, (BT, 1), 0) % T
    pos_oh = (pcol == pidx).astype(jnp.float32)
    x = x + jnp.dot(pos_oh, pos_tab, preferred_element_type=jnp.float32)

    row = jax.lax.broadcasted_iota(jnp.int32, (T, T), 0)
    col = jax.lax.broadcasted_iota(jnp.int32, (T, T), 1)
    causal = (row >= col)[None]                            # (1, T, T)

    for blk in range(n_blocks):                            # static unroll (n_blocks=2)
        ln = ln_ref[blk]                                   # (4, D): ln1_g, ln1_b, ln2_g, ln2_b
        bdd = bdd_ref[blk]                                 # (2, D): bo, b2
        wqkvh = wqkvh_ref[blk].astype(jnp.float32)         # (nh, D, 3*dh)
        woh = woh_ref[blk].astype(jnp.float32)             # (nh, dh, D)
        w1 = w1_ref[blk].astype(jnp.float32)               # (D, 4D)
        w2 = w2_ref[blk].astype(jnp.float32)               # (4D, D)

        # ---------- attention sub-block ----------
        h = _layer_norm(x, ln[0:1], ln[1:2])               # (BT, D)
        hb = jnp.broadcast_to(h[None], (nh, BT, D))
        # one batched matmul whose output is already head-major (no transpose)
        qkvh = jnp.einsum('hnd,hde->hne', hb, wqkvh,
                          preferred_element_type=jnp.float32)            # (nh, BT, 3dh)
        # row-regrouping reshape only (h, b, t order preserved): (nh, B*T, .) -> (nh*B, T, .)
        qkvh = qkvh.reshape(nh * B, T, 3 * dh)
        qh = qkvh[:, :, 0:dh] * scale                      # scale folded into q
        kh = qkvh[:, :, dh:2 * dh]
        vh = qkvh[:, :, 2 * dh:3 * dh]

        s = jnp.einsum('bqd,bkd->bqk', qh, kh,
                       preferred_element_type=jnp.float32)               # (nh*B, T, T)
        s = jnp.where(causal, s, -1e30)
        s = s - jnp.max(s, axis=-1, keepdims=True)         # one softmax pass, all heads
        p = jnp.exp(s)
        p = p * pl.reciprocal(jnp.sum(p, axis=-1, keepdims=True), approx=True)
        o = jnp.einsum('bqk,bkd->bqd', p, vh,
                       preferred_element_type=jnp.float32)               # (nh*B, T, dh)

        # head merge + output projection: batched matmul with per-head wo rows,
        # then a cheap leading-axis sum (no scratch, no lane concatenate).
        o = o.reshape(nh, BT, dh)
        attn_h = jnp.einsum('hnd,hde->hne', o, woh,
                            preferred_element_type=jnp.float32)          # (nh, BT, D)
        x = x + jnp.sum(attn_h, axis=0) + bdd[0:1]

        # ---------- MLP sub-block ----------
        h2 = _layer_norm(x, ln[2:3], ln[3:4])
        f = jnp.dot(h2, w1, preferred_element_type=jnp.float32) + b1_ref[blk]
        f = jnp.maximum(f, 0.0)
        x = x + jnp.dot(f, w2, preferred_element_type=jnp.float32) + bdd[1:2]

    # ---------- lm head (lane-dense: vocab padded to 128 columns) ----------
    logits = jnp.dot(x, lmw_ref[...].astype(jnp.float32),
                     preferred_element_type=jnp.float32) + lmb_ref[...]
    logits_ref[...] = logits.astype(logits_ref.dtype)

    # ---------- mean cross-entropy (only when targets are supplied) ----------
    if with_loss:
        tgt = tgt_ref[...]                                 # (BT, 1) int32
        m = jnp.max(logits, axis=-1, keepdims=True)        # pad cols are -1e30 -> exp == 0
        lse = jnp.log(jnp.sum(jnp.exp(logits - m), axis=-1, keepdims=True)) + m
        vcol2 = jax.lax.broadcasted_iota(jnp.int32, logits.shape, 1)
        picked = jnp.sum(jnp.where(vcol2 == tgt, logits, 0.0), axis=-1, keepdims=True)
        loss_ref[...] = jnp.sum(lse - picked, axis=0, keepdims=True) * (1.0 / BT)


def fused_forward(params, cfg, ids2d, tgt2d, B, T):
    BT = B * T
    VP = params["lm_head_w"].shape[1]                      # padded vocab (>= 128)
    with_loss = tgt2d is not None
    kernel = partial(lm_forward_kernel, cfg.n_head, cfg.n_blocks, B, T, with_loss)

    operands = [ids2d]
    if with_loss:
        operands.append(tgt2d)
    operands += [params["token_emb"], params["pos_emb"], params["ln"],
                 params["wqkvh"], params["woh"], params["w1"], params["w2"],
                 params["b_dd"], params["b1"], params["lm_head_w"], params["lm_head_b"]]

    cparams = pltpu.CompilerParams(vmem_limit_bytes=32 * 1024 * 1024)

    if with_loss:
        logits, loss = pl.pallas_call(
            kernel,
            out_shape=(jax.ShapeDtypeStruct((BT, VP), jnp.float32),
                       jax.ShapeDtypeStruct((1, 1), jnp.float32)),
            compiler_params=cparams,
        )(*operands)
        return logits, loss
    logits = pl.pallas_call(
        kernel,
        out_shape=jax.ShapeDtypeStruct((BT, VP), jnp.float32),
        compiler_params=cparams,
    )(*operands)
    return logits, None


# ---------------------------------------------------------------------------
# Python-level forward matching LanguageModel.forward
# ---------------------------------------------------------------------------

def language_model_forward(params, cfg, inputs, targets=None):
    """Mirrors LanguageModel.forward: returns (logits, loss)."""
    B, T = inputs.shape
    V = cfg.vocab_size
    BT = B * T
    ids2d = inputs.reshape(BT, 1).astype(jnp.int32)

    if targets is not None:
        tgt2d = targets.reshape(BT, 1).astype(jnp.int32)
        logits_p, loss = fused_forward(params, cfg, ids2d, tgt2d, B, T)
        return logits_p[:, :V], loss[0, 0]                 # matches torch .view(b*t, -1)

    logits_p, _ = fused_forward(params, cfg, ids2d, None, B, T)
    return logits_p[:, :V].reshape(B, T, V), None


# ---------------------------------------------------------------------------
# Pure-JAX reference (for the correctness check in __main__)
# ---------------------------------------------------------------------------

def reference_forward(params, cfg, inputs, targets):
    B, T = inputs.shape
    D, nh, V = cfg.n_embd, cfg.n_head, cfg.vocab_size
    dh = D // nh
    tok = jnp.take(params["token_emb"], inputs.reshape(-1), axis=0)
    x = (tok.reshape(B, T, D) + params["pos_emb"][:T][None]).reshape(B * T, D)
    causal = jnp.tril(jnp.ones((T, T), bool))

    for blk in range(cfg.n_blocks):
        ln = params["ln"][blk]
        wqkvh = params["wqkvh"][blk].astype(jnp.float32)   # (nh, D, 3dh)
        woh = params["woh"][blk].astype(jnp.float32)       # (nh, dh, D)
        h = _layer_norm(x, ln[0], ln[1])
        heads = []
        for hh in range(nh):
            q = (h @ wqkvh[hh, :, 0:dh]).reshape(B, T, dh)
            k = (h @ wqkvh[hh, :, dh:2 * dh]).reshape(B, T, dh)
            v = (h @ wqkvh[hh, :, 2 * dh:3 * dh]).reshape(B, T, dh)
            s = jnp.einsum('bqd,bkd->bqk', q, k) * dh ** -0.5
            s = jnp.where(causal, s, -1e30)
            p = jax.nn.softmax(s, axis=-1)
            o = jnp.einsum('bqk,bkd->bqd', p, v).reshape(B * T, dh)
            heads.append(o @ woh[hh])
        x = x + sum(heads) + params["b_dd"][blk][0]

        h2 = _layer_norm(x, ln[2], ln[3])
        f = jnp.maximum(h2 @ params["w1"][blk].astype(jnp.float32)
                        + params["b1"][blk][0], 0.0)
        x = x + f @ params["w2"][blk].astype(jnp.float32) + params["b_dd"][blk][1]

    logits = (x @ params["lm_head_w"][:, :V].astype(jnp.float32)
              + params["lm_head_b"][0, :V])
    lse = jax.scipy.special.logsumexp(logits, axis=-1)
    picked = logits[jnp.arange(B * T), targets.reshape(-1)]
    return logits, jnp.mean(lse - picked)


# ---------------------------------------------------------------------------
# Deterministic synthetic parameters (stacked, per-head kernel layout)
# ---------------------------------------------------------------------------

def init_params(key, cfg):
    def nrm(k, shape, scale=0.02):
        return (scale * jax.random.normal(k, shape)).astype(jnp.float32)

    D, Hm, V, NB, nh = cfg.n_embd, 4 * cfg.n_embd, cfg.vocab_size, cfg.n_blocks, cfg.n_head
    dh = D // nh
    VP = max(128, ((V + 127) // 128) * 128)                # lane-dense padded vocab
    keys = jax.random.split(key, 3 + NB)

    lm_w = jnp.zeros((D, VP), jnp.float32).at[:, :V].set(nrm(keys[2], (D, V)))
    lm_b = jnp.full((1, VP), -1e30, jnp.float32).at[:, :V].set(0.0)

    params = {
        "token_emb": nrm(keys[0], (V, D), 1.0),
        "pos_emb": nrm(keys[1], (cfg.cw_size, D), 1.0),
        "lm_head_w": lm_w.astype(jnp.bfloat16),            # pad cols are exact zeros
        "lm_head_b": lm_b,                                 # pad cols -1e30 (CE-neutral)
        # per-block params stacked along a leading block axis
        "ln": jnp.stack([jnp.ones((NB, D)), jnp.zeros((NB, D)),
                         jnp.ones((NB, D)), jnp.zeros((NB, D))],
                        axis=1).astype(jnp.float32),       # ln1_g, ln1_b, ln2_g, ln2_b
        "b_dd": jnp.zeros((NB, 2, D), jnp.float32),        # bo, b2
        "b1": jnp.zeros((NB, 1, Hm), jnp.float32),
    }
    wqkvh, woh, w1, w2 = [], [], [], []
    for i in range(NB):
        bk = jax.random.split(keys[3 + i], 5)
        wq, wk, wv = nrm(bk[0], (D, D)), nrm(bk[1], (D, D)), nrm(bk[2], (D, D))
        per_head = jnp.stack(
            [jnp.concatenate([wq[:, h * dh:(h + 1) * dh],
                              wk[:, h * dh:(h + 1) * dh],
                              wv[:, h * dh:(h + 1) * dh]], axis=1)
             for h in range(nh)], axis=0)                  # (nh, D, 3dh)
        wqkvh.append(per_head)
        woh.append(nrm(bk[3], (D, D)).reshape(nh, dh, D))  # wo rows split per head
        mk = jax.random.split(bk[4], 2)
        w1.append(nrm(mk[0], (D, Hm)))
        w2.append(nrm(mk[1], (Hm, D)))
    params["wqkvh"] = jnp.stack(wqkvh, 0).astype(jnp.bfloat16)
    params["woh"] = jnp.stack(woh, 0).astype(jnp.bfloat16)
    params["w1"] = jnp.stack(w1, 0).astype(jnp.bfloat16)
    params["w2"] = jnp.stack(w2, 0).astype(jnp.bfloat16)
    return params


# TODO(synk): generate() uses torch.multinomial sampling; not implemented here
# (only the forward pass is required).

if __name__ == "__main__":
    cfg = Config()
    key = jax.random.PRNGKey(0)
    pkey, ikey, tkey = jax.random.split(key, 3)
    params = init_params(pkey, cfg)

    B, T = 2, 8
    inputs = jax.random.randint(ikey, (B, T), 0, cfg.vocab_size, dtype=jnp.int32)
    targets = jax.random.randint(tkey, (B, T), 0, cfg.vocab_size, dtype=jnp.int32)

    logits, loss = language_model_forward(params, cfg, inputs, targets)
    jax.block_until_ready((logits, loss))

    assert logits.shape == (B * T, cfg.vocab_size), logits.shape
    assert loss.shape == () and bool(jnp.isfinite(loss)), loss

    # correctness check against a pure-JAX reference (same bf16-quantized weights)
    ref_logits, ref_loss = reference_forward(params, cfg, inputs, targets)
    assert bool(jnp.allclose(logits, ref_logits, atol=2e-3, rtol=2e-3)), \
        float(jnp.max(jnp.abs(logits - ref_logits)))
    assert bool(jnp.allclose(loss, ref_loss, atol=2e-3, rtol=2e-3)), \
        (float(loss), float(ref_loss))

    # no-target path (returns (B, T, V) logits and loss=None; CE statically skipped)
    logits2, loss2 = language_model_forward(params, cfg, inputs, None)
    jax.block_until_ready(logits2)
    assert logits2.shape == (B, T, cfg.vocab_size) and loss2 is None
    assert bool(jnp.allclose(logits2.reshape(B * T, -1), logits, atol=2e-5))

    print("KERNEL_OK")
</pallas_src>

<mosaic_0001>
module attributes {stable_mosaic.version = 11 : i64} {
  func.func @lm_forward_kernel(%arg0: memref<16x1xi32, #tpu.memory_space<vmem>>, %arg1: memref<16x1xi32, #tpu.memory_space<vmem>>, %arg2: memref<64x32xf32, #tpu.memory_space<vmem>>, %arg3: memref<16x32xf32, #tpu.memory_space<vmem>>, %arg4: memref<2x4x32xf32, #tpu.memory_space<vmem>>, %arg5: memref<2x4x32x24xbf16, #tpu.memory_space<vmem>>, %arg6: memref<2x4x8x32xbf16, #tpu.memory_space<vmem>>, %arg7: memref<2x32x128xbf16, #tpu.memory_space<vmem>>, %arg8: memref<2x128x32xbf16, #tpu.memory_space<vmem>>, %arg9: memref<2x2x32xf32, #tpu.memory_space<vmem>>, %arg10: memref<2x1x128xf32, #tpu.memory_space<vmem>>, %arg11: memref<32x128xbf16, #tpu.memory_space<vmem>>, %arg12: memref<1x128xf32, #tpu.memory_space<vmem>>, %arg13: memref<16x128xf32, #tpu.memory_space<vmem>>, %arg14: memref<1x1xf32, #tpu.memory_space<vmem>>) attributes {dimension_semantics = [], scalar_prefetch = 0 : i64, scratch_operands = 0 : i64, tpu.core_type = #tpu.core_type<tc>} {
    %c0 = arith.constant 0 : index
    %c0_0 = arith.constant 0 : index
    %0 = vector.load %arg2[%c0, %c0_0] : memref<64x32xf32, #tpu.memory_space<vmem>>, vector<64x32xf32>
    %c0_1 = arith.constant 0 : index
    %c0_2 = arith.constant 0 : index
    %1 = vector.load %arg0[%c0_1, %c0_2] : memref<16x1xi32, #tpu.memory_space<vmem>>, vector<16x1xi32>
    %2 = tpu.iota {dimensions = array<i32: 1>} : vector<16x64xi32>
    %3 = vector.broadcast %1 : vector<16x1xi32> to vector<16x64xi32>
    %4 = arith.cmpi eq, %2, %3 : vector<16x64xi32>
    %5 = arith.extui %4 : vector<16x64xi1> to vector<16x64xi32>
    %6 = arith.sitofp %5 : vector<16x64xi32> to vector<16x64xf32>
    %cst = arith.constant dense<0.000000e+00> : vector<16x32xf32>
    %7 = tpu.matmul %6, %0, %cst {dimension_numbers = #tpu.dot_dimension_numbers<[1], [0], [0], [1], [0, 0, 1, 1], [], []>} : vector<16x64xf32>, vector<64x32xf32>, vector<16x32xf32> -> vector<16x32xf32>
    %c0_3 = arith.constant 0 : index
    %c0_4 = arith.constant 0 : index
    %8 = vector.load %arg3[%c0_3, %c0_4] : memref<16x32xf32, #tpu.memory_space<vmem>>, vector<16x32xf32>
    %9 = tpu.iota {dimensions = array<i32: 1>} : vector<16x16xi32>
    %10 = tpu.iota {dimensions = array<i32: 0>} : vector<16x1xi32>
    %c8_i32 = arith.constant 8 : i32
    %c0_i32 = arith.constant 0 : i32
    %11 = arith.cmpi eq, %c8_i32, %c0_i32 : i32
    %c1_i32 = arith.constant 1 : i32
    %12 = arith.select %11, %c1_i32, %c8_i32 : i32
    %13 = vector.broadcast %12 : i32 to vector<16x1xi32>
    %14 = arith.remsi %10, %13 : vector<16x1xi32>
    %c0_i32_5 = arith.constant 0 : i32
    %15 = vector.broadcast %c0_i32_5 : i32 to vector<16x1xi32>
    %16 = arith.cmpi ne, %14, %15 : vector<16x1xi32>
    %c0_i32_6 = arith.constant 0 : i32
    %17 = vector.broadcast %c0_i32_6 : i32 to vector<16x1xi32>
    %18 = arith.cmpi slt, %14, %17 : vector<16x1xi32>
    %c0_i32_7 = arith.constant 0 : i32
    %19 = arith.cmpi slt, %12, %c0_i32_7 : i32
    %20 = vector.broadcast %19 : i1 to vector<16x1xi1>
    %21 = vector.broadcast %20 : vector<16x1xi1> to vector<16x1xi1>
    %22 = arith.xori %18, %21 : vector<16x1xi1>
    %23 = arith.andi %22, %16 : vector<16x1xi1>
    %24 = vector.broadcast %12 : i32 to vector<16x1xi32>
    %25 = arith.addi %14, %24 : vector<16x1xi32>
    %26 = arith.select %23, %25, %14 : vector<16x1xi1>, vector<16x1xi32>
    %27 = vector.broadcast %26 : vector<16x1xi32> to vector<16x16xi32>
    %28 = arith.cmpi eq, %9, %27 : vector<16x16xi32>
    %29 = arith.extui %28 : vector<16x16xi1> to vector<16x16xi32>
    %30 = arith.sitofp %29 : vector<16x16xi32> to vector<16x16xf32>
    %cst_8 = arith.constant dense<0.000000e+00> : vector<16x32xf32>
    %31 = tpu.matmul %30, %8, %cst_8 {dimension_numbers = #tpu.dot_dimension_numbers<[1], [0], [0], [1], [0, 0, 1, 1], [], []>} : vector<16x16xf32>, vector<16x32xf32>, vector<16x32xf32> -> vector<16x32xf32>
    %32 = arith.addf %7, %31 : vector<16x32xf32>
    %33 = tpu.iota {dimensions = array<i32: 0>} : vector<8x8xi32>
    %34 = tpu.iota {dimensions = array<i32: 1>} : vector<8x8xi32>
    %35 = arith.cmpi sge, %33, %34 : vector<8x8xi32>
    %36 = vector.shape_cast %35 : vector<8x8xi1> to vector<1x8x8xi1>
    %c0_9 = arith.constant 0 : index
    %c0_10 = arith.constant 0 : index
    %c0_11 = arith.constant 0 : index
    %37 = vector.load %arg4[%c0_9, %c0_10, %c0_11] : memref<2x4x32xf32, #tpu.memory_space<vmem>>, vector<1x4x32xf32>
    %38 = vector.shape_cast %37 : vector<1x4x32xf32> to vector<4x32xf32>
    %c0_12 = arith.constant 0 : index
    %c0_13 = arith.constant 0 : index
    %c0_14 = arith.constant 0 : index
    %39 = vector.load %arg9[%c0_12, %c0_13, %c0_14] : memref<2x2x32xf32, #tpu.memory_space<vmem>>, vector<1x2x32xf32>
    %40 = vector.shape_cast %39 : vector<1x2x32xf32> to vector<2x32xf32>
    %c0_15 = arith.constant 0 : index
    %c0_16 = arith.constant 0 : index
    %c0_17 = arith.constant 0 : index
    %c0_18 = arith.constant 0 : index
    %41 = vector.load %arg5[%c0_15, %c0_16, %c0_17, %c0_18] : memref<2x4x32x24xbf16, #tpu.memory_space<vmem>>, vector<1x4x32x24xbf16>
    %42 = vector.shape_cast %41 : vector<1x4x32x24xbf16> to vector<4x32x24xbf16>
    %43 = arith.extf %42 : vector<4x32x24xbf16> to vector<4x32x24xf32>
    %c0_19 = arith.constant 0 : index
    %c0_20 = arith.constant 0 : index
    %c0_21 = arith.constant 0 : index
    %c0_22 = arith.constant 0 : index
    %44 = vector.load %arg6[%c0_19, %c0_20, %c0_21, %c0_22] : memref<2x4x8x32xbf16, #tpu.memory_space<vmem>>, vector<1x4x8x32xbf16>
    %45 = vector.shape_cast %44 : vector<1x4x8x32xbf16> to vector<4x8x32xbf16>
    %46 = arith.extf %45 : vector<4x8x32xbf16> to vector<4x8x32xf32>
    %c0_23 = arith.constant 0 : index
    %c0_24 = arith.constant 0 : index
    %c0_25 = arith.constant 0 : index
    %47 = vector.load %arg7[%c0_23, %c0_24, %c0_25] : memref<2x32x128xbf16, #tpu.memory_space<vmem>>, vector<1x32x128xbf16>
    %48 = vector.shape_cast %47 : vector<1x32x128xbf16> to vector<32x128xbf16>
    %49 = arith.extf %48 : vector<32x128xbf16> to vector<32x128xf32>
    %c0_26 = arith.constant 0 : index
    %c0_27 = arith.constant 0 : index
    %c0_28 = arith.constant 0 : index
    %50 = vector.load %arg8[%c0_26, %c0_27, %c0_28] : memref<2x128x32xbf16, #tpu.memory_space<vmem>>, vector<1x128x32xbf16>
    %51 = vector.shape_cast %50 : vector<1x128x32xbf16> to vector<128x32xbf16>
    %52 = arith.extf %51 : vector<128x32xbf16> to vector<128x32xf32>
    %53 = vector.extract_strided_slice %38 {offsets = [0, 0], sizes = [1, 32], strides = [1, 1]} : vector<4x32xf32> to vector<1x32xf32>
    %54 = vector.extract_strided_slice %38 {offsets = [1, 0], sizes = [1, 32], strides = [1, 1]} : vector<4x32xf32> to vector<1x32xf32>
    %cst_29 = arith.constant dense<0.000000e+00> : vector<16xf32>
    %55 = vector.multi_reduction <add>, %32, %cst_29 [1] : vector<16x32xf32> to vector<16xf32>
    %56 = vector.shape_cast %55 : vector<16xf32> to vector<16x1xf32>
    %cst_30 = arith.constant 3.200000e+01 : f32
    %57 = vector.broadcast %cst_30 : f32 to vector<16x1xf32>
    %58 = arith.divf %56, %57 : vector<16x1xf32>
    %59 = vector.broadcast %58 : vector<16x1xf32> to vector<16x32xf32>
    %60 = arith.subf %32, %59 : vector<16x32xf32>
    %61 = arith.mulf %60, %60 : vector<16x32xf32>
    %cst_31 = arith.constant dense<0.000000e+00> : vector<16xf32>
    %62 = vector.multi_reduction <add>, %61, %cst_31 [1] : vector<16x32xf32> to vector<16xf32>
    %63 = vector.shape_cast %62 : vector<16xf32> to vector<16x1xf32>
    %cst_32 = arith.constant 3.200000e+01 : f32
    %64 = vector.broadcast %cst_32 : f32 to vector<16x1xf32>
    %65 = arith.divf %63, %64 : vector<16x1xf32>
    %66 = vector.broadcast %58 : vector<16x1xf32> to vector<16x32xf32>
    %67 = arith.subf %32, %66 : vector<16x32xf32>
    %cst_33 = arith.constant 9.99999974E-6 : f32
    %68 = vector.broadcast %cst_33 : f32 to vector<16x1xf32>
    %69 = arith.addf %65, %68 : vector<16x1xf32>
    %70 = math.rsqrt %69 : vector<16x1xf32>
    %71 = vector.broadcast %70 : vector<16x1xf32> to vector<16x32xf32>
    %72 = arith.mulf %67, %71 : vector<16x32xf32>
    %73 = vector.broadcast %53 : vector<1x32xf32> to vector<16x32xf32>
    %74 = arith.mulf %72, %73 : vector<16x32xf32>
    %75 = vector.broadcast %54 : vector<1x32xf32> to vector<16x32xf32>
    %76 = arith.addf %74, %75 : vector<16x32xf32>
    %77 = vector.shape_cast %76 : vector<16x32xf32> to vector<1x16x32xf32>
    %78 = vector.shape_cast %77 : vector<1x16x32xf32> to vector<1x16x32xf32>
    %79 = vector.broadcast %78 : vector<1x16x32xf32> to vector<4x16x32xf32>
    "tpu.trace_start"() <{level = 10 : i32, message = "hnd,hde->hne"}> : () -> ()
    %cst_34 = arith.constant dense<0.000000e+00> : vector<4x16x24xf32>
    %80 = tpu.matmul %79, %43, %cst_34 {dimension_numbers = #tpu.dot_dimension_numbers<[2], [1], [1], [2], [0, 0, 0, 1, 1, 2], [0], [0]>} : vector<4x16x32xf32>, vector<4x32x24xf32>, vector<4x16x24xf32> -> vector<4x16x24xf32>
    "tpu.trace_stop"() : () -> ()
    %81 = vector.shape_cast %80 : vector<4x16x24xf32> to vector<8x8x24xf32>
    %82 = vector.extract_strided_slice %81 {offsets = [0, 0, 0], sizes = [8, 8, 8], strides = [1, 1, 1]} : vector<8x8x24xf32> to vector<8x8x8xf32>
    %cst_35 = arith.constant 0.353553385 : f32
    %83 = vector.broadcast %cst_35 : f32 to vector<8x8x8xf32>
    %84 = arith.mulf %82, %83 : vector<8x8x8xf32>
    %85 = vector.extract_strided_slice %81 {offsets = [0, 0, 8], sizes = [8, 8, 8], strides = [1, 1, 1]} : vector<8x8x24xf32> to vector<8x8x8xf32>
    %86 = vector.extract_strided_slice %81 {offsets = [0, 0, 16], sizes = [8, 8, 8], strides = [1, 1, 1]} : vector<8x8x24xf32> to vector<8x8x8xf32>
    "tpu.trace_start"() <{level = 10 : i32, message = "bqd,bkd->bqk"}> : () -> ()
    %cst_36 = arith.constant dense<0.000000e+00> : vector<8x8x8xf32>
    %87 = tpu.matmul %84, %85, %cst_36 {dimension_numbers = #tpu.dot_dimension_numbers<[2], [2], [1], [1], [0, 0, 0, 1, 1, 1], [0], [0]>} : vector<8x8x8xf32>, vector<8x8x8xf32>, vector<8x8x8xf32> -> vector<8x8x8xf32>
    %cst_37 = arith.constant -1.000000e+30 : f32
    "tpu.trace_stop"() : () -> ()
    %88 = vector.shape_cast %36 : vector<1x8x8xi1> to vector<1x8x8xi1>
    %89 = vector.broadcast %88 : vector<1x8x8xi1> to vector<8x8x8xi1>
    %90 = vector.broadcast %cst_37 : f32 to vector<8x8x8xf32>
    %91 = arith.select %89, %87, %90 : vector<8x8x8xi1>, vector<8x8x8xf32>
    %cst_38 = arith.constant dense<0xFF800000> : vector<8x8xf32>
    %92 = vector.multi_reduction <maximumf>, %91, %cst_38 [2] : vector<8x8x8xf32> to vector<8x8xf32>
    %93 = vector.shape_cast %92 : vector<8x8xf32> to vector<8x8x1xf32>
    %94 = vector.broadcast %93 : vector<8x8x1xf32> to vector<8x8x8xf32>
    %95 = arith.subf %91, %94 : vector<8x8x8xf32>
    %96 = math.exp %95 : vector<8x8x8xf32>
    %cst_39 = arith.constant dense<0.000000e+00> : vector<8x8xf32>
    %97 = vector.multi_reduction <add>, %96, %cst_39 [2] : vector<8x8x8xf32> to vector<8x8xf32>
    %98 = vector.shape_cast %97 : vector<8x8xf32> to vector<8x8x1xf32>
    %99 = tpu.reciprocal %98 {approx = true} : vector<8x8x1xf32> -> vector<8x8x1xf32>
    %100 = vector.broadcast %99 : vector<8x8x1xf32> to vector<8x8x8xf32>
    %101 = arith.mulf %96, %100 : vector<8x8x8xf32>
    "tpu.trace_start"() <{level = 10 : i32, message = "bqk,bkd->bqd"}> : () -> ()
    %cst_40 = arith.constant dense<0.000000e+00> : vector<8x8x8xf32>
    %102 = tpu.matmul %101, %86, %cst_40 {dimension_numbers = #tpu.dot_dimension_numbers<[2], [1], [1], [2], [0, 0, 0, 1, 1, 2], [0], [0]>} : vector<8x8x8xf32>, vector<8x8x8xf32>, vector<8x8x8xf32> -> vector<8x8x8xf32>
    "tpu.trace_stop"() : () -> ()
    %103 = vector.shape_cast %102 : vector<8x8x8xf32> to vector<4x16x8xf32>
    "tpu.trace_start"() <{level = 10 : i32, message = "hnd,hde->hne"}> : () -> ()
    %cst_41 = arith.constant dense<0.000000e+00> : vector<4x16x32xf32>
    %104 = tpu.matmul %103, %46, %cst_41 {dimension_numbers = #tpu.dot_dimension_numbers<[2], [1], [1], [2], [0, 0, 0, 1, 1, 2], [0], [0]>} : vector<4x16x8xf32>, vector<4x8x32xf32>, vector<4x16x32xf32> -> vector<4x16x32xf32>
    "tpu.trace_stop"() : () -> ()
    %cst_42 = arith.constant dense<0.000000e+00> : vector<16x32xf32>
    %105 = vector.multi_reduction <add>, %104, %cst_42 [0] : vector<4x16x32xf32> to vector<16x32xf32>
    %106 = arith.addf %32, %105 : vector<16x32xf32>
    %107 = vector.extract_strided_slice %40 {offsets = [0, 0], sizes = [1, 32], strides = [1, 1]} : vector<2x32xf32> to vector<1x32xf32>
    %108 = vector.broadcast %107 : vector<1x32xf32> to vector<16x32xf32>
    %109 = arith.addf %106, %108 : vector<16x32xf32>
    %110 = vector.extract_strided_slice %38 {offsets = [2, 0], sizes = [1, 32], strides = [1, 1]} : vector<4x32xf32> to vector<1x32xf32>
    %111 = vector.extract_strided_slice %38 {offsets = [3, 0], sizes = [1, 32], strides = [1, 1]} : vector<4x32xf32> to vector<1x32xf32>
    %cst_43 = arith.constant dense<0.000000e+00> : vector<16xf32>
    %112 = vector.multi_reduction <add>, %109, %cst_43 [1] : vector<16x32xf32> to vector<16xf32>
    %113 = vector.shape_cast %112 : vector<16xf32> to vector<16x1xf32>
    %cst_44 = arith.constant 3.200000e+01 : f32
    %114 = vector.broadcast %cst_44 : f32 to vector<16x1xf32>
    %115 = arith.divf %113, %114 : vector<16x1xf32>
    %116 = vector.broadcast %115 : vector<16x1xf32> to vector<16x32xf32>
    %117 = arith.subf %109, %116 : vector<16x32xf32>
    %118 = arith.mulf %117, %117 : vector<16x32xf32>
    %cst_45 = arith.constant dense<0.000000e+00> : vector<16xf32>
    %119 = vector.multi_reduction <add>, %118, %cst_45 [1] : vector<16x32xf32> to vector<16xf32>
    %120 = vector.shape_cast %119 : vector<16xf32> to vector<16x1xf32>
    %cst_46 = arith.constant 3.200000e+01 : f32
    %121 = vector.broadcast %cst_46 : f32 to vector<16x1xf32>
    %122 = arith.divf %120, %121 : vector<16x1xf32>
    %123 = vector.broadcast %115 : vector<16x1xf32> to vector<16x32xf32>
    %124 = arith.subf %109, %123 : vector<16x32xf32>
    %cst_47 = arith.constant 9.99999974E-6 : f32
    %125 = vector.broadcast %cst_47 : f32 to vector<16x1xf32>
    %126 = arith.addf %122, %125 : vector<16x1xf32>
    %127 = math.rsqrt %126 : vector<16x1xf32>
    %128 = vector.broadcast %127 : vector<16x1xf32> to vector<16x32xf32>
    %129 = arith.mulf %124, %128 : vector<16x32xf32>
    %130 = vector.broadcast %110 : vector<1x32xf32> to vector<16x32xf32>
    %131 = arith.mulf %129, %130 : vector<16x32xf32>
    %132 = vector.broadcast %111 : vector<1x32xf32> to vector<16x32xf32>
    %133 = arith.addf %131, %132 : vector<16x32xf32>
    %cst_48 = arith.constant dense<0.000000e+00> : vector<16x128xf32>
    %134 = tpu.matmul %133, %49, %cst_48 {dimension_numbers = #tpu.dot_dimension_numbers<[1], [0], [0], [1], [0, 0, 1, 1], [], []>} : vector<16x32xf32>, vector<32x128xf32>, vector<16x128xf32> -> vector<16x128xf32>
    %c0_49 = arith.constant 0 : index
    %c0_50 = arith.constant 0 : index
    %c0_51 = arith.constant 0 : index
    %135 = vector.load %arg10[%c0_49, %c0_50, %c0_51] : memref<2x1x128xf32, #tpu.memory_space<vmem>>, vector<1x1x128xf32>
    %136 = vector.shape_cast %135 : vector<1x1x128xf32> to vector<1x128xf32>
    %137 = vector.broadcast %136 : vector<1x128xf32> to vector<16x128xf32>
    %138 = arith.addf %134, %137 : vector<16x128xf32>
    %cst_52 = arith.constant 0.000000e+00 : f32
    %139 = vector.broadcast %cst_52 : f32 to vector<16x128xf32>
    %140 = arith.maximumf %138, %139 : vector<16x128xf32>
    %cst_53 = arith.constant dense<0.000000e+00> : vector<16x32xf32>
    %141 = tpu.matmul %140, %52, %cst_53 {dimension_numbers = #tpu.dot_dimension_numbers<[1], [0], [0], [1], [0, 0, 1, 1], [], []>} : vector<16x128xf32>, vector<128x32xf32>, vector<16x32xf32> -> vector<16x32xf32>
    %142 = arith.addf %109, %141 : vector<16x32xf32>
    %143 = vector.extract_strided_slice %40 {offsets = [1, 0], sizes = [1, 32], strides = [1, 1]} : vector<2x32xf32> to vector<1x32xf32>
    %144 = vector.broadcast %143 : vector<1x32xf32> to vector<16x32xf32>
    %145 = arith.addf %142, %144 : vector<16x32xf32>
    %c1 = arith.constant 1 : index
    %c0_54 = arith.constant 0 : index
    %c0_55 = arith.constant 0 : index
    %146 = vector.load %arg4[%c1, %c0_54, %c0_55] : memref<2x4x32xf32, #tpu.memory_space<vmem>>, vector<1x4x32xf32>
    %147 = vector.shape_cast %146 : vector<1x4x32xf32> to vector<4x32xf32>
    %c1_56 = arith.constant 1 : index
    %c0_57 = arith.constant 0 : index
    %c0_58 = arith.constant 0 : index
    %148 = vector.load %arg9[%c1_56, %c0_57, %c0_58] : memref<2x2x32xf32, #tpu.memory_space<vmem>>, vector<1x2x32xf32>
    %149 = vector.shape_cast %148 : vector<1x2x32xf32> to vector<2x32xf32>
    %c1_59 = arith.constant 1 : index
    %c0_60 = arith.constant 0 : index
    %c0_61 = arith.constant 0 : index
    %c0_62 = arith.constant 0 : index
    %150 = vector.load %arg5[%c1_59, %c0_60, %c0_61, %c0_62] : memref<2x4x32x24xbf16, #tpu.memory_space<vmem>>, vector<1x4x32x24xbf16>
    %151 = vector.shape_cast %150 : vector<1x4x32x24xbf16> to vector<4x32x24xbf16>
    %152 = arith.extf %151 : vector<4x32x24xbf16> to vector<4x32x24xf32>
    %c1_63 = arith.constant 1 : index
    %c0_64 = arith.constant 0 : index
    %c0_65 = arith.constant 0 : index
    %c0_66 = arith.constant 0 : index
    %153 = vector.load %arg6[%c1_63, %c0_64, %c0_65, %c0_66] : memref<2x4x8x32xbf16, #tpu.memory_space<vmem>>, vector<1x4x8x32xbf16>
    %154 = vector.shape_cast %153 : vector<1x4x8x32xbf16> to vector<4x8x32xbf16>
    %155 = arith.extf %154 : vector<4x8x32xbf16> to vector<4x8x32xf32>
    %c1_67 = arith.constant 1 : index
    %c0_68 = arith.constant 0 : index
    %c0_69 = arith.constant 0 : index
    %156 = vector.load %arg7[%c1_67, %c0_68, %c0_69] : memref<2x32x128xbf16, #tpu.memory_space<vmem>>, vector<1x32x128xbf16>
    %157 = vector.shape_cast %156 : vector<1x32x128xbf16> to vector<32x128xbf16>
    %158 = arith.extf %157 : vector<32x128xbf16> to vector<32x128xf32>
    %c1_70 = arith.constant 1 : index
    %c0_71 = arith.constant 0 : index
    %c0_72 = arith.constant 0 : index
    %159 = vector.load %arg8[%c1_70, %c0_71, %c0_72] : memref<2x128x32xbf16, #tpu.memory_space<vmem>>, vector<1x128x32xbf16>
    %160 = vector.shape_cast %159 : vector<1x128x32xbf16> to vector<128x32xbf16>
    %161 = arith.extf %160 : vector<128x32xbf16> to vector<128x32xf32>
    %162 = vector.extract_strided_slice %147 {offsets = [0, 0], sizes = [1, 32], strides = [1, 1]} : vector<4x32xf32> to vector<1x32xf32>
    %163 = vector.extract_strided_slice %147 {offsets = [1, 0], sizes = [1, 32], strides = [1, 1]} : vector<4x32xf32> to vector<1x32xf32>
    %cst_73 = arith.constant dense<0.000000e+00> : vector<16xf32>
    %164 = vector.multi_reduction <add>, %145, %cst_73 [1] : vector<16x32xf32> to vector<16xf32>
    %165 = vector.shape_cast %164 : vector<16xf32> to vector<16x1xf32>
    %cst_74 = arith.constant 3.200000e+01 : f32
    %166 = vector.broadcast %cst_74 : f32 to vector<16x1xf32>
    %167 = arith.divf %165, %166 : vector<16x1xf32>
    %168 = vector.broadcast %167 : vector<16x1xf32> to vector<16x32xf32>
    %169 = arith.subf %145, %168 : vector<16x32xf32>
    %170 = arith.mulf %169, %169 : vector<16x32xf32>
    %cst_75 = arith.constant dense<0.000000e+00> : vector<16xf32>
    %171 = vector.multi_reduction <add>, %170, %cst_75 [1] : vector<16x32xf32> to vector<16xf32>
    %172 = vector.shape_cast %171 : vector<16xf32> to vector<16x1xf32>
    %cst_76 = arith.constant 3.200000e+01 : f32
    %173 = vector.broadcast %cst_76 : f32 to vector<16x1xf32>
    %174 = arith.divf %172, %173 : vector<16x1xf32>
    %175 = vector.broadcast %167 : vector<16x1xf32> to vector<16x32xf32>
    %176 = arith.subf %145, %175 : vector<16x32xf32>
    %cst_77 = arith.constant 9.99999974E-6 : f32
    %177 = vector.broadcast %cst_77 : f32 to vector<16x1xf32>
    %178 = arith.addf %174, %177 : vector<16x1xf32>
    %179 = math.rsqrt %178 : vector<16x1xf32>
    %180 = vector.broadcast %179 : vector<16x1xf32> to vector<16x32xf32>
    %181 = arith.mulf %176, %180 : vector<16x32xf32>
    %182 = vector.broadcast %162 : vector<1x32xf32> to vector<16x32xf32>
    %183 = arith.mulf %181, %182 : vector<16x32xf32>
    %184 = vector.broadcast %163 : vector<1x32xf32> to vector<16x32xf32>
    %185 = arith.addf %183, %184 : vector<16x32xf32>
    %186 = vector.shape_cast %185 : vector<16x32xf32> to vector<1x16x32xf32>
    %187 = vector.shape_cast %186 : vector<1x16x32xf32> to vector<1x16x32xf32>
    %188 = vector.broadcast %187 : vector<1x16x32xf32> to vector<4x16x32xf32>
    "tpu.trace_start"() <{level = 10 : i32, message = "hnd,hde->hne"}> : () -> ()
    %cst_78 = arith.constant dense<0.000000e+00> : vector<4x16x24xf32>
    %189 = tpu.matmul %188, %152, %cst_78 {dimension_numbers = #tpu.dot_dimension_numbers<[2], [1], [1], [2], [0, 0, 0, 1, 1, 2], [0], [0]>} : vector<4x16x32xf32>, vector<4x32x24xf32>, vector<4x16x24xf32> -> vector<4x16x24xf32>
    "tpu.trace_stop"() : () -> ()
    %190 = vector.shape_cast %189 : vector<4x16x24xf32> to vector<8x8x24xf32>
    %191 = vector.extract_strided_slice %190 {offsets = [0, 0, 0], sizes = [8, 8, 8], strides = [1, 1, 1]} : vector<8x8x24xf32> to vector<8x8x8xf32>
    %cst_79 = arith.constant 0.353553385 : f32
    %192 = vector.broadcast %cst_79 : f32 to vector<8x8x8xf32>
    %193 = arith.mulf %191, %192 : vector<8x8x8xf32>
    %194 = vector.extract_strided_slice %190 {offsets = [0, 0, 8], sizes = [8, 8, 8], strides = [1, 1, 1]} : vector<8x8x24xf32> to vector<8x8x8xf32>
    %195 = vector.extract_strided_slice %190 {offsets = [0, 0, 16], sizes = [8, 8, 8], strides = [1, 1, 1]} : vector<8x8x24xf32> to vector<8x8x8xf32>
    "tpu.trace_start"() <{level = 10 : i32, message = "bqd,bkd->bqk"}> : () -> ()
    %cst_80 = arith.constant dense<0.000000e+00> : vector<8x8x8xf32>
    %196 = tpu.matmul %193, %194, %cst_80 {dimension_numbers = #tpu.dot_dimension_numbers<[2], [2], [1], [1], [0, 0, 0, 1, 1, 1], [0], [0]>} : vector<8x8x8xf32>, vector<8x8x8xf32>, vector<8x8x8xf32> -> vector<8x8x8xf32>
    %cst_81 = arith.constant -1.000000e+30 : f32
    "tpu.trace_stop"() : () -> ()
    %197 = vector.shape_cast %36 : vector<1x8x8xi1> to vector<1x8x8xi1>
    %198 = vector.broadcast %197 : vector<1x8x8xi1> to vector<8x8x8xi1>
    %199 = vector.broadcast %cst_81 : f32 to vector<8x8x8xf32>
    %200 = arith.select %198, %196, %199 : vector<8x8x8xi1>, vector<8x8x8xf32>
    %cst_82 = arith.constant dense<0xFF800000> : vector<8x8xf32>
    %201 = vector.multi_reduction <maximumf>, %200, %cst_82 [2] : vector<8x8x8xf32> to vector<8x8xf32>
    %202 = vector.shape_cast %201 : vector<8x8xf32> to vector<8x8x1xf32>
    %203 = vector.broadcast %202 : vector<8x8x1xf32> to vector<8x8x8xf32>
    %204 = arith.subf %200, %203 : vector<8x8x8xf32>
    %205 = math.exp %204 : vector<8x8x8xf32>
    %cst_83 = arith.constant dense<0.000000e+00> : vector<8x8xf32>
    %206 = vector.multi_reduction <add>, %205, %cst_83 [2] : vector<8x8x8xf32> to vector<8x8xf32>
    %207 = vector.shape_cast %206 : vector<8x8xf32> to vector<8x8x1xf32>
    %208 = tpu.reciprocal %207 {approx = true} : vector<8x8x1xf32> -> vector<8x8x1xf32>
    %209 = vector.broadcast %208 : vector<8x8x1xf32> to vector<8x8x8xf32>
    %210 = arith.mulf %205, %209 : vector<8x8x8xf32>
    "tpu.trace_start"() <{level = 10 : i32, message = "bqk,bkd->bqd"}> : () -> ()
    %cst_84 = arith.constant dense<0.000000e+00> : vector<8x8x8xf32>
    %211 = tpu.matmul %210, %195, %cst_84 {dimension_numbers = #tpu.dot_dimension_numbers<[2], [1], [1], [2], [0, 0, 0, 1, 1, 2], [0], [0]>} : vector<8x8x8xf32>, vector<8x8x8xf32>, vector<8x8x8xf32> -> vector<8x8x8xf32>
    "tpu.trace_stop"() : () -> ()
    %212 = vector.shape_cast %211 : vector<8x8x8xf32> to vector<4x16x8xf32>
    "tpu.trace_start"() <{level = 10 : i32, message = "hnd,hde->hne"}> : () -> ()
    %cst_85 = arith.constant dense<0.000000e+00> : vector<4x16x32xf32>
    %213 = tpu.matmul %212, %155, %cst_85 {dimension_numbers = #tpu.dot_dimension_numbers<[2], [1], [1], [2], [0, 0, 0, 1, 1, 2], [0], [0]>} : vector<4x16x8xf32>, vector<4x8x32xf32>, vector<4x16x32xf32> -> vector<4x16x32xf32>
    "tpu.trace_stop"() : () -> ()
    %cst_86 = arith.constant dense<0.000000e+00> : vector<16x32xf32>
    %214 = vector.multi_reduction <add>, %213, %cst_86 [0] : vector<4x16x32xf32> to vector<16x32xf32>
    %215 = arith.addf %145, %214 : vector<16x32xf32>
    %216 = vector.extract_strided_slice %149 {offsets = [0, 0], sizes = [1, 32], strides = [1, 1]} : vector<2x32xf32> to vector<1x32xf32>
    %217 = vector.broadcast %216 : vector<1x32xf32> to vector<16x32xf32>
    %218 = arith.addf %215, %217 : vector<16x32xf32>
    %219 = vector.extract_strided_slice %147 {offsets = [2, 0], sizes = [1, 32], strides = [1, 1]} : vector<4x32xf32> to vector<1x32xf32>
    %220 = vector.extract_strided_slice %147 {offsets = [3, 0], sizes = [1, 32], strides = [1, 1]} : vector<4x32xf32> to vector<1x32xf32>
    %cst_87 = arith.constant dense<0.000000e+00> : vector<16xf32>
    %221 = vector.multi_reduction <add>, %218, %cst_87 [1] : vector<16x32xf32> to vector<16xf32>
    %222 = vector.shape_cast %221 : vector<16xf32> to vector<16x1xf32>
    %cst_88 = arith.constant 3.200000e+01 : f32
    %223 = vector.broadcast %cst_88 : f32 to vector<16x1xf32>
    %224 = arith.divf %222, %223 : vector<16x1xf32>
    %225 = vector.broadcast %224 : vector<16x1xf32> to vector<16x32xf32>
    %226 = arith.subf %218, %225 : vector<16x32xf32>
    %227 = arith.mulf %226, %226 : vector<16x32xf32>
    %cst_89 = arith.constant dense<0.000000e+00> : vector<16xf32>
    %228 = vector.multi_reduction <add>, %227, %cst_89 [1] : vector<16x32xf32> to vector<16xf32>
    %229 = vector.shape_cast %228 : vector<16xf32> to vector<16x1xf32>
    %cst_90 = arith.constant 3.200000e+01 : f32
    %230 = vector.broadcast %cst_90 : f32 to vector<16x1xf32>
    %231 = arith.divf %229, %230 : vector<16x1xf32>
    %232 = vector.broadcast %224 : vector<16x1xf32> to vector<16x32xf32>
    %233 = arith.subf %218, %232 : vector<16x32xf32>
    %cst_91 = arith.constant 9.99999974E-6 : f32
    %234 = vector.broadcast %cst_91 : f32 to vector<16x1xf32>
    %235 = arith.addf %231, %234 : vector<16x1xf32>
    %236 = math.rsqrt %235 : vector<16x1xf32>
    %237 = vector.broadcast %236 : vector<16x1xf32> to vector<16x32xf32>
    %238 = arith.mulf %233, %237 : vector<16x32xf32>
    %239 = vector.broadcast %219 : vector<1x32xf32> to vector<16x32xf32>
    %240 = arith.mulf %238, %239 : vector<16x32xf32>
    %241 = vector.broadcast %220 : vector<1x32xf32> to vector<16x32xf32>
    %242 = arith.addf %240, %241 : vector<16x32xf32>
    %cst_92 = arith.constant dense<0.000000e+00> : vector<16x128xf32>
    %243 = tpu.matmul %242, %158, %cst_92 {dimension_numbers = #tpu.dot_dimension_numbers<[1], [0], [0], [1], [0, 0, 1, 1], [], []>} : vector<16x32xf32>, vector<32x128xf32>, vector<16x128xf32> -> vector<16x128xf32>
    %c1_93 = arith.constant 1 : index
    %c0_94 = arith.constant 0 : index
    %c0_95 = arith.constant 0 : index
    %244 = vector.load %arg10[%c1_93, %c0_94, %c0_95] : memref<2x1x128xf32, #tpu.memory_space<vmem>>, vector<1x1x128xf32>
    %245 = vector.shape_cast %244 : vector<1x1x128xf32> to vector<1x128xf32>
    %246 = vector.broadcast %245 : vector<1x128xf32> to vector<16x128xf32>
    %247 = arith.addf %243, %246 : vector<16x128xf32>
    %cst_96 = arith.constant 0.000000e+00 : f32
    %248 = vector.broadcast %cst_96 : f32 to vector<16x128xf32>
    %249 = arith.maximumf %247, %248 : vector<16x128xf32>
    %cst_97 = arith.constant dense<0.000000e+00> : vector<16x32xf32>
    %250 = tpu.matmul %249, %161, %cst_97 {dimension_numbers = #tpu.dot_dimension_numbers<[1], [0], [0], [1], [0, 0, 1, 1], [], []>} : vector<16x128xf32>, vector<128x32xf32>, vector<16x32xf32> -> vector<16x32xf32>
    %251 = arith.addf %218, %250 : vector<16x32xf32>
    %252 = vector.extract_strided_slice %149 {offsets = [1, 0], sizes = [1, 32], strides = [1, 1]} : vector<2x32xf32> to vector<1x32xf32>
    %253 = vector.broadcast %252 : vector<1x32xf32> to vector<16x32xf32>
    %254 = arith.addf %251, %253 : vector<16x32xf32>
    %c0_98 = arith.constant 0 : index
    %c0_99 = arith.constant 0 : index
    %255 = vector.load %arg11[%c0_98, %c0_99] : memref<32x128xbf16, #tpu.memory_space<vmem>>, vector<32x128xbf16>
    %256 = arith.extf %255 : vector<32x128xbf16> to vector<32x128xf32>
    %cst_100 = arith.constant dense<0.000000e+00> : vector<16x128xf32>
    %257 = tpu.matmul %254, %256, %cst_100 {dimension_numbers = #tpu.dot_dimension_numbers<[1], [0], [0], [1], [0, 0, 1, 1], [], []>} : vector<16x32xf32>, vector<32x128xf32>, vector<16x128xf32> -> vector<16x128xf32>
    %c0_101 = arith.constant 0 : index
    %c0_102 = arith.constant 0 : index
    %258 = vector.load %arg12[%c0_101, %c0_102] : memref<1x128xf32, #tpu.memory_space<vmem>>, vector<1x128xf32>
    %259 = vector.broadcast %258 : vector<1x128xf32> to vector<16x128xf32>
    %260 = arith.addf %257, %259 : vector<16x128xf32>
    %c0_103 = arith.constant 0 : index
    %c0_104 = arith.constant 0 : index
    %261 = vector.load %arg13[%c0_103, %c0_104] : memref<16x128xf32, #tpu.memory_space<vmem>>, vector<16x128xf32>
    tpu.vector_store %arg13[%c0_103, %c0_104], %260 {strides = array<i32>} : memref<16x128xf32, #tpu.memory_space<vmem>>, vector<16x128xf32>,
    %c0_105 = arith.constant 0 : index
    %c0_106 = arith.constant 0 : index
    %262 = vector.load %arg1[%c0_105, %c0_106] : memref<16x1xi32, #tpu.memory_space<vmem>>, vector<16x1xi32>
    %cst_107 = arith.constant dense<0xFF800000> : vector<16xf32>
    %263 = vector.multi_reduction <maximumf>, %260, %cst_107 [1] : vector<16x128xf32> to vector<16xf32>
    %264 = vector.shape_cast %263 : vector<16xf32> to vector<16x1xf32>
    %265 = vector.broadcast %264 : vector<16x1xf32> to vector<16x128xf32>
    %266 = arith.subf %260, %265 : vector<16x128xf32>
    %267 = math.exp %266 : vector<16x128xf32>
    %cst_108 = arith.constant dense<0.000000e+00> : vector<16xf32>
    %268 = vector.multi_reduction <add>, %267, %cst_108 [1] : vector<16x128xf32> to vector<16xf32>
    %269 = vector.shape_cast %268 : vector<16xf32> to vector<16x1xf32>
    %270 = math.log %269 : vector<16x1xf32>
    %271 = arith.addf %270, %264 : vector<16x1xf32>
    %272 = tpu.iota {dimensions = array<i32: 1>} : vector<16x128xi32>
    %273 = vector.broadcast %262 : vector<16x1xi32> to vector<16x128xi32>
    %274 = arith.cmpi eq, %272, %273 : vector<16x128xi32>
    %cst_109 = arith.constant 0.000000e+00 : f32
    %275 = vector.broadcast %cst_109 : f32 to vector<16x128xf32>
    %276 = arith.select %274, %260, %275 : vector<16x128xi1>, vector<16x128xf32>
    %cst_110 = arith.constant dense<0.000000e+00> : vector<16xf32>
    %277 = vector.multi_reduction <add>, %276, %cst_110 [1] : vector<16x128xf32> to vector<16xf32>
    %278 = vector.shape_cast %277 : vector<16xf32> to vector<16x1xf32>
    %279 = arith.subf %271, %278 : vector<16x1xf32>
    %cst_111 = arith.constant dense<0.000000e+00> : vector<1xf32>
    %280 = vector.multi_reduction <add>, %279, %cst_111 [0] : vector<16x1xf32> to vector<1xf32>
    %281 = vector.shape_cast %280 : vector<1xf32> to vector<1x1xf32>
    %cst_112 = arith.constant 6.250000e-02 : f32
    %282 = vector.broadcast %cst_112 : f32 to vector<1x1xf32>
    %283 = arith.mulf %281, %282 : vector<1x1xf32>
    %c0_113 = arith.constant 0 : index
    %c0_114 = arith.constant 0 : index
    %284 = vector.load %arg14[%c0_113, %c0_114] : memref<1x1xf32, #tpu.memory_space<vmem>>, vector<1x1xf32>
    tpu.vector_store %arg14[%c0_113, %c0_114], %283 {strides = array<i32>} : memref<1x1xf32, #tpu.memory_space<vmem>>, vector<1x1xf32>,
    return
  }
}

</mosaic_0001>

<llo_original>
// kernel: tpu_custom_call.1
$region0: #{tpu_custom_call.1}
  #allocation0 [shape = 'u32[]', space=smem, size = 0x4, offset = 0x4, fixed_abs, tag = 'smem constant byte address 0x4 - core index']
  #allocation1 [shape = 'u32[144,128]{1,0:T(1,128)}', space=vmem, size = 0x12000, scoped, tag = 'internal scratch']
  %s0 = inlined_call_operand.vmem [shape: s32[16,1], index: 0, kind: input, shape index: {}]
  %s1 = inlined_call_operand.vmem [shape: s32[16,1], index: 1, kind: input, shape index: {}]
  %s2 = inlined_call_operand.vmem [shape: f32[64,32], index: 2, kind: input, shape index: {}]
  %s3 = inlined_call_operand.vmem [shape: f32[16,32], index: 3, kind: input, shape index: {}]
  %s4 = inlined_call_operand.vmem [shape: f32[2,4,32], index: 4, kind: input, shape index: {}]
  %s5 = inlined_call_operand.vmem [shape: bf16[2,4,32,24], index: 5, kind: input, shape index: {}]
  %s6 = inlined_call_operand.vmem [shape: bf16[2,4,8,32], index: 6, kind: input, shape index: {}]
  %s7 = inlined_call_operand.vmem [shape: bf16[2,32,128], index: 7, kind: input, shape index: {}]
  %s8 = inlined_call_operand.vmem [shape: bf16[2,128,32], index: 8, kind: input, shape index: {}]
  %s9 = inlined_call_operand.vmem [shape: f32[2,2,32], index: 9, kind: input, shape index: {}]
  %s10 = inlined_call_operand.vmem [shape: f32[2,1,128], index: 10, kind: input, shape index: {}]
  %s11 = inlined_call_operand.vmem [shape: bf16[32,128], index: 11, kind: input, shape index: {}]
  %s12 = inlined_call_operand.vmem [shape: f32[1,128], index: 12, kind: input, shape index: {}]
  %s13 = inlined_call_operand.hbm [shape: f32[16,128], index: 13, kind: output, shape index: {0}]
  %s14 = inlined_call_operand.hbm [shape: f32[1,1], index: 14, kind: output, shape index: {1}]
  %15 = xla_tuple %s13, %s14
  %s16 = sld [smem:[#allocation0]]
  $region70: #{tpu_custom_call.1} parent=0
    _
  %s18 = ssub.s32 1, %s16
  %s19 = scalar_select 0, %s18, %s16
  $region1: #{tpu_custom_call.1} parent=0
    #allocation2 [shape = 'u8[8192]{0}', space=vmem, size = 0x2000, scoped, tag = 'output window, operand 0, single buffered']
    #allocation3 [shape = 's32[1]{0}', space=sflag, size = 0x4, scoped, tag = 'scoped memory for tpu_custom_call.1']
    #allocation4 [shape = 'u8[512]{0}', space=vmem, size = 0x400, scoped, tag = 'output window, operand 1, single buffered']
    #allocation5 [shape = 's32[1]{0}', space=sflag, size = 0x4, scoped, tag = 'scoped memory for tpu_custom_call.1']
    %20 = vsyncpa [#allocation3], 0
    %21 = vsyncpa [#allocation5], 0
    // Predicated region
    $region2: #{tpu_custom_call.1} parent=1 // pred_check
      _
    $region3: #{tpu_custom_call.1} parent=1 // pred_check_branch
      %23 = sbr.rel (0) target = $region5
    $region4: #{tpu_custom_call.1} parent=1 // pred_region
      _
    $region5: #{tpu_custom_call.1} parent=1 // pred_fallthru
      _
    // Predicated region
    $region6: #{tpu_custom_call.1} parent=1 // pred_check
      _
    $region7: #{tpu_custom_call.1} parent=1 // pred_check_branch
      %25 = sbr.rel (0) target = $region9
    $region8: #{tpu_custom_call.1} parent=1 // pred_region
      _
    $region9: #{tpu_custom_call.1} parent=1 // pred_fallthru
      _
    // Predicated region
    $region10: #{tpu_custom_call.1} parent=1 // pred_check
      _
    $region11: #{tpu_custom_call.1} parent=1 // pred_check_branch
      %27 = sbr.rel (0) target = $region13
    $region12: #{tpu_custom_call.1} parent=1 // pred_region
      _
    $region13: #{tpu_custom_call.1} parent=1 // pred_fallthru
      _
    // Predicated region
    $region14: #{tpu_custom_call.1} parent=1 // pred_check
      _
    $region15: #{tpu_custom_call.1} parent=1 // pred_check_branch
      %29 = sbr.rel (0) target = $region17
    $region16: #{tpu_custom_call.1} parent=1 // pred_region
      _
    $region17: #{tpu_custom_call.1} parent=1 // pred_fallthru
      _
    // Predicated region
    $region18: #{tpu_custom_call.1} parent=1 // pred_check
      _
    $region19: #{tpu_custom_call.1} parent=1 // pred_check_branch
      %31 = sbr.rel (0) target = $region21
    $region20: #{tpu_custom_call.1} parent=1 // pred_region
      _
    $region21: #{tpu_custom_call.1} parent=1 // pred_fallthru
      _
    // Predicated region
    $region22: #{tpu_custom_call.1} parent=1 // pred_check
      _
    $region23: #{tpu_custom_call.1} parent=1 // pred_check_branch
      %33 = sbr.rel (0) target = $region25
    $region24: #{tpu_custom_call.1} parent=1 // pred_region
      _
    $region25: #{tpu_custom_call.1} parent=1 // pred_fallthru
      _
    // Predicated region
    $region26: #{tpu_custom_call.1} parent=1 // pred_check
      _
    $region27: #{tpu_custom_call.1} parent=1 // pred_check_branch
      %35 = sbr.rel (0) target = $region29
    $region28: #{tpu_custom_call.1} parent=1 // pred_region
      _
    $region29: #{tpu_custom_call.1} parent=1 // pred_fallthru
      _
    // Predicated region
    $region30: #{tpu_custom_call.1} parent=1 // pred_check
      _
    $region31: #{tpu_custom_call.1} parent=1 // pred_check_branch
      %37 = sbr.rel (0) target = $region33
    $region32: #{tpu_custom_call.1} parent=1 // pred_region
      _
    $region33: #{tpu_custom_call.1} parent=1 // pred_fallthru
      _
    // Predicated region
    $region34: #{tpu_custom_call.1} parent=1 // pred_check
      _
    $region35: #{tpu_custom_call.1} parent=1 // pred_check_branch
      %39 = sbr.rel (0) target = $region37
    $region36: #{tpu_custom_call.1} parent=1 // pred_region
      _
    $region37: #{tpu_custom_call.1} parent=1 // pred_fallthru
      _
    // Predicated region
    $region38: #{tpu_custom_call.1} parent=1 // pred_check
      _
    $region39: #{tpu_custom_call.1} parent=1 // pred_check_branch
      %41 = sbr.rel (0) target = $region41
    $region40: #{tpu_custom_call.1} parent=1 // pred_region
      _
    $region41: #{tpu_custom_call.1} parent=1 // pred_fallthru
      _
    // Predicated region
    $region42: #{tpu_custom_call.1} parent=1 // pred_check
      _
    $region43: #{tpu_custom_call.1} parent=1 // pred_check_branch
      %43 = sbr.rel (0) target = $region45
    $region44: #{tpu_custom_call.1} parent=1 // pred_region
      _
    $region45: #{tpu_custom_call.1} parent=1 // pred_fallthru
      _
    // Predicated region
    $region46: #{tpu_custom_call.1} parent=1 // pred_check
      _
    $region47: #{tpu_custom_call.1} parent=1 // pred_check_branch
      %45 = sbr.rel (0) target = $region49
    $region48: #{tpu_custom_call.1} parent=1 // pred_region
      _
    $region49: #{tpu_custom_call.1} parent=1 // pred_fallthru
      _
    // Predicated region
    $region50: #{tpu_custom_call.1} parent=1 // pred_check
      _
    $region51: #{tpu_custom_call.1} parent=1 // pred_check_branch
      %47 = sbr.rel (0) target = $region53
    $region52: #{tpu_custom_call.1} parent=1 // pred_region
      _
    $region53: #{tpu_custom_call.1} parent=1 // pred_fallthru
      _
    %v48 = vld [vmem:[%s2] sm:$0xff]
    %v49 = vld [vmem:[%s2 + $0x8] sm:$0xff]
    %v50 = vld [vmem:[%s2 + $0x10] sm:$0xff]
    %v51 = vld [vmem:[%s2 + $0x18] sm:$0xff]
    %v52 = vld [vmem:[%s2 + $0x20] sm:$0xff]
    %v53 = vld [vmem:[%s2 + $0x28] sm:$0xff]
    %v54 = vld [vmem:[%s2 + $0x30] sm:$0xff]
    %v55 = vld [vmem:[%s2 + $0x38] sm:$0xff]
    %v56 = vld [vmem:[%s0] sm:$0xff]
    %v57 = vld [vmem:[%s0 + $0x8] sm:$0xff]
    %v58 = vlaneseq
    %v59 = vand.u32 %v58, 127
    %60 = vset.pattern.permute.xlu0 0
    %61 = vperm.xlu0 %60, %v56
    %v62 = vpop.permute.xlu0 %61
    %63 = vset.pattern.permute.xlu0 0
    %64 = vperm.xlu0 %63, %v57
    %v65 = vpop.permute.xlu0 %64
    %vm66 = vcmp.eq.s32.totalorder %v59, %v62
    %vm67 = vcmp.eq.s32.totalorder %v59, %v65
    %v68 = vsel %vm66, 1, 0
    %v69 = vsel %vm67, 1, 0
    %v70 = vcvt.s32.f32 %v68
    %v71 = vcvt.s32.f32 %v69
    %v72 = vld [vmem:[%s3] sm:$0xff]
    %v73 = vld [vmem:[%s3 + $0x8] sm:$0xff]
    %v74 = vlaneseq
    %v75 = vshrl.u32 %v74, 7
    %v76 = vadd.s32 %v75, 8
    %vm77 = vcmp.lt.s32.totalorder %v75, 0
    %v78 = vsub.s32 0, %v75
    %v79 = vsel %vm77, %v78, %v75
    %v80 = vshrl.u32 %v79, 3
    %v81 = vand.u32 %v79, 7
    %v82 = vsub.s32 0, %v81
    %v83 = vsel %vm77, %v82, %v81
    %vm84 = vcmp.lt.s32.totalorder %v76, 0
    %v85 = vsub.s32 0, %v76
    %v86 = vsel %vm84, %v85, %v76
    %v87 = vshrl.u32 %v86, 3
    %v88 = vand.u32 %v86, 7
    %v89 = vsub.s32 0, %v88
    %v90 = vsel %vm84, %v89, %v88
    %vm91 = vcmp.ne.s32.totalorder %v83, 0
    %vm92 = vcmp.ne.s32.totalorder %v90, 0
    %vm93 = vcmp.lt.s32.totalorder %v83, 0
    %vm94 = vcmp.lt.s32.totalorder %v90, 0
    %vm95 = vmand %vm93, %vm91
    %vm96 = vmand %vm94, %vm92
    %v97 = vadd.s32 %v83, 8
    %v98 = vadd.s32 %v90, 8
    %v99 = vsel %vm95, %v97, %v83
    %v100 = vsel %vm96, %v98, %v90
    %vm101 = vcmp.eq.s32.totalorder %v59, %v99
    %vm102 = vcmp.eq.s32.totalorder %v59, %v100
    %v103 = vsel %vm101, 1, 0
    %v104 = vsel %vm102, 1, 0
    %v105 = vcvt.s32.f32 %v103
    %v106 = vcvt.s32.f32 %v104
    %vm107 = vcmask 130048
    %v109 = vsel %vm107, %v105, 0
    %v112 = vsel %vm107, %v106, 0
    %114 = vmatprep.subr.mxu0 0.0
    %115 = vmatpush1.msra.mxu0 0.0
    %116 = vmatprep.subr.mxu0 0.0
    %117 = vmatpush1.msra.mxu0 0.0
    %118 = vmatprep.subr.mxu0 0.0
    %119 = vmatpush1.msra.mxu0 0.0
    %120 = vmatprep.subr.mxu0 0.0
    %121 = vmatpush1.msra.mxu0 0.0
    %122 = vmatprep.subr.mxu0 0.0
    %123 = vmatpush1.msra.mxu0 0.0
    %124 = vmatprep.subr.mxu0 0.0
    %125 = vmatpush1.msra.mxu0 0.0
    %126 = vmatprep.subr.mxu0 0.0
    %127 = vmatpush1.msra.mxu0 0.0
    %128 = vmatprep.subr.mxu0 0.0
    %129 = vmatpush1.msra.mxu0 0.0
    %130 = vmatprep.subr.mxu0 0.0
    %131 = vmatpush1.msra.mxu0 0.0
    %132 = vmatprep.subr.mxu0 0.0
    %133 = vmatpush1.msra.mxu0 0.0
    %134 = vmatprep.subr.mxu0 0.0
    %135 = vmatpush1.msra.mxu0 0.0
    %136 = vmatprep.subr.mxu0 0.0
    %137 = vmatpush1.msra.mxu0 0.0
    %138 = vmatprep.subr.mxu0 0.0
    %139 = vmatpush1.msra.mxu0 0.0
    %140 = vmatprep.subr.mxu0 0.0
    %141 = vmatpush1.msra.mxu0 0.0
    %142 = vmatprep.subr.mxu0 0.0
    %143 = vmatpush1.msra.mxu0 %v73
    %144 = vmatprep.subr.mxu0 0.0
    %145 = vmatpush1.msra.mxu0 %v72
    %146 = vmatprep.subr.mxu0 0.0
    %147 = vmatpush2.msra.mxu0 0.0
    %148 = vmatprep.subr.mxu0 0.0
    %149 = vmatpush2.msra.mxu0 0.0
    %150 = vmatprep.subr.mxu0 0.0
    %151 = vmatpush2.msra.mxu0 0.0
    %152 = vmatprep.subr.mxu0 0.0
    %153 = vmatpush2.msra.mxu0 0.0
    %154 = vmatprep.subr.mxu0 0.0
    %155 = vmatpush2.msra.mxu0 0.0
    %156 = vmatprep.subr.mxu0 0.0
    %157 = vmatpush2.msra.mxu0 0.0
    %158 = vmatprep.subr.mxu0 0.0
    %159 = vmatpush2.msra.mxu0 0.0
    %160 = vmatprep.subr.mxu0 0.0
    %161 = vmatpush2.msra.mxu0 0.0
    %162 = vmatprep.subr.mxu0 0.0
    %163 = vmatpush2.msra.mxu0 0.0
    %164 = vmatprep.subr.mxu0 0.0
    %165 = vmatpush2.msra.mxu0 0.0
    %166 = vmatprep.subr.mxu0 0.0
    %167 = vmatpush2.msra.mxu0 0.0
    %168 = vmatprep.subr.mxu0 0.0
    %169 = vmatpush2.msra.mxu0 0.0
    %170 = vmatprep.subr.mxu0 0.0
    %171 = vmatpush2.msra.mxu0 0.0
    %172 = vmatprep.subr.mxu0 0.0
    %173 = vmatpush2.msra.mxu0 0.0
    %174 = vmatprep.subr.mxu0 0.0
    %175 = vmatpush2.msra.mxu0 0.0
    %176 = vmatprep.subr.mxu0 0.0
    %177 = vmatpush2.msra.mxu0 0.0
    %178 = vmatprep.mubr.f32.mxu0 0.0
    %179 = vmatmul.mubr.f32.gmra.mxu0 %v109
    %v180 = vpop.f32.mrf.mxu0
    %v181 = vadd.f32 0.0, %v180
    %v182 = vpop.f32.mrf.mxu0
    %183 = vmatprep.mubr.f32.mxu0 0.0
    %184 = vmatmul.mubr.f32.gmra.mxu0 %v112
    %v185 = vpop.f32.mrf.mxu0
    %v186 = vadd.f32 0.0, %v185
    %v187 = vpop.f32.mrf.mxu0
    %188 = vdwg.mxu0
    %vm189 = vcmask 523264
    %v191 = vsel %vm189, %v70, 0
    %v194 = vsel %vm189, %v71, 0
    %196 = vmatprep.subr.mxu0 0.0
    %197 = vmatpush1.msra.mxu0 0.0
    %198 = vmatprep.subr.mxu0 0.0
    %199 = vmatpush1.msra.mxu0 0.0
    %200 = vmatprep.subr.mxu0 0.0
    %201 = vmatpush1.msra.mxu0 0.0
    %202 = vmatprep.subr.mxu0 0.0
    %203 = vmatpush1.msra.mxu0 0.0
    %204 = vmatprep.subr.mxu0 0.0
    %205 = vmatpush1.msra.mxu0 0.0
    %206 = vmatprep.subr.mxu0 0.0
    %207 = vmatpush1.msra.mxu0 0.0
    %208 = vmatprep.subr.mxu0 0.0
    %209 = vmatpush1.msra.mxu0 0.0
    %210 = vmatprep.subr.mxu0 0.0
    %211 = vmatpush1.msra.mxu0 0.0
    %212 = vmatprep.subr.mxu0 0.0
    %213 = vmatpush1.msra.mxu0 %v55
    %214 = vmatprep.subr.mxu0 0.0
    %215 = vmatpush1.msra.mxu0 %v54
    %216 = vmatprep.subr.mxu0 0.0
    %217 = vmatpush1.msra.mxu0 %v53
    %218 = vmatprep.subr.mxu0 0.0
    %219 = vmatpush1.msra.mxu0 %v52
    %220 = vmatprep.subr.mxu0 0.0
    %221 = vmatpush1.msra.mxu0 %v51
    %222 = vmatprep.subr.mxu0 0.0
    %223 = vmatpush1.msra.mxu0 %v50
    %224 = vmatprep.subr.mxu0 0.0
    %225 = vmatpush1.msra.mxu0 %v49
    %226 = vmatprep.subr.mxu0 0.0
    %227 = vmatpush1.msra.mxu0 %v48
    %228 = vmatprep.subr.mxu0 0.0
    %229 = vmatpush2.msra.mxu0 0.0
    %230 = vmatprep.subr.mxu0 0.0
    %231 = vmatpush2.msra.mxu0 0.0
    %232 = vmatprep.subr.mxu0 0.0
    %233 = vmatpush2.msra.mxu0 0.0
    %234 = vmatprep.subr.mxu0 0.0
    %235 = vmatpush2.msra.mxu0 0.0
    %236 = vmatprep.subr.mxu0 0.0
    %237 = vmatpush2.msra.mxu0 0.0
    %238 = vmatprep.subr.mxu0 0.0
    %239 = vmatpush2.msra.mxu0 0.0
    %240 = vmatprep.subr.mxu0 0.0
    %241 = vmatpush2.msra.mxu0 0.0
    %242 = vmatprep.subr.mxu0 0.0
    %243 = vmatpush2.msra.mxu0 0.0
    %244 = vmatprep.subr.mxu0 0.0
    %245 = vmatpush2.msra.mxu0 0.0
    %246 = vmatprep.subr.mxu0 0.0
    %247 = vmatpush2.msra.mxu0 0.0
    %248 = vmatprep.subr.mxu0 0.0
    %249 = vmatpush2.msra.mxu0 0.0
    %250 = vmatprep.subr.mxu0 0.0
    %251 = vmatpush2.msra.mxu0 0.0
    %252 = vmatprep.subr.mxu0 0.0
    %253 = vmatpush2.msra.mxu0 0.0
    %254 = vmatprep.subr.mxu0 0.0
    %255 = vmatpush2.msra.mxu0 0.0
    %256 = vmatprep.subr.mxu0 0.0
    %257 = vmatpush2.msra.mxu0 0.0
    %258 = vmatprep.subr.mxu0 0.0
    %259 = vmatpush2.msra.mxu0 0.0
    %260 = vmatprep.mubr.f32.mxu0 0.0
    %261 = vmatmul.mubr.f32.gmra.mxu0 %v191
    %v262 = vpop.f32.mrf.mxu0
    %v263 = vadd.f32 %v181, %v262
    %v264 = vpop.f32.mrf.mxu0
    %265 = vmatprep.mubr.f32.mxu0 0.0
    %266 = vmatmul.mubr.f32.gmra.mxu0 %v194
    %v267 = vpop.f32.mrf.mxu0
    %v268 = vadd.f32 %v186, %v267
    %v269 = vpop.f32.mrf.mxu0
    %270 = vdwg.mxu0
    %vm271 = vcmp.ge.s32.totalorder %v75, %v59
    %v272 = vld [vmem:[%s4] sm:$0xf]
    %v273 = vld [vmem:[%s9] sm:$0x3]
    %v274 = vld [vmem:[%s5] sm:$0xf]
    %v275 = vld [vmem:[%s5 + $0x4] sm:$0xf]
    %v276 = vld [vmem:[%s5 + $0x8] sm:$0xf]
    %v277 = vld [vmem:[%s5 + $0xc] sm:$0xf]
    %v278 = vld [vmem:[%s5 + $0x10] sm:$0xf]
    %v279 = vld [vmem:[%s5 + $0x14] sm:$0xf]
    %v280 = vld [vmem:[%s5 + $0x18] sm:$0xf]
    %v281 = vld [vmem:[%s5 + $0x1c] sm:$0xf]
    %v282 = vld [vmem:[%s5 + $0x20] sm:$0xf]
    %v283 = vld [vmem:[%s5 + $0x24] sm:$0xf]
    %v284 = vld [vmem:[%s5 + $0x28] sm:$0xf]
    %v285 = vld [vmem:[%s5 + $0x2c] sm:$0xf]
    %v286 = vld [vmem:[%s5 + $0x30] sm:$0xf]
    %v287 = vld [vmem:[%s5 + $0x34] sm:$0xf]
    %v288 = vld [vmem:[%s5 + $0x38] sm:$0xf]
    %v289 = vld [vmem:[%s5 + $0x3c] sm:$0xf]
    %v290 = vunpack.c.l.bf16 %v274
    %v291 = vunpack.c.l.bf16 %v275
    %v292 = vunpack.c.l.bf16 %v276
    %v293 = vunpack.c.l.bf16 %v277
    %v294 = vunpack.c.l.bf16 %v278
    %v295 = vunpack.c.l.bf16 %v279
    %v296 = vunpack.c.l.bf16 %v280
    %v297 = vunpack.c.l.bf16 %v281
    %v298 = vunpack.c.l.bf16 %v282
    %v299 = vunpack.c.l.bf16 %v283
    %v300 = vunpack.c.l.bf16 %v284
    %v301 = vunpack.c.l.bf16 %v285
    %v302 = vunpack.c.l.bf16 %v286
    %v303 = vunpack.c.l.bf16 %v287
    %v304 = vunpack.c.l.bf16 %v288
    %v305 = vunpack.c.l.bf16 %v289
    %v306 = vld [vmem:[%s6] sm:$0xf]
    %v307 = vld [vmem:[%s6 + $0x4] sm:$0xf]
    %v308 = vld [vmem:[%s6 + $0x8] sm:$0xf]
    %v309 = vld [vmem:[%s6 + $0xc] sm:$0xf]
    %v310 = vunpack.c.l.bf16 %v306
    %v311 = vunpack.c.l.bf16 %v307
    %v312 = vunpack.c.l.bf16 %v308
    %v313 = vunpack.c.l.bf16 %v309
    %v314 = vld [vmem:[%s7] sm:$0xf]
    %v315 = vld [vmem:[%s7 + $0x4] sm:$0xf]
    %v316 = vld [vmem:[%s7 + $0x8] sm:$0xf]
    %v317 = vld [vmem:[%s7 + $0xc] sm:$0xf]
    %v318 = vunpack.c.l.bf16 %v314
    %v319 = vunpack.c.l.bf16 %v315
    %v320 = vunpack.c.l.bf16 %v316
    %v321 = vunpack.c.l.bf16 %v317
    %v322 = vld [vmem:[%s8] sm:$0xf]
    %v323 = vld [vmem:[%s8 + $0x4] sm:$0xf]
    %v324 = vld [vmem:[%s8 + $0x8] sm:$0xf]
    %v325 = vld [vmem:[%s8 + $0xc] sm:$0xf]
    %v326 = vld [vmem:[%s8 + $0x10] sm:$0xf]
    %v327 = vld [vmem:[%s8 + $0x14] sm:$0xf]
    %v328 = vld [vmem:[%s8 + $0x18] sm:$0xf]
    %v329 = vld [vmem:[%s8 + $0x1c] sm:$0xf]
    %v330 = vld [vmem:[%s8 + $0x20] sm:$0xf]
    %v331 = vld [vmem:[%s8 + $0x24] sm:$0xf]
    %v332 = vld [vmem:[%s8 + $0x28] sm:$0xf]
    %v333 = vld [vmem:[%s8 + $0x2c] sm:$0xf]
    %v334 = vld [vmem:[%s8 + $0x30] sm:$0xf]
    %v335 = vld [vmem:[%s8 + $0x34] sm:$0xf]
    %v336 = vld [vmem:[%s8 + $0x38] sm:$0xf]
    %v337 = vld [vmem:[%s8 + $0x3c] sm:$0xf]
    %v338 = vunpack.c.l.bf16 %v322
    %v339 = vunpack.c.l.bf16 %v323
    %v340 = vunpack.c.l.bf16 %v324
    %v341 = vunpack.c.l.bf16 %v325
    %v342 = vunpack.c.l.bf16 %v326
    %v343 = vunpack.c.l.bf16 %v327
    %v344 = vunpack.c.l.bf16 %v328
    %v345 = vunpack.c.l.bf16 %v329
    %v346 = vunpack.c.l.bf16 %v330
    %v347 = vunpack.c.l.bf16 %v331
    %v348 = vunpack.c.l.bf16 %v332
    %v349 = vunpack.c.l.bf16 %v333
    %v350 = vunpack.c.l.bf16 %v334
    %v351 = vunpack.c.l.bf16 %v335
    %v352 = vunpack.c.l.bf16 %v336
    %v353 = vunpack.c.l.bf16 %v337
    %vm354 = vcmask 261120
    %v355 = vsel %vm354, %v263, 0.0
    %356 = vadd.xlane.f32.xlu0 %v355
    %v357 = vpop.xlane.xlu0 %356
    %v358 = vsel %vm354, %v268, 0.0
    %359 = vadd.xlane.f32.xlu0 %v358
    %v360 = vpop.xlane.xlu0 %359
    %v361 = vrcp.pop 32.0
    %v362 = vmul.f32 %v357, %v361
    %v363 = vmul.f32 %v360, %v361
    %v364 = vsub.f32 %v263, %v362
    %v365 = vsub.f32 %v268, %v363
    %v366 = vmul.f32 %v364, %v364
    %v367 = vmul.f32 %v365, %v365
    %v368 = vsel %vm354, %v366, 0.0
    %369 = vadd.xlane.f32.xlu0 %v368
    %v370 = vpop.xlane.xlu0 %369
    %v371 = vsel %vm354, %v367, 0.0
    %372 = vadd.xlane.f32.xlu0 %v371
    %v373 = vpop.xlane.xlu0 %372
    %v374 = vmul.f32 %v370, %v361
    %v375 = vmul.f32 %v373, %v361
    %v376 = vadd.f32 %v374, 1e-05
    %v377 = vadd.f32 %v375, 1e-05
    %v378 = vrsqrt.pop %v376
    %v379 = vrsqrt.pop %v377
    %v380 = vmul.f32 %v364, %v378
    %v381 = vmul.f32 %v365, %v379
    %v382 = vlaneseq
    %v383 = vshrl.u32 %v382, 7
    %v384 = vsub.s32 0, %v383
    %v385 = vrot.slane %v272, %v384
    %v386 = vmul.f32 %v380, %v385
    %v387 = vmul.f32 %v381, %v385
    %v388 = vlaneseq
    %v389 = vshrl.u32 %v388, 7
    %v390 = vsub.s32 1, %v389
    %v391 = vrot.slane %v272, %v390
    %v392 = vadd.f32 %v386, %v391
    %v393 = vadd.f32 %v387, %v391
    %v395 = vsel %vm354, %v392, 0
    %v398 = vsel %vm354, %v393, 0
    %400 = vmatprep.subr.mxu0 0.0
    %401 = vmatpush1.msra.mxu0 0.0
    %402 = vmatprep.subr.mxu0 0.0
    %403 = vmatpush1.msra.mxu0 0.0
    %404 = vmatprep.subr.mxu0 0.0
    %405 = vmatpush1.msra.mxu0 0.0
    %406 = vmatprep.subr.mxu0 0.0
    %407 = vmatpush1.msra.mxu0 0.0
    %408 = vmatprep.subr.mxu0 0.0
    %409 = vmatpush1.msra.mxu0 0.0
    %410 = vmatprep.subr.mxu0 0.0
    %411 = vmatpush1.msra.mxu0 0.0
    %412 = vmatprep.subr.mxu0 0.0
    %413 = vmatpush1.msra.mxu0 0.0
    %414 = vmatprep.subr.mxu0 0.0
    %415 = vmatpush1.msra.mxu0 0.0
    %416 = vmatprep.subr.mxu0 0.0
    %417 = vmatpush1.msra.mxu0 0.0
    %418 = vmatprep.subr.mxu0 0.0
    %419 = vmatpush1.msra.mxu0 0.0
    %420 = vmatprep.subr.mxu0 0.0
    %421 = vmatpush1.msra.mxu0 0.0
    %422 = vmatprep.subr.mxu0 0.0
    %423 = vmatpush1.msra.mxu0 0.0
    %424 = vmatprep.subr.mxu0 0.0
    %425 = vmatpush1.msra.mxu0 %v293
    %426 = vmatprep.subr.mxu0 0.0
    %427 = vmatpush1.msra.mxu0 %v292
    %428 = vmatprep.subr.mxu0 0.0
    %429 = vmatpush1.msra.mxu0 %v291
    %430 = vmatprep.subr.mxu0 0.0
    %431 = vmatpush1.msra.mxu0 %v290
    %432 = vmatprep.subr.mxu0 0.0
    %433 = vmatpush2.msra.mxu0 0.0
    %434 = vmatprep.subr.mxu0 0.0
    %435 = vmatpush2.msra.mxu0 0.0
    %436 = vmatprep.subr.mxu0 0.0
    %437 = vmatpush2.msra.mxu0 0.0
    %438 = vmatprep.subr.mxu0 0.0
    %439 = vmatpush2.msra.mxu0 0.0
    %440 = vmatprep.subr.mxu0 0.0
    %441 = vmatpush2.msra.mxu0 0.0
    %442 = vmatprep.subr.mxu0 0.0
    %443 = vmatpush2.msra.mxu0 0.0
    %444 = vmatprep.subr.mxu0 0.0
    %445 = vmatpush2.msra.mxu0 0.0
    %446 = vmatprep.subr.mxu0 0.0
    %447 = vmatpush2.msra.mxu0 0.0
    %448 = vmatprep.subr.mxu0 0.0
    %449 = vmatpush2.msra.mxu0 0.0
    %450 = vmatprep.subr.mxu0 0.0
    %451 = vmatpush2.msra.mxu0 0.0
    %452 = vmatprep.subr.mxu0 0.0
    %453 = vmatpush2.msra.mxu0 0.0
    %454 = vmatprep.subr.mxu0 0.0
    %455 = vmatpush2.msra.mxu0 0.0
    %456 = vmatprep.subr.mxu0 0.0
    %457 = vmatpush2.msra.mxu0 0.0
    %458 = vmatprep.subr.mxu0 0.0
    %459 = vmatpush2.msra.mxu0 0.0
    %460 = vmatprep.subr.mxu0 0.0
    %461 = vmatpush2.msra.mxu0 0.0
    %462 = vmatprep.subr.mxu0 0.0
    %463 = vmatpush2.msra.mxu0 0.0
    %464 = vmatprep.mubr.f32.mxu0 0.0
    %465 = vmatmul.mubr.f32.gmra.mxu0 %v395
    %v466 = vpop.f32.mrf.mxu0
    %v467 = vadd.f32 0.0, %v466
    %v468 = vpop.f32.mrf.mxu0
    %469 = vmatprep.mubr.f32.mxu0 0.0
    %470 = vmatmul.mubr.f32.gmra.mxu0 %v398
    %v471 = vpop.f32.mrf.mxu0
    %v472 = vadd.f32 0.0, %v471
    %v473 = vpop.f32.mrf.mxu0
    %474 = vdwg.mxu0
    %475 = vmatprep.subr.mxu0 0.0
    %476 = vmatpush1.msra.mxu0 0.0
    %477 = vmatprep.subr.mxu0 0.0
    %478 = vmatpush1.msra.mxu0 0.0
    %479 = vmatprep.subr.mxu0 0.0
    %480 = vmatpush1.msra.mxu0 0.0
    %481 = vmatprep.subr.mxu0 0.0
    %482 = vmatpush1.msra.mxu0 0.0
    %483 = vmatprep.subr.mxu0 0.0
    %484 = vmatpush1.msra.mxu0 0.0
    %485 = vmatprep.subr.mxu0 0.0
    %486 = vmatpush1.msra.mxu0 0.0
    %487 = vmatprep.subr.mxu0 0.0
    %488 = vmatpush1.msra.mxu0 0.0
    %489 = vmatprep.subr.mxu0 0.0
    %490 = vmatpush1.msra.mxu0 0.0
    %491 = vmatprep.subr.mxu0 0.0
    %492 = vmatpush1.msra.mxu0 0.0
    %493 = vmatprep.subr.mxu0 0.0
    %494 = vmatpush1.msra.mxu0 0.0
    %495 = vmatprep.subr.mxu0 0.0
    %496 = vmatpush1.msra.mxu0 0.0
    %497 = vmatprep.subr.mxu0 0.0
    %498 = vmatpush1.msra.mxu0 0.0
    %499 = vmatprep.subr.mxu0 0.0
    %500 = vmatpush1.msra.mxu0 %v297
    %501 = vmatprep.subr.mxu0 0.0
    %502 = vmatpush1.msra.mxu0 %v296
    %503 = vmatprep.subr.mxu0 0.0
    %504 = vmatpush1.msra.mxu0 %v295
    %505 = vmatprep.subr.mxu0 0.0
    %506 = vmatpush1.msra.mxu0 %v294
    %507 = vmatprep.subr.mxu0 0.0
    %508 = vmatpush2.msra.mxu0 0.0
    %509 = vmatprep.subr.mxu0 0.0
    %510 = vmatpush2.msra.mxu0 0.0
    %511 = vmatprep.subr.mxu0 0.0
    %512 = vmatpush2.msra.mxu0 0.0
    %513 = vmatprep.subr.mxu0 0.0
    %514 = vmatpush2.msra.mxu0 0.0
    %515 = vmatprep.subr.mxu0 0.0
    %516 = vmatpush2.msra.mxu0 0.0
    %517 = vmatprep.subr.mxu0 0.0
    %518 = vmatpush2.msra.mxu0 0.0
    %519 = vmatprep.subr.mxu0 0.0
    %520 = vmatpush2.msra.mxu0 0.0
    %521 = vmatprep.subr.mxu0 0.0
    %522 = vmatpush2.msra.mxu0 0.0
    %523 = vmatprep.subr.mxu0 0.0
    %524 = vmatpush2.msra.mxu0 0.0
    %525 = vmatprep.subr.mxu0 0.0
    %526 = vmatpush2.msra.mxu0 0.0
    %527 = vmatprep.subr.mxu0 0.0
    %528 = vmatpush2.msra.mxu0 0.0
    %529 = vmatprep.subr.mxu0 0.0
    %530 = vmatpush2.msra.mxu0 0.0
    %531 = vmatprep.subr.mxu0 0.0
    %532 = vmatpush2.msra.mxu0 0.0
    %533 = vmatprep.subr.mxu0 0.0
    %534 = vmatpush2.msra.mxu0 0.0
    %535 = vmatprep.subr.mxu0 0.0
    %536 = vmatpush2.msra.mxu0 0.0
    %537 = vmatprep.subr.mxu0 0.0
    %538 = vmatpush2.msra.mxu0 0.0
    %539 = vmatprep.mubr.f32.mxu0 0.0
    %540 = vmatmul.mubr.f32.gmra.mxu0 %v395
    %v541 = vpop.f32.mrf.mxu0
    %v542 = vadd.f32 0.0, %v541
    %v543 = vpop.f32.mrf.mxu0
    %544 = vmatprep.mubr.f32.mxu0 0.0
    %545 = vmatmul.mubr.f32.gmra.mxu0 %v398
    %v546 = vpop.f32.mrf.mxu0
    %v547 = vadd.f32 0.0, %v546
    %v548 = vpop.f32.mrf.mxu0
    %549 = vdwg.mxu0
    %550 = vmatprep.subr.mxu0 0.0
    %551 = vmatpush1.msra.mxu0 0.0
    %552 = vmatprep.subr.mxu0 0.0
    %553 = vmatpush1.msra.mxu0 0.0
    %554 = vmatprep.subr.mxu0 0.0
    %555 = vmatpush1.msra.mxu0 0.0
    %556 = vmatprep.subr.mxu0 0.0
    %557 = vmatpush1.msra.mxu0 0.0
    %558 = vmatprep.subr.mxu0 0.0
    %559 = vmatpush1.msra.mxu0 0.0
    %560 = vmatprep.subr.mxu0 0.0
    %561 = vmatpush1.msra.mxu0 0.0
    %562 = vmatprep.subr.mxu0 0.0
    %563 = vmatpush1.msra.mxu0 0.0
    %564 = vmatprep.subr.mxu0 0.0
    %565 = vmatpush1.msra.mxu0 0.0
    %566 = vmatprep.subr.mxu0 0.0
    %567 = vmatpush1.msra.mxu0 0.0
    %568 = vmatprep.subr.mxu0 0.0
    %569 = vmatpush1.msra.mxu0 0.0
    %570 = vmatprep.subr.mxu0 0.0
    %571 = vmatpush1.msra.mxu0 0.0
    %572 = vmatprep.subr.mxu0 0.0
    %573 = vmatpush1.msra.mxu0 0.0
    %574 = vmatprep.subr.mxu0 0.0
    %575 = vmatpush1.msra.mxu0 %v301
    %576 = vmatprep.subr.mxu0 0.0
    %577 = vmatpush1.msra.mxu0 %v300
    %578 = vmatprep.subr.mxu0 0.0
    %579 = vmatpush1.msra.mxu0 %v299
    %580 = vmatprep.subr.mxu0 0.0
    %581 = vmatpush1.msra.mxu0 %v298
    %582 = vmatprep.subr.mxu0 0.0
    %583 = vmatpush2.msra.mxu0 0.0
    %584 = vmatprep.subr.mxu0 0.0
    %585 = vmatpush2.msra.mxu0 0.0
    %586 = vmatprep.subr.mxu0 0.0
    %587 = vmatpush2.msra.mxu0 0.0
    %588 = vmatprep.subr.mxu0 0.0
    %589 = vmatpush2.msra.mxu0 0.0
    %590 = vmatprep.subr.mxu0 0.0
    %591 = vmatpush2.msra.mxu0 0.0
    %592 = vmatprep.subr.mxu0 0.0
    %593 = vmatpush2.msra.mxu0 0.0
    %594 = vmatprep.subr.mxu0 0.0
    %595 = vmatpush2.msra.mxu0 0.0
    %596 = vmatprep.subr.mxu0 0.0
    %597 = vmatpush2.msra.mxu0 0.0
    %598 = vmatprep.subr.mxu0 0.0
    %599 = vmatpush2.msra.mxu0 0.0
    %600 = vmatprep.subr.mxu0 0.0
    %601 = vmatpush2.msra.mxu0 0.0
    %602 = vmatprep.subr.mxu0 0.0
    %603 = vmatpush2.msra.mxu0 0.0
    %604 = vmatprep.subr.mxu0 0.0
    %605 = vmatpush2.msra.mxu0 0.0
    %606 = vmatprep.subr.mxu0 0.0
    %607 = vmatpush2.msra.mxu0 0.0
    %608 = vmatprep.subr.mxu0 0.0
    %609 = vmatpush2.msra.mxu0 0.0
    %610 = vmatprep.subr.mxu0 0.0
    %611 = vmatpush2.msra.mxu0 0.0
    %612 = vmatprep.subr.mxu0 0.0
    %613 = vmatpush2.msra.mxu0 0.0
    %614 = vmatprep.mubr.f32.mxu0 0.0
    %615 = vmatmul.mubr.f32.gmra.mxu0 %v395
    %v616 = vpop.f32.mrf.mxu0
    %v617 = vadd.f32 0.0, %v616
    %v618 = vpop.f32.mrf.mxu0
    %619 = vmatprep.mubr.f32.mxu0 0.0
    %620 = vmatmul.mubr.f32.gmra.mxu0 %v398
    %v621 = vpop.f32.mrf.mxu0
    %v622 = vadd.f32 0.0, %v621
    %v623 = vpop.f32.mrf.mxu0
    %624 = vdwg.mxu0
    %625 = vmatprep.subr.mxu0 0.0
    %626 = vmatpush1.msra.mxu0 0.0
    %627 = vmatprep.subr.mxu0 0.0
    %628 = vmatpush1.msra.mxu0 0.0
    %629 = vmatprep.subr.mxu0 0.0
    %630 = vmatpush1.msra.mxu0 0.0
    %631 = vmatprep.subr.mxu0 0.0
    %632 = vmatpush1.msra.mxu0 0.0
    %633 = vmatprep.subr.mxu0 0.0
    %634 = vmatpush1.msra.mxu0 0.0
    %635 = vmatprep.subr.mxu0 0.0
    %636 = vmatpush1.msra.mxu0 0.0
    %637 = vmatprep.subr.mxu0 0.0
    %638 = vmatpush1.msra.mxu0 0.0
    %639 = vmatprep.subr.mxu0 0.0
    %640 = vmatpush1.msra.mxu0 0.0
    %641 = vmatprep.subr.mxu0 0.0
    %642 = vmatpush1.msra.mxu0 0.0
    %643 = vmatprep.subr.mxu0 0.0
    %644 = vmatpush1.msra.mxu0 0.0
    %645 = vmatprep.subr.mxu0 0.0
    %646 = vmatpush1.msra.mxu0 0.0
    %647 = vmatprep.subr.mxu0 0.0
    %648 = vmatpush1.msra.mxu0 0.0
    %649 = vmatprep.subr.mxu0 0.0
    %650 = vmatpush1.msra.mxu0 %v305
    %651 = vmatprep.subr.mxu0 0.0
    %652 = vmatpush1.msra.mxu0 %v304
    %653 = vmatprep.subr.mxu0 0.0
    %654 = vmatpush1.msra.mxu0 %v303
    %655 = vmatprep.subr.mxu0 0.0
    %656 = vmatpush1.msra.mxu0 %v302
    %657 = vmatprep.subr.mxu0 0.0
    %658 = vmatpush2.msra.mxu0 0.0
    %659 = vmatprep.subr.mxu0 0.0
    %660 = vmatpush2.msra.mxu0 0.0
    %661 = vmatprep.subr.mxu0 0.0
    %662 = vmatpush2.msra.mxu0 0.0
    %663 = vmatprep.subr.mxu0 0.0
    %664 = vmatpush2.msra.mxu0 0.0
    %665 = vmatprep.subr.mxu0 0.0
    %666 = vmatpush2.msra.mxu0 0.0
    %667 = vmatprep.subr.mxu0 0.0
    %668 = vmatpush2.msra.mxu0 0.0
    %669 = vmatprep.subr.mxu0 0.0
    %670 = vmatpush2.msra.mxu0 0.0
    %671 = vmatprep.subr.mxu0 0.0
    %672 = vmatpush2.msra.mxu0 0.0
    %673 = vmatprep.subr.mxu0 0.0
    %674 = vmatpush2.msra.mxu0 0.0
    %675 = vmatprep.subr.mxu0 0.0
    %676 = vmatpush2.msra.mxu0 0.0
    %677 = vmatprep.subr.mxu0 0.0
    %678 = vmatpush2.msra.mxu0 0.0
    %679 = vmatprep.subr.mxu0 0.0
    %680 = vmatpush2.msra.mxu0 0.0
    %681 = vmatprep.subr.mxu0 0.0
    %682 = vmatpush2.msra.mxu0 0.0
    %683 = vmatprep.subr.mxu0 0.0
    %684 = vmatpush2.msra.mxu0 0.0
    %685 = vmatprep.subr.mxu0 0.0
    %686 = vmatpush2.msra.mxu0 0.0
    %687 = vmatprep.subr.mxu0 0.0
    %688 = vmatpush2.msra.mxu0 0.0
    %689 = vmatprep.mubr.f32.mxu0 0.0
    %690 = vmatmul.mubr.f32.gmra.mxu0 %v395
    %v691 = vpop.f32.mrf.mxu0
    %v692 = vadd.f32 0.0, %v691
    %v693 = vpop.f32.mrf.mxu0
    %694 = vmatprep.mubr.f32.mxu0 0.0
    %695 = vmatmul.mubr.f32.gmra.mxu0 %v398
    %v696 = vpop.f32.mrf.mxu0
    %v697 = vadd.f32 0.0, %v696
    %v698 = vpop.f32.mrf.mxu0
    %699 = vdwg.mxu0
    %v700 = vmul.f32 %v467, 0.35355338
    %v701 = vmul.f32 %v472, 0.35355338
    %v702 = vmul.f32 %v542, 0.35355338
    %v703 = vmul.f32 %v547, 0.35355338
    %v704 = vmul.f32 %v617, 0.35355338
    %v705 = vmul.f32 %v622, 0.35355338
    %v706 = vmul.f32 %v692, 0.35355338
    %v707 = vmul.f32 %v697, 0.35355338
    %709 = vrot.lane.b32.xlu0 %v467, 120
    %v710 = vpop.permute.xlu0 %709
    %vm711 = vcmask 64512
    %v713 = vsel %vm711, %v700, 0
    %v715 = vsel %vm711, %v710, 0
    %717 = vmatprep.subr.mxu0 0.0
    %718 = vmatpush1.xpose.msra.mxu0 0.0
    %719 = vmatprep.subr.mxu0 0.0
    %720 = vmatpush1.xpose.msra.mxu0 0.0
    %721 = vmatprep.subr.mxu0 0.0
    %722 = vmatpush1.xpose.msra.mxu0 0.0
    %723 = vmatprep.subr.mxu0 0.0
    %724 = vmatpush1.xpose.msra.mxu0 0.0
    %725 = vmatprep.subr.mxu0 0.0
    %726 = vmatpush1.xpose.msra.mxu0 0.0
    %727 = vmatprep.subr.mxu0 0.0
    %728 = vmatpush1.xpose.msra.mxu0 0.0
    %729 = vmatprep.subr.mxu0 0.0
    %730 = vmatpush1.xpose.msra.mxu0 0.0
    %731 = vmatprep.subr.mxu0 0.0
    %732 = vmatpush1.xpose.msra.mxu0 0.0
    %733 = vmatprep.subr.mxu0 0.0
    %734 = vmatpush1.xpose.msra.mxu0 0.0
    %735 = vmatprep.subr.mxu0 0.0
    %736 = vmatpush1.xpose.msra.mxu0 0.0
    %737 = vmatprep.subr.mxu0 0.0
    %738 = vmatpush1.xpose.msra.mxu0 0.0
    %739 = vmatprep.subr.mxu0 0.0
    %740 = vmatpush1.xpose.msra.mxu0 0.0
    %741 = vmatprep.subr.mxu0 0.0
    %742 = vmatpush1.xpose.msra.mxu0 0.0
    %743 = vmatprep.subr.mxu0 0.0
    %744 = vmatpush1.xpose.msra.mxu0 0.0
    %745 = vmatprep.subr.mxu0 0.0
    %746 = vmatpush1.xpose.msra.mxu0 0.0
    %747 = vmatprep.subr.mxu0 0.0
    %748 = vmatpush1.xpose.msra.mxu0 %v715
    %749 = vmatprep.subr.mxu0 0.0
    %750 = vmatpush2.xpose.msra.mxu0 0.0
    %751 = vmatprep.subr.mxu0 0.0
    %752 = vmatpush2.xpose.msra.mxu0 0.0
    %753 = vmatprep.subr.mxu0 0.0
    %754 = vmatpush2.xpose.msra.mxu0 0.0
    %755 = vmatprep.subr.mxu0 0.0
    %756 = vmatpush2.xpose.msra.mxu0 0.0
    %757 = vmatprep.subr.mxu0 0.0
    %758 = vmatpush2.xpose.msra.mxu0 0.0
    %759 = vmatprep.subr.mxu0 0.0
    %760 = vmatpush2.xpose.msra.mxu0 0.0
    %761 = vmatprep.subr.mxu0 0.0
    %762 = vmatpush2.xpose.msra.mxu0 0.0
    %763 = vmatprep.subr.mxu0 0.0
    %764 = vmatpush2.xpose.msra.mxu0 0.0
    %765 = vmatprep.subr.mxu0 0.0
    %766 = vmatpush2.xpose.msra.mxu0 0.0
    %767 = vmatprep.subr.mxu0 0.0
    %768 = vmatpush2.xpose.msra.mxu0 0.0
    %769 = vmatprep.subr.mxu0 0.0
    %770 = vmatpush2.xpose.msra.mxu0 0.0
    %771 = vmatprep.subr.mxu0 0.0
    %772 = vmatpush2.xpose.msra.mxu0 0.0
    %773 = vmatprep.subr.mxu0 0.0
    %774 = vmatpush2.xpose.msra.mxu0 0.0
    %775 = vmatprep.subr.mxu0 0.0
    %776 = vmatpush2.xpose.msra.mxu0 0.0
    %777 = vmatprep.subr.mxu0 0.0
    %778 = vmatpush2.xpose.msra.mxu0 0.0
    %779 = vmatprep.subr.mxu0 0.0
    %780 = vmatpush2.xpose.msra.mxu0 0.0
    %781 = vmatprep.mubr.f32.mxu0 0.0
    %782 = vmatmul.mubr.f32.gmra.mxu0 %v713
    %v783 = vpop.f32.mrf.mxu0
    %v784 = vadd.f32 0.0, %v783
    %v785 = vpop.f32.mrf.mxu0
    %786 = vdwg.mxu0
    %788 = vrot.lane.b32.xlu0 %v472, 120
    %v789 = vpop.permute.xlu0 %788
    %v791 = vsel %vm711, %v701, 0
    %v793 = vsel %vm711, %v789, 0
    %795 = vmatprep.subr.mxu0 0.0
    %796 = vmatpush1.xpose.msra.mxu0 0.0
    %797 = vmatprep.subr.mxu0 0.0
    %798 = vmatpush1.xpose.msra.mxu0 0.0
    %799 = vmatprep.subr.mxu0 0.0
    %800 = vmatpush1.xpose.msra.mxu0 0.0
    %801 = vmatprep.subr.mxu0 0.0
    %802 = vmatpush1.xpose.msra.mxu0 0.0
    %803 = vmatprep.subr.mxu0 0.0
    %804 = vmatpush1.xpose.msra.mxu0 0.0
    %805 = vmatprep.subr.mxu0 0.0
    %806 = vmatpush1.xpose.msra.mxu0 0.0
    %807 = vmatprep.subr.mxu0 0.0
    %808 = vmatpush1.xpose.msra.mxu0 0.0
    %809 = vmatprep.subr.mxu0 0.0
    %810 = vmatpush1.xpose.msra.mxu0 0.0
    %811 = vmatprep.subr.mxu0 0.0
    %812 = vmatpush1.xpose.msra.mxu0 0.0
    %813 = vmatprep.subr.mxu0 0.0
    %814 = vmatpush1.xpose.msra.mxu0 0.0
    %815 = vmatprep.subr.mxu0 0.0
    %816 = vmatpush1.xpose.msra.mxu0 0.0
    %817 = vmatprep.subr.mxu0 0.0
    %818 = vmatpush1.xpose.msra.mxu0 0.0
    %819 = vmatprep.subr.mxu0 0.0
    %820 = vmatpush1.xpose.msra.mxu0 0.0
    %821 = vmatprep.subr.mxu0 0.0
    %822 = vmatpush1.xpose.msra.mxu0 0.0
    %823 = vmatprep.subr.mxu0 0.0
    %824 = vmatpush1.xpose.msra.mxu0 0.0
    %825 = vmatprep.subr.mxu0 0.0
    %826 = vmatpush1.xpose.msra.mxu0 %v793
    %827 = vmatprep.subr.mxu0 0.0
    %828 = vmatpush2.xpose.msra.mxu0 0.0
    %829 = vmatprep.subr.mxu0 0.0
    %830 = vmatpush2.xpose.msra.mxu0 0.0
    %831 = vmatprep.subr.mxu0 0.0
    %832 = vmatpush2.xpose.msra.mxu0 0.0
    %833 = vmatprep.subr.mxu0 0.0
    %834 = vmatpush2.xpose.msra.mxu0 0.0
    %835 = vmatprep.subr.mxu0 0.0
    %836 = vmatpush2.xpose.msra.mxu0 0.0
    %837 = vmatprep.subr.mxu0 0.0
    %838 = vmatpush2.xpose.msra.mxu0 0.0
    %839 = vmatprep.subr.mxu0 0.0
    %840 = vmatpush2.xpose.msra.mxu0 0.0
    %841 = vmatprep.subr.mxu0 0.0
    %842 = vmatpush2.xpose.msra.mxu0 0.0
    %843 = vmatprep.subr.mxu0 0.0
    %844 = vmatpush2.xpose.msra.mxu0 0.0
    %845 = vmatprep.subr.mxu0 0.0
    %846 = vmatpush2.xpose.msra.mxu0 0.0
    %847 = vmatprep.subr.mxu0 0.0
    %848 = vmatpush2.xpose.msra.mxu0 0.0
    %849 = vmatprep.subr.mxu0 0.0
    %850 = vmatpush2.xpose.msra.mxu0 0.0
    %851 = vmatprep.subr.mxu0 0.0
    %852 = vmatpush2.xpose.msra.mxu0 0.0
    %853 = vmatprep.subr.mxu0 0.0
    %854 = vmatpush2.xpose.msra.mxu0 0.0
    %855 = vmatprep.subr.mxu0 0.0
    %856 = vmatpush2.xpose.msra.mxu0 0.0
    %857 = vmatprep.subr.mxu0 0.0
    %858 = vmatpush2.xpose.msra.mxu0 0.0
    %859 = vmatprep.mubr.f32.mxu0 0.0
    %860 = vmatmul.mubr.f32.gmra.mxu0 %v791
    %v861 = vpop.f32.mrf.mxu0
    %v862 = vadd.f32 0.0, %v861
    %v863 = vpop.f32.mrf.mxu0
    %864 = vdwg.mxu0
    %866 = vrot.lane.b32.xlu0 %v542, 120
    %v867 = vpop.permute.xlu0 %866
    %v869 = vsel %vm711, %v702, 0
    %v871 = vsel %vm711, %v867, 0
    %873 = vmatprep.subr.mxu0 0.0
    %874 = vmatpush1.xpose.msra.mxu0 0.0
    %875 = vmatprep.subr.mxu0 0.0
    %876 = vmatpush1.xpose.msra.mxu0 0.0
    %877 = vmatprep.subr.mxu0 0.0
    %878 = vmatpush1.xpose.msra.mxu0 0.0
    %879 = vmatprep.subr.mxu0 0.0
    %880 = vmatpush1.xpose.msra.mxu0 0.0
    %881 = vmatprep.subr.mxu0 0.0
    %882 = vmatpush1.xpose.msra.mxu0 0.0
    %883 = vmatprep.subr.mxu0 0.0
    %884 = vmatpush1.xpose.msra.mxu0 0.0
    %885 = vmatprep.subr.mxu0 0.0
    %886 = vmatpush1.xpose.msra.mxu0 0.0
    %887 = vmatprep.subr.mxu0 0.0
    %888 = vmatpush1.xpose.msra.mxu0 0.0
    %889 = vmatprep.subr.mxu0 0.0
    %890 = vmatpush1.xpose.msra.mxu0 0.0
    %891 = vmatprep.subr.mxu0 0.0
    %892 = vmatpush1.xpose.msra.mxu0 0.0
    %893 = vmatprep.subr.mxu0 0.0
    %894 = vmatpush1.xpose.msra.mxu0 0.0
    %895 = vmatprep.subr.mxu0 0.0
    %896 = vmatpush1.xpose.msra.mxu0 0.0
    %897 = vmatprep.subr.mxu0 0.0
    %898 = vmatpush1.xpose.msra.mxu0 0.0
    %899 = vmatprep.subr.mxu0 0.0
    %900 = vmatpush1.xpose.msra.mxu0 0.0
    %901 = vmatprep.subr.mxu0 0.0
    %902 = vmatpush1.xpose.msra.mxu0 0.0
    %903 = vmatprep.subr.mxu0 0.0
    %904 = vmatpush1.xpose.msra.mxu0 %v871
    %905 = vmatprep.subr.mxu0 0.0
    %906 = vmatpush2.xpose.msra.mxu0 0.0
    %907 = vmatprep.subr.mxu0 0.0
    %908 = vmatpush2.xpose.msra.mxu0 0.0
    %909 = vmatprep.subr.mxu0 0.0
    %910 = vmatpush2.xpose.msra.mxu0 0.0
    %911 = vmatprep.subr.mxu0 0.0
    %912 = vmatpush2.xpose.msra.mxu0 0.0
    %913 = vmatprep.subr.mxu0 0.0
    %914 = vmatpush2.xpose.msra.mxu0 0.0
    %915 = vmatprep.subr.mxu0 0.0
    %916 = vmatpush2.xpose.msra.mxu0 0.0
    %917 = vmatprep.subr.mxu0 0.0
    %918 = vmatpush2.xpose.msra.mxu0 0.0
    %919 = vmatprep.subr.mxu0 0.0
    %920 = vmatpush2.xpose.msra.mxu0 0.0
    %921 = vmatprep.subr.mxu0 0.0
    %922 = vmatpush2.xpose.msra.mxu0 0.0
    %923 = vmatprep.subr.mxu0 0.0
    %924 = vmatpush2.xpose.msra.mxu0 0.0
    %925 = vmatprep.subr.mxu0 0.0
    %926 = vmatpush2.xpose.msra.mxu0 0.0
    %927 = vmatprep.subr.mxu0 0.0
    %928 = vmatpush2.xpose.msra.mxu0 0.0
    %929 = vmatprep.subr.mxu0 0.0
    %930 = vmatpush2.xpose.msra.mxu0 0.0
    %931 = vmatprep.subr.mxu0 0.0
    %932 = vmatpush2.xpose.msra.mxu0 0.0
    %933 = vmatprep.subr.mxu0 0.0
    %934 = vmatpush2.xpose.msra.mxu0 0.0
    %935 = vmatprep.subr.mxu0 0.0
    %936 = vmatpush2.xpose.msra.mxu0 0.0
    %937 = vmatprep.mubr.f32.mxu0 0.0
    %938 = vmatmul.mubr.f32.gmra.mxu0 %v869
    %v939 = vpop.f32.mrf.mxu0
    %v940 = vadd.f32 0.0, %v939
    %v941 = vpop.f32.mrf.mxu0
    %942 = vdwg.mxu0
    %944 = vrot.lane.b32.xlu0 %v547, 120
    %v945 = vpop.permute.xlu0 %944
    %v947 = vsel %vm711, %v703, 0
    %v949 = vsel %vm711, %v945, 0
    %951 = vmatprep.subr.mxu0 0.0
    %952 = vmatpush1.xpose.msra.mxu0 0.0
    %953 = vmatprep.subr.mxu0 0.0
    %954 = vmatpush1.xpose.msra.mxu0 0.0
    %955 = vmatprep.subr.mxu0 0.0
    %956 = vmatpush1.xpose.msra.mxu0 0.0
    %957 = vmatprep.subr.mxu0 0.0
    %958 = vmatpush1.xpose.msra.mxu0 0.0
    %959 = vmatprep.subr.mxu0 0.0
    %960 = vmatpush1.xpose.msra.mxu0 0.0
    %961 = vmatprep.subr.mxu0 0.0
    %962 = vmatpush1.xpose.msra.mxu0 0.0
    %963 = vmatprep.subr.mxu0 0.0
    %964 = vmatpush1.xpose.msra.mxu0 0.0
    %965 = vmatprep.subr.mxu0 0.0
    %966 = vmatpush1.xpose.msra.mxu0 0.0
    %967 = vmatprep.subr.mxu0 0.0
    %968 = vmatpush1.xpose.msra.mxu0 0.0
    %969 = vmatprep.subr.mxu0 0.0
    %970 = vmatpush1.xpose.msra.mxu0 0.0
    %971 = vmatprep.subr.mxu0 0.0
    %972 = vmatpush1.xpose.msra.mxu0 0.0
    %973 = vmatprep.subr.mxu0 0.0
    %974 = vmatpush1.xpose.msra.mxu0 0.0
    %975 = vmatprep.subr.mxu0 0.0
    %976 = vmatpush1.xpose.msra.mxu0 0.0
    %977 = vmatprep.subr.mxu0 0.0
    %978 = vmatpush1.xpose.msra.mxu0 0.0
    %979 = vmatprep.subr.mxu0 0.0
    %980 = vmatpush1.xpose.msra.mxu0 0.0
    %981 = vmatprep.subr.mxu0 0.0
    %982 = vmatpush1.xpose.msra.mxu0 %v949
    %983 = vmatprep.subr.mxu0 0.0
    %984 = vmatpush2.xpose.msra.mxu0 0.0
    %985 = vmatprep.subr.mxu0 0.0
    %986 = vmatpush2.xpose.msra.mxu0 0.0
    %987 = vmatprep.subr.mxu0 0.0
    %988 = vmatpush2.xpose.msra.mxu0 0.0
    %989 = vmatprep.subr.mxu0 0.0
    %990 = vmatpush2.xpose.msra.mxu0 0.0
    %991 = vmatprep.subr.mxu0 0.0
    %992 = vmatpush2.xpose.msra.mxu0 0.0
    %993 = vmatprep.subr.mxu0 0.0
    %994 = vmatpush2.xpose.msra.mxu0 0.0
    %995 = vmatprep.subr.mxu0 0.0
    %996 = vmatpush2.xpose.msra.mxu0 0.0
    %997 = vmatprep.subr.mxu0 0.0
    %998 = vmatpush2.xpose.msra.mxu0 0.0
    %999 = vmatprep.subr.mxu0 0.0
    %1000 = vmatpush2.xpose.msra.mxu0 0.0
    %1001 = vmatprep.subr.mxu0 0.0
    %1002 = vmatpush2.xpose.msra.mxu0 0.0
    %1003 = vmatprep.subr.mxu0 0.0
    %1004 = vmatpush2.xpose.msra.mxu0 0.0
    %1005 = vmatprep.subr.mxu0 0.0
    %1006 = vmatpush2.xpose.msra.mxu0 0.0
    %1007 = vmatprep.subr.mxu0 0.0
    %1008 = vmatpush2.xpose.msra.mxu0 0.0
    %1009 = vmatprep.subr.mxu0 0.0
    %1010 = vmatpush2.xpose.msra.mxu0 0.0
    %1011 = vmatprep.subr.mxu0 0.0
    %1012 = vmatpush2.xpose.msra.mxu0 0.0
    %1013 = vmatprep.subr.mxu0 0.0
    %1014 = vmatpush2.xpose.msra.mxu0 0.0
    %1015 = vmatprep.mubr.f32.mxu0 0.0
    %1016 = vmatmul.mubr.f32.gmra.mxu0 %v947
    %v1017 = vpop.f32.mrf.mxu0
    %v1018 = vadd.f32 0.0, %v1017
    %v1019 = vpop.f32.mrf.mxu0
    %1020 = vdwg.mxu0
    %1022 = vrot.lane.b32.xlu0 %v617, 120
    %v1023 = vpop.permute.xlu0 %1022
    %v1025 = vsel %vm711, %v704, 0
    %v1027 = vsel %vm711, %v1023, 0
    %1029 = vmatprep.subr.mxu0 0.0
    %1030 = vmatpush1.xpose.msra.mxu0 0.0
    %1031 = vmatprep.subr.mxu0 0.0
    %1032 = vmatpush1.xpose.msra.mxu0 0.0
    %1033 = vmatprep.subr.mxu0 0.0
    %1034 = vmatpush1.xpose.msra.mxu0 0.0
    %1035 = vmatprep.subr.mxu0 0.0
    %1036 = vmatpush1.xpose.msra.mxu0 0.0
    %1037 = vmatprep.subr.mxu0 0.0
    %1038 = vmatpush1.xpose.msra.mxu0 0.0
    %1039 = vmatprep.subr.mxu0 0.0
    %1040 = vmatpush1.xpose.msra.mxu0 0.0
    %1041 = vmatprep.subr.mxu0 0.0
    %1042 = vmatpush1.xpose.msra.mxu0 0.0
    %1043 = vmatprep.subr.mxu0 0.0
    %1044 = vmatpush1.xpose.msra.mxu0 0.0
    %1045 = vmatprep.subr.mxu0 0.0
    %1046 = vmatpush1.xpose.msra.mxu0 0.0
    %1047 = vmatprep.subr.mxu0 0.0
    %1048 = vmatpush1.xpose.msra.mxu0 0.0
    %1049 = vmatprep.subr.mxu0 0.0
    %1050 = vmatpush1.xpose.msra.mxu0 0.0
    %1051 = vmatprep.subr.mxu0 0.0
    %1052 = vmatpush1.xpose.msra.mxu0 0.0
    %1053 = vmatprep.subr.mxu0 0.0
    %1054 = vmatpush1.xpose.msra.mxu0 0.0
    %1055 = vmatprep.subr.mxu0 0.0
    %1056 = vmatpush1.xpose.msra.mxu0 0.0
    %1057 = vmatprep.subr.mxu0 0.0
    %1058 = vmatpush1.xpose.msra.mxu0 0.0
    %1059 = vmatprep.subr.mxu0 0.0
    %1060 = vmatpush1.xpose.msra.mxu0 %v1027
    %1061 = vmatprep.subr.mxu0 0.0
    %1062 = vmatpush2.xpose.msra.mxu0 0.0
    %1063 = vmatprep.subr.mxu0 0.0
    %1064 = vmatpush2.xpose.msra.mxu0 0.0
    %1065 = vmatprep.subr.mxu0 0.0
    %1066 = vmatpush2.xpose.msra.mxu0 0.0
    %1067 = vmatprep.subr.mxu0 0.0
    %1068 = vmatpush2.xpose.msra.mxu0 0.0
    %1069 = vmatprep.subr.mxu0 0.0
    %1070 = vmatpush2.xpose.msra.mxu0 0.0
    %1071 = vmatprep.subr.mxu0 0.0
    %1072 = vmatpush2.xpose.msra.mxu0 0.0
    %1073 = vmatprep.subr.mxu0 0.0
    %1074 = vmatpush2.xpose.msra.mxu0 0.0
    %1075 = vmatprep.subr.mxu0 0.0
    %1076 = vmatpush2.xpose.msra.mxu0 0.0
    %1077 = vmatprep.subr.mxu0 0.0
    %1078 = vmatpush2.xpose.msra.mxu0 0.0
    %1079 = vmatprep.subr.mxu0 0.0
    %1080 = vmatpush2.xpose.msra.mxu0 0.0
    %1081 = vmatprep.subr.mxu0 0.0
    %1082 = vmatpush2.xpose.msra.mxu0 0.0
    %1083 = vmatprep.subr.mxu0 0.0
    %1084 = vmatpush2.xpose.msra.mxu0 0.0
    %1085 = vmatprep.subr.mxu0 0.0
    %1086 = vmatpush2.xpose.msra.mxu0 0.0
    %1087 = vmatprep.subr.mxu0 0.0
    %1088 = vmatpush2.xpose.msra.mxu0 0.0
    %1089 = vmatprep.subr.mxu0 0.0
    %1090 = vmatpush2.xpose.msra.mxu0 0.0
    %1091 = vmatprep.subr.mxu0 0.0
    %1092 = vmatpush2.xpose.msra.mxu0 0.0
    %1093 = vmatprep.mubr.f32.mxu0 0.0
    %1094 = vmatmul.mubr.f32.gmra.mxu0 %v1025
    %v1095 = vpop.f32.mrf.mxu0
    %v1096 = vadd.f32 0.0, %v1095
    %v1097 = vpop.f32.mrf.mxu0
    %1098 = vdwg.mxu0
    %1100 = vrot.lane.b32.xlu0 %v622, 120
    %v1101 = vpop.permute.xlu0 %1100
    %v1103 = vsel %vm711, %v705, 0
    %v1105 = vsel %vm711, %v1101, 0
    %1107 = vmatprep.subr.mxu0 0.0
    %1108 = vmatpush1.xpose.msra.mxu0 0.0
    %1109 = vmatprep.subr.mxu0 0.0
    %1110 = vmatpush1.xpose.msra.mxu0 0.0
    %1111 = vmatprep.subr.mxu0 0.0
    %1112 = vmatpush1.xpose.msra.mxu0 0.0
    %1113 = vmatprep.subr.mxu0 0.0
    %1114 = vmatpush1.xpose.msra.mxu0 0.0
    %1115 = vmatprep.subr.mxu0 0.0
    %1116 = vmatpush1.xpose.msra.mxu0 0.0
    %1117 = vmatprep.subr.mxu0 0.0
    %1118 = vmatpush1.xpose.msra.mxu0 0.0
    %1119 = vmatprep.subr.mxu0 0.0
    %1120 = vmatpush1.xpose.msra.mxu0 0.0
    %1121 = vmatprep.subr.mxu0 0.0
    %1122 = vmatpush1.xpose.msra.mxu0 0.0
    %1123 = vmatprep.subr.mxu0 0.0
    %1124 = vmatpush1.xpose.msra.mxu0 0.0
    %1125 = vmatprep.subr.mxu0 0.0
    %1126 = vmatpush1.xpose.msra.mxu0 0.0
    %1127 = vmatprep.subr.mxu0 0.0
    %1128 = vmatpush1.xpose.msra.mxu0 0.0
    %1129 = vmatprep.subr.mxu0 0.0
    %1130 = vmatpush1.xpose.msra.mxu0 0.0
    %1131 = vmatprep.subr.mxu0 0.0
    %1132 = vmatpush1.xpose.msra.mxu0 0.0
    %1133 = vmatprep.subr.mxu0 0.0
    %1134 = vmatpush1.xpose.msra.mxu0 0.0
    %1135 = vmatprep.subr.mxu0 0.0
    %1136 = vmatpush1.xpose.msra.mxu0 0.0
    %1137 = vmatprep.subr.mxu0 0.0
    %1138 = vmatpush1.xpose.msra.mxu0 %v1105
    %1139 = vmatprep.subr.mxu0 0.0
    %1140 = vmatpush2.xpose.msra.mxu0 0.0
    %1141 = vmatprep.subr.mxu0 0.0
    %1142 = vmatpush2.xpose.msra.mxu0 0.0
    %1143 = vmatprep.subr.mxu0 0.0
    %1144 = vmatpush2.xpose.msra.mxu0 0.0
    %1145 = vmatprep.subr.mxu0 0.0
    %1146 = vmatpush2.xpose.msra.mxu0 0.0
    %1147 = vmatprep.subr.mxu0 0.0
    %1148 = vmatpush2.xpose.msra.mxu0 0.0
    %1149 = vmatprep.subr.mxu0 0.0
    %1150 = vmatpush2.xpose.msra.mxu0 0.0
    %1151 = vmatprep.subr.mxu0 0.0
    %1152 = vmatpush2.xpose.msra.mxu0 0.0
    %1153 = vmatprep.subr.mxu0 0.0
    %1154 = vmatpush2.xpose.msra.mxu0 0.0
    %1155 = vmatprep.subr.mxu0 0.0
    %1156 = vmatpush2.xpose.msra.mxu0 0.0
    %1157 = vmatprep.subr.mxu0 0.0
    %1158 = vmatpush2.xpose.msra.mxu0 0.0
    %1159 = vmatprep.subr.mxu0 0.0
    %1160 = vmatpush2.xpose.msra.mxu0 0.0
    %1161 = vmatprep.subr.mxu0 0.0
    %1162 = vmatpush2.xpose.msra.mxu0 0.0
    %1163 = vmatprep.subr.mxu0 0.0
    %1164 = vmatpush2.xpose.msra.mxu0 0.0
    %1165 = vmatprep.subr.mxu0 0.0
    %1166 = vmatpush2.xpose.msra.mxu0 0.0
    %1167 = vmatprep.subr.mxu0 0.0
    %1168 = vmatpush2.xpose.msra.mxu0 0.0
    %1169 = vmatprep.subr.mxu0 0.0
    %1170 = vmatpush2.xpose.msra.mxu0 0.0
    %1171 = vmatprep.mubr.f32.mxu0 0.0
    %1172 = vmatmul.mubr.f32.gmra.mxu0 %v1103
    %v1173 = vpop.f32.mrf.mxu0
    %v1174 = vadd.f32 0.0, %v1173
    %v1175 = vpop.f32.mrf.mxu0
    %1176 = vdwg.mxu0
    %1178 = vrot.lane.b32.xlu0 %v692, 120
    %v1179 = vpop.permute.xlu0 %1178
    %v1181 = vsel %vm711, %v706, 0
    %v1183 = vsel %vm711, %v1179, 0
    %1185 = vmatprep.subr.mxu0 0.0
    %1186 = vmatpush1.xpose.msra.mxu0 0.0
    %1187 = vmatprep.subr.mxu0 0.0
    %1188 = vmatpush1.xpose.msra.mxu0 0.0
    %1189 = vmatprep.subr.mxu0 0.0
    %1190 = vmatpush1.xpose.msra.mxu0 0.0
    %1191 = vmatprep.subr.mxu0 0.0
    %1192 = vmatpush1.xpose.msra.mxu0 0.0
    %1193 = vmatprep.subr.mxu0 0.0
    %1194 = vmatpush1.xpose.msra.mxu0 0.0
    %1195 = vmatprep.subr.mxu0 0.0
    %1196 = vmatpush1.xpose.msra.mxu0 0.0
    %1197 = vmatprep.subr.mxu0 0.0
    %1198 = vmatpush1.xpose.msra.mxu0 0.0
    %1199 = vmatprep.subr.mxu0 0.0
    %1200 = vmatpush1.xpose.msra.mxu0 0.0
    %1201 = vmatprep.subr.mxu0 0.0
    %1202 = vmatpush1.xpose.msra.mxu0 0.0
    %1203 = vmatprep.subr.mxu0 0.0
    %1204 = vmatpush1.xpose.msra.mxu0 0.0
    %1205 = vmatprep.subr.mxu0 0.0
    %1206 = vmatpush1.xpose.msra.mxu0 0.0
    %1207 = vmatprep.subr.mxu0 0.0
    %1208 = vmatpush1.xpose.msra.mxu0 0.0
    %1209 = vmatprep.subr.mxu0 0.0
    %1210 = vmatpush1.xpose.msra.mxu0 0.0
    %1211 = vmatprep.subr.mxu0 0.0
    %1212 = vmatpush1.xpose.msra.mxu0 0.0
    %1213 = vmatprep.subr.mxu0 0.0
    %1214 = vmatpush1.xpose.msra.mxu0 0.0
    %1215 = vmatprep.subr.mxu0 0.0
    %1216 = vmatpush1.xpose.msra.mxu0 %v1183
    %1217 = vmatprep.subr.mxu0 0.0
    %1218 = vmatpush2.xpose.msra.mxu0 0.0
    %1219 = vmatprep.subr.mxu0 0.0
    %1220 = vmatpush2.xpose.msra.mxu0 0.0
    %1221 = vmatprep.subr.mxu0 0.0
    %1222 = vmatpush2.xpose.msra.mxu0 0.0
    %1223 = vmatprep.subr.mxu0 0.0
    %1224 = vmatpush2.xpose.msra.mxu0 0.0
    %1225 = vmatprep.subr.mxu0 0.0
    %1226 = vmatpush2.xpose.msra.mxu0 0.0
    %1227 = vmatprep.subr.mxu0 0.0
    %1228 = vmatpush2.xpose.msra.mxu0 0.0
    %1229 = vmatprep.subr.mxu0 0.0
    %1230 = vmatpush2.xpose.msra.mxu0 0.0
    %1231 = vmatprep.subr.mxu0 0.0
    %1232 = vmatpush2.xpose.msra.mxu0 0.0
    %1233 = vmatprep.subr.mxu0 0.0
    %1234 = vmatpush2.xpose.msra.mxu0 0.0
    %1235 = vmatprep.subr.mxu0 0.0
    %1236 = vmatpush2.xpose.msra.mxu0 0.0
    %1237 = vmatprep.subr.mxu0 0.0
    %1238 = vmatpush2.xpose.msra.mxu0 0.0
    %1239 = vmatprep.subr.mxu0 0.0
    %1240 = vmatpush2.xpose.msra.mxu0 0.0
    %1241 = vmatprep.subr.mxu0 0.0
    %1242 = vmatpush2.xpose.msra.mxu0 0.0
    %1243 = vmatprep.subr.mxu0 0.0
    %1244 = vmatpush2.xpose.msra.mxu0 0.0
    %1245 = vmatprep.subr.mxu0 0.0
    %1246 = vmatpush2.xpose.msra.mxu0 0.0
    %1247 = vmatprep.subr.mxu0 0.0
    %1248 = vmatpush2.xpose.msra.mxu0 0.0
    %1249 = vmatprep.mubr.f32.mxu0 0.0
    %1250 = vmatmul.mubr.f32.gmra.mxu0 %v1181
    %v1251 = vpop.f32.mrf.mxu0
    %v1252 = vadd.f32 0.0, %v1251
    %v1253 = vpop.f32.mrf.mxu0
    %1254 = vdwg.mxu0
    %1256 = vrot.lane.b32.xlu0 %v697, 120
    %v1257 = vpop.permute.xlu0 %1256
    %v1259 = vsel %vm711, %v707, 0
    %v1261 = vsel %vm711, %v1257, 0
    %1263 = vmatprep.subr.mxu0 0.0
    %1264 = vmatpush1.xpose.msra.mxu0 0.0
    %1265 = vmatprep.subr.mxu0 0.0
    %1266 = vmatpush1.xpose.msra.mxu0 0.0
    %1267 = vmatprep.subr.mxu0 0.0
    %1268 = vmatpush1.xpose.msra.mxu0 0.0
    %1269 = vmatprep.subr.mxu0 0.0
    %1270 = vmatpush1.xpose.msra.mxu0 0.0
    %1271 = vmatprep.subr.mxu0 0.0
    %1272 = vmatpush1.xpose.msra.mxu0 0.0
    %1273 = vmatprep.subr.mxu0 0.0
    %1274 = vmatpush1.xpose.msra.mxu0 0.0
    %1275 = vmatprep.subr.mxu0 0.0
    %1276 = vmatpush1.xpose.msra.mxu0 0.0
    %1277 = vmatprep.subr.mxu0 0.0
    %1278 = vmatpush1.xpose.msra.mxu0 0.0
    %1279 = vmatprep.subr.mxu0 0.0
    %1280 = vmatpush1.xpose.msra.mxu0 0.0
    %1281 = vmatprep.subr.mxu0 0.0
    %1282 = vmatpush1.xpose.msra.mxu0 0.0
    %1283 = vmatprep.subr.mxu0 0.0
    %1284 = vmatpush1.xpose.msra.mxu0 0.0
    %1285 = vmatprep.subr.mxu0 0.0
    %1286 = vmatpush1.xpose.msra.mxu0 0.0
    %1287 = vmatprep.subr.mxu0 0.0
    %1288 = vmatpush1.xpose.msra.mxu0 0.0
    %1289 = vmatprep.subr.mxu0 0.0
    %1290 = vmatpush1.xpose.msra.mxu0 0.0
    %1291 = vmatprep.subr.mxu0 0.0
    %1292 = vmatpush1.xpose.msra.mxu0 0.0
    %1293 = vmatprep.subr.mxu0 0.0
    %1294 = vmatpush1.xpose.msra.mxu0 %v1261
    %1295 = vmatprep.subr.mxu0 0.0
    %1296 = vmatpush2.xpose.msra.mxu0 0.0
    %1297 = vmatprep.subr.mxu0 0.0
    %1298 = vmatpush2.xpose.msra.mxu0 0.0
    %1299 = vmatprep.subr.mxu0 0.0
    %1300 = vmatpush2.xpose.msra.mxu0 0.0
    %1301 = vmatprep.subr.mxu0 0.0
    %1302 = vmatpush2.xpose.msra.mxu0 0.0
    %1303 = vmatprep.subr.mxu0 0.0
    %1304 = vmatpush2.xpose.msra.mxu0 0.0
    %1305 = vmatprep.subr.mxu0 0.0
    %1306 = vmatpush2.xpose.msra.mxu0 0.0
    %1307 = vmatprep.subr.mxu0 0.0
    %1308 = vmatpush2.xpose.msra.mxu0 0.0
    %1309 = vmatprep.subr.mxu0 0.0
    %1310 = vmatpush2.xpose.msra.mxu0 0.0
    %1311 = vmatprep.subr.mxu0 0.0
    %1312 = vmatpush2.xpose.msra.mxu0 0.0
    %1313 = vmatprep.subr.mxu0 0.0
    %1314 = vmatpush2.xpose.msra.mxu0 0.0
    %1315 = vmatprep.subr.mxu0 0.0
    %1316 = vmatpush2.xpose.msra.mxu0 0.0
    %1317 = vmatprep.subr.mxu0 0.0
    %1318 = vmatpush2.xpose.msra.mxu0 0.0
    %1319 = vmatprep.subr.mxu0 0.0
    %1320 = vmatpush2.xpose.msra.mxu0 0.0
    %1321 = vmatprep.subr.mxu0 0.0
    %1322 = vmatpush2.xpose.msra.mxu0 0.0
    %1323 = vmatprep.subr.mxu0 0.0
    %1324 = vmatpush2.xpose.msra.mxu0 0.0
    %1325 = vmatprep.subr.mxu0 0.0
    %1326 = vmatpush2.xpose.msra.mxu0 0.0
    %1327 = vmatprep.mubr.f32.mxu0 0.0
    %1328 = vmatmul.mubr.f32.gmra.mxu0 %v1259
    %v1329 = vpop.f32.mrf.mxu0
    %v1330 = vadd.f32 0.0, %v1329
    %v1331 = vpop.f32.mrf.mxu0
    %1332 = vdwg.mxu0
    %v1333 = vsel %vm271, 1, 0
    %vm1334 = vcmp.eq.s32.totalorder %v1333, 1
    %v1335 = vsel %vm1334, %v784, -1e+30
    %v1336 = vsel %vm1334, %v862, -1e+30
    %v1337 = vsel %vm1334, %v940, -1e+30
    %v1338 = vsel %vm1334, %v1018, -1e+30
    %v1339 = vsel %vm1334, %v1096, -1e+30
    %v1340 = vsel %vm1334, %v1174, -1e+30
    %v1341 = vsel %vm1334, %v1252, -1e+30
    %v1342 = vsel %vm1334, %v1330, -1e+30
    %v1343 = vsel %vm711, %v1335, -inf
    %1344 = vmax.xlane.f32.xlu0 %v1343
    %v1345 = vpop.xlane.xlu0 %1344
    %v1346 = vsel %vm711, %v1336, -inf
    %1347 = vmax.xlane.f32.xlu0 %v1346
    %v1348 = vpop.xlane.xlu0 %1347
    %v1349 = vsel %vm711, %v1337, -inf
    %1350 = vmax.xlane.f32.xlu0 %v1349
    %v1351 = vpop.xlane.xlu0 %1350
    %v1352 = vsel %vm711, %v1338, -inf
    %1353 = vmax.xlane.f32.xlu0 %v1352
    %v1354 = vpop.xlane.xlu0 %1353
    %v1355 = vsel %vm711, %v1339, -inf
    %1356 = vmax.xlane.f32.xlu0 %v1355
    %v1357 = vpop.xlane.xlu0 %1356
    %v1358 = vsel %vm711, %v1340, -inf
    %1359 = vmax.xlane.f32.xlu0 %v1358
    %v1360 = vpop.xlane.xlu0 %1359
    %v1361 = vsel %vm711, %v1341, -inf
    %1362 = vmax.xlane.f32.xlu0 %v1361
    %v1363 = vpop.xlane.xlu0 %1362
    %v1364 = vsel %vm711, %v1342, -inf
    %1365 = vmax.xlane.f32.xlu0 %v1364
    %v1366 = vpop.xlane.xlu0 %1365
    %v1367 = vsub.f32 %v1335, %v1345
    %v1368 = vsub.f32 %v1336, %v1348
    %v1369 = vsub.f32 %v1337, %v1351
    %v1370 = vsub.f32 %v1338, %v1354
    %v1371 = vsub.f32 %v1339, %v1357
    %v1372 = vsub.f32 %v1340, %v1360
    %v1373 = vsub.f32 %v1341, %v1363
    %v1374 = vsub.f32 %v1342, %v1366
    %v1375 = vmul.f32 %v1367, 1.442695
    %v1376 = vpow.pop %v1375
    %v1377 = vmul.f32 %v1368, 1.442695
    %v1378 = vpow.pop %v1377
    %v1379 = vmul.f32 %v1369, 1.442695
    %v1380 = vpow.pop %v1379
    %v1381 = vmul.f32 %v1370, 1.442695
    %v1382 = vpow.pop %v1381
    %v1383 = vmul.f32 %v1371, 1.442695
    %v1384 = vpow.pop %v1383
    %v1385 = vmul.f32 %v1372, 1.442695
    %v1386 = vpow.pop %v1385
    %v1387 = vmul.f32 %v1373, 1.442695
    %v1388 = vpow.pop %v1387
    %v1389 = vmul.f32 %v1374, 1.442695
    %v1390 = vpow.pop %v1389
    %v1391 = vsel %vm711, %v1376, 0.0
    %1392 = vadd.xlane.f32.xlu0 %v1391
    %v1393 = vpop.xlane.xlu0 %1392
    %v1394 = vsel %vm711, %v1378, 0.0
    %1395 = vadd.xlane.f32.xlu0 %v1394
    %v1396 = vpop.xlane.xlu0 %1395
    %v1397 = vsel %vm711, %v1380, 0.0
    %1398 = vadd.xlane.f32.xlu0 %v1397
    %v1399 = vpop.xlane.xlu0 %1398
    %v1400 = vsel %vm711, %v1382, 0.0
    %1401 = vadd.xlane.f32.xlu0 %v1400
    %v1402 = vpop.xlane.xlu0 %1401
    %v1403 = vsel %vm711, %v1384, 0.0
    %1404 = vadd.xlane.f32.xlu0 %v1403
    %v1405 = vpop.xlane.xlu0 %1404
    %v1406 = vsel %vm711, %v1386, 0.0
    %1407 = vadd.xlane.f32.xlu0 %v1406
    %v1408 = vpop.xlane.xlu0 %1407
    %v1409 = vsel %vm711, %v1388, 0.0
    %1410 = vadd.xlane.f32.xlu0 %v1409
    %v1411 = vpop.xlane.xlu0 %1410
    %v1412 = vsel %vm711, %v1390, 0.0
    %1413 = vadd.xlane.f32.xlu0 %v1412
    %v1414 = vpop.xlane.xlu0 %1413
    %v1415 = vrcp.pop %v1393
    %v1416 = vrcp.pop %v1396
    %v1417 = vrcp.pop %v1399
    %v1418 = vrcp.pop %v1402
    %v1419 = vrcp.pop %v1405
    %v1420 = vrcp.pop %v1408
    %v1421 = vrcp.pop %v1411
    %v1422 = vrcp.pop %v1414
    %v1423 = vmul.f32 %v1376, %v1415
    %v1424 = vmul.f32 %v1378, %v1416
    %v1425 = vmul.f32 %v1380, %v1417
    %v1426 = vmul.f32 %v1382, %v1418
    %v1427 = vmul.f32 %v1384, %v1419
    %v1428 = vmul.f32 %v1386, %v1420
    %v1429 = vmul.f32 %v1388, %v1421
    %v1430 = vmul.f32 %v1390, %v1422
    %1431 = vrot.lane.b32.xlu0 %v467, 112
    %v1432 = vpop.permute.xlu0 %1431
    %v1435 = vsel %vm711, %v1423, 0
    %1437 = vmatprep.subr.mxu0 0.0
    %1438 = vmatpush1.msra.mxu0 0.0
    %1439 = vmatprep.subr.mxu0 0.0
    %1440 = vmatpush1.msra.mxu0 0.0
    %1441 = vmatprep.subr.mxu0 0.0
    %1442 = vmatpush1.msra.mxu0 0.0
    %1443 = vmatprep.subr.mxu0 0.0
    %1444 = vmatpush1.msra.mxu0 0.0
    %1445 = vmatprep.subr.mxu0 0.0
    %1446 = vmatpush1.msra.mxu0 0.0
    %1447 = vmatprep.subr.mxu0 0.0
    %1448 = vmatpush1.msra.mxu0 0.0
    %1449 = vmatprep.subr.mxu0 0.0
    %1450 = vmatpush1.msra.mxu0 0.0
    %1451 = vmatprep.subr.mxu0 0.0
    %1452 = vmatpush1.msra.mxu0 0.0
    %1453 = vmatprep.subr.mxu0 0.0
    %1454 = vmatpush1.msra.mxu0 0.0
    %1455 = vmatprep.subr.mxu0 0.0
    %1456 = vmatpush1.msra.mxu0 0.0
    %1457 = vmatprep.subr.mxu0 0.0
    %1458 = vmatpush1.msra.mxu0 0.0
    %1459 = vmatprep.subr.mxu0 0.0
    %1460 = vmatpush1.msra.mxu0 0.0
    %1461 = vmatprep.subr.mxu0 0.0
    %1462 = vmatpush1.msra.mxu0 0.0
    %1463 = vmatprep.subr.mxu0 0.0
    %1464 = vmatpush1.msra.mxu0 0.0
    %1465 = vmatprep.subr.mxu0 0.0
    %1466 = vmatpush1.msra.mxu0 0.0
    %1467 = vmatprep.subr.mxu0 0.0
    %1468 = vmatpush1.msra.mxu0 %v1432
    %1469 = vmatprep.subr.mxu0 0.0
    %1470 = vmatpush2.msra.mxu0 0.0
    %1471 = vmatprep.subr.mxu0 0.0
    %1472 = vmatpush2.msra.mxu0 0.0
    %1473 = vmatprep.subr.mxu0 0.0
    %1474 = vmatpush2.msra.mxu0 0.0
    %1475 = vmatprep.subr.mxu0 0.0
    %1476 = vmatpush2.msra.mxu0 0.0
    %1477 = vmatprep.subr.mxu0 0.0
    %1478 = vmatpush2.msra.mxu0 0.0
    %1479 = vmatprep.subr.mxu0 0.0
    %1480 = vmatpush2.msra.mxu0 0.0
    %1481 = vmatprep.subr.mxu0 0.0
    %1482 = vmatpush2.msra.mxu0 0.0
    %1483 = vmatprep.subr.mxu0 0.0
    %1484 = vmatpush2.msra.mxu0 0.0
    %1485 = vmatprep.subr.mxu0 0.0
    %1486 = vmatpush2.msra.mxu0 0.0
    %1487 = vmatprep.subr.mxu0 0.0
    %1488 = vmatpush2.msra.mxu0 0.0
    %1489 = vmatprep.subr.mxu0 0.0
    %1490 = vmatpush2.msra.mxu0 0.0
    %1491 = vmatprep.subr.mxu0 0.0
    %1492 = vmatpush2.msra.mxu0 0.0
    %1493 = vmatprep.subr.mxu0 0.0
    %1494 = vmatpush2.msra.mxu0 0.0
    %1495 = vmatprep.subr.mxu0 0.0
    %1496 = vmatpush2.msra.mxu0 0.0
    %1497 = vmatprep.subr.mxu0 0.0
    %1498 = vmatpush2.msra.mxu0 0.0
    %1499 = vmatprep.subr.mxu0 0.0
    %1500 = vmatpush2.msra.mxu0 0.0
    %1501 = vmatprep.mubr.f32.mxu0 0.0
    %1502 = vmatmul.mubr.f32.gmra.mxu0 %v1435
    %v1503 = vpop.f32.mrf.mxu0
    %v1504 = vadd.f32 0.0, %v1503
    %v1505 = vpop.f32.mrf.mxu0
    %1506 = vdwg.mxu0
    %1507 = vrot.lane.b32.xlu0 %v472, 112
    %v1508 = vpop.permute.xlu0 %1507
    %v1511 = vsel %vm711, %v1424, 0
    %1513 = vmatprep.subr.mxu0 0.0
    %1514 = vmatpush1.msra.mxu0 0.0
    %1515 = vmatprep.subr.mxu0 0.0
    %1516 = vmatpush1.msra.mxu0 0.0
    %1517 = vmatprep.subr.mxu0 0.0
    %1518 = vmatpush1.msra.mxu0 0.0
    %1519 = vmatprep.subr.mxu0 0.0
    %1520 = vmatpush1.msra.mxu0 0.0
    %1521 = vmatprep.subr.mxu0 0.0
    %1522 = vmatpush1.msra.mxu0 0.0
    %1523 = vmatprep.subr.mxu0 0.0
    %1524 = vmatpush1.msra.mxu0 0.0
    %1525 = vmatprep.subr.mxu0 0.0
    %1526 = vmatpush1.msra.mxu0 0.0
    %1527 = vmatprep.subr.mxu0 0.0
    %1528 = vmatpush1.msra.mxu0 0.0
    %1529 = vmatprep.subr.mxu0 0.0
    %1530 = vmatpush1.msra.mxu0 0.0
    %1531 = vmatprep.subr.mxu0 0.0
    %1532 = vmatpush1.msra.mxu0 0.0
    %1533 = vmatprep.subr.mxu0 0.0
    %1534 = vmatpush1.msra.mxu0 0.0
    %1535 = vmatprep.subr.mxu0 0.0
    %1536 = vmatpush1.msra.mxu0 0.0
    %1537 = vmatprep.subr.mxu0 0.0
    %1538 = vmatpush1.msra.mxu0 0.0
    %1539 = vmatprep.subr.mxu0 0.0
    %1540 = vmatpush1.msra.mxu0 0.0
    %1541 = vmatprep.subr.mxu0 0.0
    %1542 = vmatpush1.msra.mxu0 0.0
    %1543 = vmatprep.subr.mxu0 0.0
    %1544 = vmatpush1.msra.mxu0 %v1508
    %1545 = vmatprep.subr.mxu0 0.0
    %1546 = vmatpush2.msra.mxu0 0.0
    %1547 = vmatprep.subr.mxu0 0.0
    %1548 = vmatpush2.msra.mxu0 0.0
    %1549 = vmatprep.subr.mxu0 0.0
    %1550 = vmatpush2.msra.mxu0 0.0
    %1551 = vmatprep.subr.mxu0 0.0
    %1552 = vmatpush2.msra.mxu0 0.0
    %1553 = vmatprep.subr.mxu0 0.0
    %1554 = vmatpush2.msra.mxu0 0.0
    %1555 = vmatprep.subr.mxu0 0.0
    %1556 = vmatpush2.msra.mxu0 0.0
    %1557 = vmatprep.subr.mxu0 0.0
    %1558 = vmatpush2.msra.mxu0 0.0
    %1559 = vmatprep.subr.mxu0 0.0
    %1560 = vmatpush2.msra.mxu0 0.0
    %1561 = vmatprep.subr.mxu0 0.0
    %1562 = vmatpush2.msra.mxu0 0.0
    %1563 = vmatprep.subr.mxu0 0.0
    %1564 = vmatpush2.msra.mxu0 0.0
    %1565 = vmatprep.subr.mxu0 0.0
    %1566 = vmatpush2.msra.mxu0 0.0
    %1567 = vmatprep.subr.mxu0 0.0
    %1568 = vmatpush2.msra.mxu0 0.0
    %1569 = vmatprep.subr.mxu0 0.0
    %1570 = vmatpush2.msra.mxu0 0.0
    %1571 = vmatprep.subr.mxu0 0.0
    %1572 = vmatpush2.msra.mxu0 0.0
    %1573 = vmatprep.subr.mxu0 0.0
    %1574 = vmatpush2.msra.mxu0 0.0
    %1575 = vmatprep.subr.mxu0 0.0
    %1576 = vmatpush2.msra.mxu0 0.0
    %1577 = vmatprep.mubr.f32.mxu0 0.0
    %1578 = vmatmul.mubr.f32.gmra.mxu0 %v1511
    %v1579 = vpop.f32.mrf.mxu0
    %v1580 = vadd.f32 0.0, %v1579
    %v1581 = vpop.f32.mrf.mxu0
    %1582 = vdwg.mxu0
    %1583 = vrot.lane.b32.xlu0 %v542, 112
    %v1584 = vpop.permute.xlu0 %1583
    %v1587 = vsel %vm711, %v1425, 0
    %1589 = vmatprep.subr.mxu0 0.0
    %1590 = vmatpush1.msra.mxu0 0.0
    %1591 = vmatprep.subr.mxu0 0.0
    %1592 = vmatpush1.msra.mxu0 0.0
    %1593 = vmatprep.subr.mxu0 0.0
    %1594 = vmatpush1.msra.mxu0 0.0
    %1595 = vmatprep.subr.mxu0 0.0
    %1596 = vmatpush1.msra.mxu0 0.0
    %1597 = vmatprep.subr.mxu0 0.0
    %1598 = vmatpush1.msra.mxu0 0.0
    %1599 = vmatprep.subr.mxu0 0.0
    %1600 = vmatpush1.msra.mxu0 0.0
    %1601 = vmatprep.subr.mxu0 0.0
    %1602 = vmatpush1.msra.mxu0 0.0
    %1603 = vmatprep.subr.mxu0 0.0
    %1604 = vmatpush1.msra.mxu0 0.0
    %1605 = vmatprep.subr.mxu0 0.0
    %1606 = vmatpush1.msra.mxu0 0.0
    %1607 = vmatprep.subr.mxu0 0.0
    %1608 = vmatpush1.msra.mxu0 0.0
    %1609 = vmatprep.subr.mxu0 0.0
    %1610 = vmatpush1.msra.mxu0 0.0
    %1611 = vmatprep.subr.mxu0 0.0
    %1612 = vmatpush1.msra.mxu0 0.0
    %1613 = vmatprep.subr.mxu0 0.0
    %1614 = vmatpush1.msra.mxu0 0.0
    %1615 = vmatprep.subr.mxu0 0.0
    %1616 = vmatpush1.msra.mxu0 0.0
    %1617 = vmatprep.subr.mxu0 0.0
    %1618 = vmatpush1.msra.mxu0 0.0
    %1619 = vmatprep.subr.mxu0 0.0
    %1620 = vmatpush1.msra.mxu0 %v1584
    %1621 = vmatprep.subr.mxu0 0.0
    %1622 = vmatpush2.msra.mxu0 0.0
    %1623 = vmatprep.subr.mxu0 0.0
    %1624 = vmatpush2.msra.mxu0 0.0
    %1625 = vmatprep.subr.mxu0 0.0
    %1626 = vmatpush2.msra.mxu0 0.0
    %1627 = vmatprep.subr.mxu0 0.0
    %1628 = vmatpush2.msra.mxu0 0.0
    %1629 = vmatprep.subr.mxu0 0.0
    %1630 = vmatpush2.msra.mxu0 0.0
    %1631 = vmatprep.subr.mxu0 0.0
    %1632 = vmatpush2.msra.mxu0 0.0
    %1633 = vmatprep.subr.mxu0 0.0
    %1634 = vmatpush2.msra.mxu0 0.0
    %1635 = vmatprep.subr.mxu0 0.0
    %1636 = vmatpush2.msra.mxu0 0.0
    %1637 = vmatprep.subr.mxu0 0.0
    %1638 = vmatpush2.msra.mxu0 0.0
    %1639 = vmatprep.subr.mxu0 0.0
    %1640 = vmatpush2.msra.mxu0 0.0
    %1641 = vmatprep.subr.mxu0 0.0
    %1642 = vmatpush2.msra.mxu0 0.0
    %1643 = vmatprep.subr.mxu0 0.0
    %1644 = vmatpush2.msra.mxu0 0.0
    %1645 = vmatprep.subr.mxu0 0.0
    %1646 = vmatpush2.msra.mxu0 0.0
    %1647 = vmatprep.subr.mxu0 0.0
    %1648 = vmatpush2.msra.mxu0 0.0
    %1649 = vmatprep.subr.mxu0 0.0
    %1650 = vmatpush2.msra.mxu0 0.0
    %1651 = vmatprep.subr.mxu0 0.0
    %1652 = vmatpush2.msra.mxu0 0.0
    %1653 = vmatprep.mubr.f32.mxu0 0.0
    %1654 = vmatmul.mubr.f32.gmra.mxu0 %v1587
    %v1655 = vpop.f32.mrf.mxu0
    %v1656 = vadd.f32 0.0, %v1655
    %v1657 = vpop.f32.mrf.mxu0
    %1658 = vdwg.mxu0
    %1659 = vrot.lane.b32.xlu0 %v547, 112
    %v1660 = vpop.permute.xlu0 %1659
    %v1663 = vsel %vm711, %v1426, 0
    %1665 = vmatprep.subr.mxu0 0.0
    %1666 = vmatpush1.msra.mxu0 0.0
    %1667 = vmatprep.subr.mxu0 0.0
    %1668 = vmatpush1.msra.mxu0 0.0
    %1669 = vmatprep.subr.mxu0 0.0
    %1670 = vmatpush1.msra.mxu0 0.0
    %1671 = vmatprep.subr.mxu0 0.0
    %1672 = vmatpush1.msra.mxu0 0.0
    %1673 = vmatprep.subr.mxu0 0.0
    %1674 = vmatpush1.msra.mxu0 0.0
    %1675 = vmatprep.subr.mxu0 0.0
    %1676 = vmatpush1.msra.mxu0 0.0
    %1677 = vmatprep.subr.mxu0 0.0
    %1678 = vmatpush1.msra.mxu0 0.0
    %1679 = vmatprep.subr.mxu0 0.0
    %1680 = vmatpush1.msra.mxu0 0.0
    %1681 = vmatprep.subr.mxu0 0.0
    %1682 = vmatpush1.msra.mxu0 0.0
    %1683 = vmatprep.subr.mxu0 0.0
    %1684 = vmatpush1.msra.mxu0 0.0
    %1685 = vmatprep.subr.mxu0 0.0
    %1686 = vmatpush1.msra.mxu0 0.0
    %1687 = vmatprep.subr.mxu0 0.0
    %1688 = vmatpush1.msra.mxu0 0.0
    %1689 = vmatprep.subr.mxu0 0.0
    %1690 = vmatpush1.msra.mxu0 0.0
    %1691 = vmatprep.subr.mxu0 0.0
    %1692 = vmatpush1.msra.mxu0 0.0
    %1693 = vmatprep.subr.mxu0 0.0
    %1694 = vmatpush1.msra.mxu0 0.0
    %1695 = vmatprep.subr.mxu0 0.0
    %1696 = vmatpush1.msra.mxu0 %v1660
    %1697 = vmatprep.subr.mxu0 0.0
    %1698 = vmatpush2.msra.mxu0 0.0
    %1699 = vmatprep.subr.mxu0 0.0
    %1700 = vmatpush2.msra.mxu0 0.0
    %1701 = vmatprep.subr.mxu0 0.0
    %1702 = vmatpush2.msra.mxu0 0.0
    %1703 = vmatprep.subr.mxu0 0.0
    %1704 = vmatpush2.msra.mxu0 0.0
    %1705 = vmatprep.subr.mxu0 0.0
    %1706 = vmatpush2.msra.mxu0 0.0
    %1707 = vmatprep.subr.mxu0 0.0
    %1708 = vmatpush2.msra.mxu0 0.0
    %1709 = vmatprep.subr.mxu0 0.0
    %1710 = vmatpush2.msra.mxu0 0.0
    %1711 = vmatprep.subr.mxu0 0.0
    %1712 = vmatpush2.msra.mxu0 0.0
    %1713 = vmatprep.subr.mxu0 0.0
    %1714 = vmatpush2.msra.mxu0 0.0
    %1715 = vmatprep.subr.mxu0 0.0
    %1716 = vmatpush2.msra.mxu0 0.0
    %1717 = vmatprep.subr.mxu0 0.0
    %1718 = vmatpush2.msra.mxu0 0.0
    %1719 = vmatprep.subr.mxu0 0.0
    %1720 = vmatpush2.msra.mxu0 0.0
    %1721 = vmatprep.subr.mxu0 0.0
    %1722 = vmatpush2.msra.mxu0 0.0
    %1723 = vmatprep.subr.mxu0 0.0
    %1724 = vmatpush2.msra.mxu0 0.0
    %1725 = vmatprep.subr.mxu0 0.0
    %1726 = vmatpush2.msra.mxu0 0.0
    %1727 = vmatprep.subr.mxu0 0.0
    %1728 = vmatpush2.msra.mxu0 0.0
    %1729 = vmatprep.mubr.f32.mxu0 0.0
    %1730 = vmatmul.mubr.f32.gmra.mxu0 %v1663
    %v1731 = vpop.f32.mrf.mxu0
    %v1732 = vadd.f32 0.0, %v1731
    %v1733 = vpop.f32.mrf.mxu0
    %1734 = vdwg.mxu0
    %1735 = vrot.lane.b32.xlu0 %v617, 112
    %v1736 = vpop.permute.xlu0 %1735
    %v1739 = vsel %vm711, %v1427, 0
    %1741 = vmatprep.subr.mxu0 0.0
    %1742 = vmatpush1.msra.mxu0 0.0
    %1743 = vmatprep.subr.mxu0 0.0
    %1744 = vmatpush1.msra.mxu0 0.0
    %1745 = vmatprep.subr.mxu0 0.0
    %1746 = vmatpush1.msra.mxu0 0.0
    %1747 = vmatprep.subr.mxu0 0.0
    %1748 = vmatpush1.msra.mxu0 0.0
    %1749 = vmatprep.subr.mxu0 0.0
    %1750 = vmatpush1.msra.mxu0 0.0
    %1751 = vmatprep.subr.mxu0 0.0
    %1752 = vmatpush1.msra.mxu0 0.0
    %1753 = vmatprep.subr.mxu0 0.0
    %1754 = vmatpush1.msra.mxu0 0.0
    %1755 = vmatprep.subr.mxu0 0.0
    %1756 = vmatpush1.msra.mxu0 0.0
    %1757 = vmatprep.subr.mxu0 0.0
    %1758 = vmatpush1.msra.mxu0 0.0
    %1759 = vmatprep.subr.mxu0 0.0
    %1760 = vmatpush1.msra.mxu0 0.0
    %1761 = vmatprep.subr.mxu0 0.0
    %1762 = vmatpush1.msra.mxu0 0.0
    %1763 = vmatprep.subr.mxu0 0.0
    %1764 = vmatpush1.msra.mxu0 0.0
    %1765 = vmatprep.subr.mxu0 0.0
    %1766 = vmatpush1.msra.mxu0 0.0
    %1767 = vmatprep.subr.mxu0 0.0
    %1768 = vmatpush1.msra.mxu0 0.0
    %1769 = vmatprep.subr.mxu0 0.0
    %1770 = vmatpush1.msra.mxu0 0.0
    %1771 = vmatprep.subr.mxu0 0.0
    %1772 = vmatpush1.msra.mxu0 %v1736
    %1773 = vmatprep.subr.mxu0 0.0
    %1774 = vmatpush2.msra.mxu0 0.0
    %1775 = vmatprep.subr.mxu0 0.0
    %1776 = vmatpush2.msra.mxu0 0.0
    %1777 = vmatprep.subr.mxu0 0.0
    %1778 = vmatpush2.msra.mxu0 0.0
    %1779 = vmatprep.subr.mxu0 0.0
    %1780 = vmatpush2.msra.mxu0 0.0
    %1781 = vmatprep.subr.mxu0 0.0
    %1782 = vmatpush2.msra.mxu0 0.0
    %1783 = vmatprep.subr.mxu0 0.0
    %1784 = vmatpush2.msra.mxu0 0.0
    %1785 = vmatprep.subr.mxu0 0.0
    %1786 = vmatpush2.msra.mxu0 0.0
    %1787 = vmatprep.subr.mxu0 0.0
    %1788 = vmatpush2.msra.mxu0 0.0
    %1789 = vmatprep.subr.mxu0 0.0
    %1790 = vmatpush2.msra.mxu0 0.0
    %1791 = vmatprep.subr.mxu0 0.0
    %1792 = vmatpush2.msra.mxu0 0.0
    %1793 = vmatprep.subr.mxu0 0.0
    %1794 = vmatpush2.msra.mxu0 0.0
    %1795 = vmatprep.subr.mxu0 0.0
    %1796 = vmatpush2.msra.mxu0 0.0
    %1797 = vmatprep.subr.mxu0 0.0
    %1798 = vmatpush2.msra.mxu0 0.0
    %1799 = vmatprep.subr.mxu0 0.0
    %1800 = vmatpush2.msra.mxu0 0.0
    %1801 = vmatprep.subr.mxu0 0.0
    %1802 = vmatpush2.msra.mxu0 0.0
    %1803 = vmatprep.subr.mxu0 0.0
    %1804 = vmatpush2.msra.mxu0 0.0
    %1805 = vmatprep.mubr.f32.mxu0 0.0
    %1806 = vmatmul.mubr.f32.gmra.mxu0 %v1739
    %v1807 = vpop.f32.mrf.mxu0
    %v1808 = vadd.f32 0.0, %v1807
    %v1809 = vpop.f32.mrf.mxu0
    %1810 = vdwg.mxu0
    %1811 = vrot.lane.b32.xlu0 %v622, 112
    %v1812 = vpop.permute.xlu0 %1811
    %v1815 = vsel %vm711, %v1428, 0
    %1817 = vmatprep.subr.mxu0 0.0
    %1818 = vmatpush1.msra.mxu0 0.0
    %1819 = vmatprep.subr.mxu0 0.0
    %1820 = vmatpush1.msra.mxu0 0.0
    %1821 = vmatprep.subr.mxu0 0.0
    %1822 = vmatpush1.msra.mxu0 0.0
    %1823 = vmatprep.subr.mxu0 0.0
    %1824 = vmatpush1.msra.mxu0 0.0
    %1825 = vmatprep.subr.mxu0 0.0
    %1826 = vmatpush1.msra.mxu0 0.0
    %1827 = vmatprep.subr.mxu0 0.0
    %1828 = vmatpush1.msra.mxu0 0.0
    %1829 = vmatprep.subr.mxu0 0.0
    %1830 = vmatpush1.msra.mxu0 0.0
    %1831 = vmatprep.subr.mxu0 0.0
    %1832 = vmatpush1.msra.mxu0 0.0
    %1833 = vmatprep.subr.mxu0 0.0
    %1834 = vmatpush1.msra.mxu0 0.0
    %1835 = vmatprep.subr.mxu0 0.0
    %1836 = vmatpush1.msra.mxu0 0.0
    %1837 = vmatprep.subr.mxu0 0.0
    %1838 = vmatpush1.msra.mxu0 0.0
    %1839 = vmatprep.subr.mxu0 0.0
    %1840 = vmatpush1.msra.mxu0 0.0
    %1841 = vmatprep.subr.mxu0 0.0
    %1842 = vmatpush1.msra.mxu0 0.0
    %1843 = vmatprep.subr.mxu0 0.0
    %1844 = vmatpush1.msra.mxu0 0.0
    %1845 = vmatprep.subr.mxu0 0.0
    %1846 = vmatpush1.msra.mxu0 0.0
    %1847 = vmatprep.subr.mxu0 0.0
    %1848 = vmatpush1.msra.mxu0 %v1812
    %1849 = vmatprep.subr.mxu0 0.0
    %1850 = vmatpush2.msra.mxu0 0.0
    %1851 = vmatprep.subr.mxu0 0.0
    %1852 = vmatpush2.msra.mxu0 0.0
    %1853 = vmatprep.subr.mxu0 0.0
    %1854 = vmatpush2.msra.mxu0 0.0
    %1855 = vmatprep.subr.mxu0 0.0
    %1856 = vmatpush2.msra.mxu0 0.0
    %1857 = vmatprep.subr.mxu0 0.0
    %1858 = vmatpush2.msra.mxu0 0.0
    %1859 = vmatprep.subr.mxu0 0.0
    %1860 = vmatpush2.msra.mxu0 0.0
    %1861 = vmatprep.subr.mxu0 0.0
    %1862 = vmatpush2.msra.mxu0 0.0
    %1863 = vmatprep.subr.mxu0 0.0
    %1864 = vmatpush2.msra.mxu0 0.0
    %1865 = vmatprep.subr.mxu0 0.0
    %1866 = vmatpush2.msra.mxu0 0.0
    %1867 = vmatprep.subr.mxu0 0.0
    %1868 = vmatpush2.msra.mxu0 0.0
    %1869 = vmatprep.subr.mxu0 0.0
    %1870 = vmatpush2.msra.mxu0 0.0
    %1871 = vmatprep.subr.mxu0 0.0
    %1872 = vmatpush2.msra.mxu0 0.0
    %1873 = vmatprep.subr.mxu0 0.0
    %1874 = vmatpush2.msra.mxu0 0.0
    %1875 = vmatprep.subr.mxu0 0.0
    %1876 = vmatpush2.msra.mxu0 0.0
    %1877 = vmatprep.subr.mxu0 0.0
    %1878 = vmatpush2.msra.mxu0 0.0
    %1879 = vmatprep.subr.mxu0 0.0
    %1880 = vmatpush2.msra.mxu0 0.0
    %1881 = vmatprep.mubr.f32.mxu0 0.0
    %1882 = vmatmul.mubr.f32.gmra.mxu0 %v1815
    %v1883 = vpop.f32.mrf.mxu0
    %v1884 = vadd.f32 0.0, %v1883
    %v1885 = vpop.f32.mrf.mxu0
    %1886 = vdwg.mxu0
    %1887 = vrot.lane.b32.xlu0 %v692, 112
    %v1888 = vpop.permute.xlu0 %1887
    %v1891 = vsel %vm711, %v1429, 0
    %1893 = vmatprep.subr.mxu0 0.0
    %1894 = vmatpush1.msra.mxu0 0.0
    %1895 = vmatprep.subr.mxu0 0.0
    %1896 = vmatpush1.msra.mxu0 0.0
    %1897 = vmatprep.subr.mxu0 0.0
    %1898 = vmatpush1.msra.mxu0 0.0
    %1899 = vmatprep.subr.mxu0 0.0
    %1900 = vmatpush1.msra.mxu0 0.0
    %1901 = vmatprep.subr.mxu0 0.0
    %1902 = vmatpush1.msra.mxu0 0.0
    %1903 = vmatprep.subr.mxu0 0.0
    %1904 = vmatpush1.msra.mxu0 0.0
    %1905 = vmatprep.subr.mxu0 0.0
    %1906 = vmatpush1.msra.mxu0 0.0
    %1907 = vmatprep.subr.mxu0 0.0
    %1908 = vmatpush1.msra.mxu0 0.0
    %1909 = vmatprep.subr.mxu0 0.0
    %1910 = vmatpush1.msra.mxu0 0.0
    %1911 = vmatprep.subr.mxu0 0.0
    %1912 = vmatpush1.msra.mxu0 0.0
    %1913 = vmatprep.subr.mxu0 0.0
    %1914 = vmatpush1.msra.mxu0 0.0
    %1915 = vmatprep.subr.mxu0 0.0
    %1916 = vmatpush1.msra.mxu0 0.0
    %1917 = vmatprep.subr.mxu0 0.0
    %1918 = vmatpush1.msra.mxu0 0.0
    %1919 = vmatprep.subr.mxu0 0.0
    %1920 = vmatpush1.msra.mxu0 0.0
    %1921 = vmatprep.subr.mxu0 0.0
    %1922 = vmatpush1.msra.mxu0 0.0
    %1923 = vmatprep.subr.mxu0 0.0
    %1924 = vmatpush1.msra.mxu0 %v1888
    %1925 = vmatprep.subr.mxu0 0.0
    %1926 = vmatpush2.msra.mxu0 0.0
    %1927 = vmatprep.subr.mxu0 0.0
    %1928 = vmatpush2.msra.mxu0 0.0
    %1929 = vmatprep.subr.mxu0 0.0
    %1930 = vmatpush2.msra.mxu0 0.0
    %1931 = vmatprep.subr.mxu0 0.0
    %1932 = vmatpush2.msra.mxu0 0.0
    %1933 = vmatprep.subr.mxu0 0.0
    %1934 = vmatpush2.msra.mxu0 0.0
    %1935 = vmatprep.subr.mxu0 0.0
    %1936 = vmatpush2.msra.mxu0 0.0
    %1937 = vmatprep.subr.mxu0 0.0
    %1938 = vmatpush2.msra.mxu0 0.0
    %1939 = vmatprep.subr.mxu0 0.0
    %1940 = vmatpush2.msra.mxu0 0.0
    %1941 = vmatprep.subr.mxu0 0.0
    %1942 = vmatpush2.msra.mxu0 0.0
    %1943 = vmatprep.subr.mxu0 0.0
    %1944 = vmatpush2.msra.mxu0 0.0
    %1945 = vmatprep.subr.mxu0 0.0
    %1946 = vmatpush2.msra.mxu0 0.0
    %1947 = vmatprep.subr.mxu0 0.0
    %1948 = vmatpush2.msra.mxu0 0.0
    %1949 = vmatprep.subr.mxu0 0.0
    %1950 = vmatpush2.msra.mxu0 0.0
    %1951 = vmatprep.subr.mxu0 0.0
    %1952 = vmatpush2.msra.mxu0 0.0
    %1953 = vmatprep.subr.mxu0 0.0
    %1954 = vmatpush2.msra.mxu0 0.0
    %1955 = vmatprep.subr.mxu0 0.0
    %1956 = vmatpush2.msra.mxu0 0.0
    %1957 = vmatprep.mubr.f32.mxu0 0.0
    %1958 = vmatmul.mubr.f32.gmra.mxu0 %v1891
    %v1959 = vpop.f32.mrf.mxu0
    %v1960 = vadd.f32 0.0, %v1959
    %v1961 = vpop.f32.mrf.mxu0
    %1962 = vdwg.mxu0
    %1963 = vrot.lane.b32.xlu0 %v697, 112
    %v1964 = vpop.permute.xlu0 %1963
    %v1967 = vsel %vm711, %v1430, 0
    %1969 = vmatprep.subr.mxu0 0.0
    %1970 = vmatpush1.msra.mxu0 0.0
    %1971 = vmatprep.subr.mxu0 0.0
    %1972 = vmatpush1.msra.mxu0 0.0
    %1973 = vmatprep.subr.mxu0 0.0
    %1974 = vmatpush1.msra.mxu0 0.0
    %1975 = vmatprep.subr.mxu0 0.0
    %1976 = vmatpush1.msra.mxu0 0.0
    %1977 = vmatprep.subr.mxu0 0.0
    %1978 = vmatpush1.msra.mxu0 0.0
    %1979 = vmatprep.subr.mxu0 0.0
    %1980 = vmatpush1.msra.mxu0 0.0
    %1981 = vmatprep.subr.mxu0 0.0
    %1982 = vmatpush1.msra.mxu0 0.0
    %1983 = vmatprep.subr.mxu0 0.0
    %1984 = vmatpush1.msra.mxu0 0.0
    %1985 = vmatprep.subr.mxu0 0.0
    %1986 = vmatpush1.msra.mxu0 0.0
    %1987 = vmatprep.subr.mxu0 0.0
    %1988 = vmatpush1.msra.mxu0 0.0
    %1989 = vmatprep.subr.mxu0 0.0
    %1990 = vmatpush1.msra.mxu0 0.0
    %1991 = vmatprep.subr.mxu0 0.0
    %1992 = vmatpush1.msra.mxu0 0.0
    %1993 = vmatprep.subr.mxu0 0.0
    %1994 = vmatpush1.msra.mxu0 0.0
    %1995 = vmatprep.subr.mxu0 0.0
    %1996 = vmatpush1.msra.mxu0 0.0
    %1997 = vmatprep.subr.mxu0 0.0
    %1998 = vmatpush1.msra.mxu0 0.0
    %1999 = vmatprep.subr.mxu0 0.0
    %2000 = vmatpush1.msra.mxu0 %v1964
    %2001 = vmatprep.subr.mxu0 0.0
    %2002 = vmatpush2.msra.mxu0 0.0
    %2003 = vmatprep.subr.mxu0 0.0
    %2004 = vmatpush2.msra.mxu0 0.0
    %2005 = vmatprep.subr.mxu0 0.0
    %2006 = vmatpush2.msra.mxu0 0.0
    %2007 = vmatprep.subr.mxu0 0.0
    %2008 = vmatpush2.msra.mxu0 0.0
    %2009 = vmatprep.subr.mxu0 0.0
    %2010 = vmatpush2.msra.mxu0 0.0
    %2011 = vmatprep.subr.mxu0 0.0
    %2012 = vmatpush2.msra.mxu0 0.0
    %2013 = vmatprep.subr.mxu0 0.0
    %2014 = vmatpush2.msra.mxu0 0.0
    %2015 = vmatprep.subr.mxu0 0.0
    %2016 = vmatpush2.msra.mxu0 0.0
    %2017 = vmatprep.subr.mxu0 0.0
    %2018 = vmatpush2.msra.mxu0 0.0
    %2019 = vmatprep.subr.mxu0 0.0
    %2020 = vmatpush2.msra.mxu0 0.0
    %2021 = vmatprep.subr.mxu0 0.0
    %2022 = vmatpush2.msra.mxu0 0.0
    %2023 = vmatprep.subr.mxu0 0.0
    %2024 = vmatpush2.msra.mxu0 0.0
    %2025 = vmatprep.subr.mxu0 0.0
    %2026 = vmatpush2.msra.mxu0 0.0
    %2027 = vmatprep.subr.mxu0 0.0
    %2028 = vmatpush2.msra.mxu0 0.0
    %2029 = vmatprep.subr.mxu0 0.0
    %2030 = vmatpush2.msra.mxu0 0.0
    %2031 = vmatprep.subr.mxu0 0.0
    %2032 = vmatpush2.msra.mxu0 0.0
    %2033 = vmatprep.mubr.f32.mxu0 0.0
    %2034 = vmatmul.mubr.f32.gmra.mxu0 %v1967
    %v2035 = vpop.f32.mrf.mxu0
    %v2036 = vadd.f32 0.0, %v2035
    %v2037 = vpop.f32.mrf.mxu0
    %2038 = vdwg.mxu0
    %v2040 = vsel %vm711, %v1504, 0
    %v2043 = vsel %vm711, %v1580, 0
    %2045 = vmatprep.subr.mxu0 0.0
    %2046 = vmatpush1.msra.mxu0 0.0
    %2047 = vmatprep.subr.mxu0 0.0
    %2048 = vmatpush1.msra.mxu0 0.0
    %2049 = vmatprep.subr.mxu0 0.0
    %2050 = vmatpush1.msra.mxu0 0.0
    %2051 = vmatprep.subr.mxu0 0.0
    %2052 = vmatpush1.msra.mxu0 0.0
    %2053 = vmatprep.subr.mxu0 0.0
    %2054 = vmatpush1.msra.mxu0 0.0
    %2055 = vmatprep.subr.mxu0 0.0
    %2056 = vmatpush1.msra.mxu0 0.0
    %2057 = vmatprep.subr.mxu0 0.0
    %2058 = vmatpush1.msra.mxu0 0.0
    %2059 = vmatprep.subr.mxu0 0.0
    %2060 = vmatpush1.msra.mxu0 0.0
    %2061 = vmatprep.subr.mxu0 0.0
    %2062 = vmatpush1.msra.mxu0 0.0
    %2063 = vmatprep.subr.mxu0 0.0
    %2064 = vmatpush1.msra.mxu0 0.0
    %2065 = vmatprep.subr.mxu0 0.0
    %2066 = vmatpush1.msra.mxu0 0.0
    %2067 = vmatprep.subr.mxu0 0.0
    %2068 = vmatpush1.msra.mxu0 0.0
    %2069 = vmatprep.subr.mxu0 0.0
    %2070 = vmatpush1.msra.mxu0 0.0
    %2071 = vmatprep.subr.mxu0 0.0
    %2072 = vmatpush1.msra.mxu0 0.0
    %2073 = vmatprep.subr.mxu0 0.0
    %2074 = vmatpush1.msra.mxu0 0.0
    %2075 = vmatprep.subr.mxu0 0.0
    %2076 = vmatpush1.msra.mxu0 %v310
    %2077 = vmatprep.subr.mxu0 0.0
    %2078 = vmatpush2.msra.mxu0 0.0
    %2079 = vmatprep.subr.mxu0 0.0
    %2080 = vmatpush2.msra.mxu0 0.0
    %2081 = vmatprep.subr.mxu0 0.0
    %2082 = vmatpush2.msra.mxu0 0.0
    %2083 = vmatprep.subr.mxu0 0.0
    %2084 = vmatpush2.msra.mxu0 0.0
    %2085 = vmatprep.subr.mxu0 0.0
    %2086 = vmatpush2.msra.mxu0 0.0
    %2087 = vmatprep.subr.mxu0 0.0
    %2088 = vmatpush2.msra.mxu0 0.0
    %2089 = vmatprep.subr.mxu0 0.0
    %2090 = vmatpush2.msra.mxu0 0.0
    %2091 = vmatprep.subr.mxu0 0.0
    %2092 = vmatpush2.msra.mxu0 0.0
    %2093 = vmatprep.subr.mxu0 0.0
    %2094 = vmatpush2.msra.mxu0 0.0
    %2095 = vmatprep.subr.mxu0 0.0
    %2096 = vmatpush2.msra.mxu0 0.0
    %2097 = vmatprep.subr.mxu0 0.0
    %2098 = vmatpush2.msra.mxu0 0.0
    %2099 = vmatprep.subr.mxu0 0.0
    %2100 = vmatpush2.msra.mxu0 0.0
    %2101 = vmatprep.subr.mxu0 0.0
    %2102 = vmatpush2.msra.mxu0 0.0
    %2103 = vmatprep.subr.mxu0 0.0
    %2104 = vmatpush2.msra.mxu0 0.0
    %2105 = vmatprep.subr.mxu0 0.0
    %2106 = vmatpush2.msra.mxu0 0.0
    %2107 = vmatprep.subr.mxu0 0.0
    %2108 = vmatpush2.msra.mxu0 0.0
    %2109 = vmatprep.mubr.f32.mxu0 0.0
    %2110 = vmatmul.mubr.f32.gmra.mxu0 %v2040
    %v2111 = vpop.f32.mrf.mxu0
    %v2112 = vadd.f32 0.0, %v2111
    %v2113 = vpop.f32.mrf.mxu0
    %2114 = vmatprep.mubr.f32.mxu0 0.0
    %2115 = vmatmul.mubr.f32.gmra.mxu0 %v2043
    %v2116 = vpop.f32.mrf.mxu0
    %v2117 = vadd.f32 0.0, %v2116
    %v2118 = vpop.f32.mrf.mxu0
    %2119 = vdwg.mxu0
    %v2121 = vsel %vm711, %v1656, 0
    %v2124 = vsel %vm711, %v1732, 0
    %2126 = vmatprep.subr.mxu0 0.0
    %2127 = vmatpush1.msra.mxu0 0.0
    %2128 = vmatprep.subr.mxu0 0.0
    %2129 = vmatpush1.msra.mxu0 0.0
    %2130 = vmatprep.subr.mxu0 0.0
    %2131 = vmatpush1.msra.mxu0 0.0
    %2132 = vmatprep.subr.mxu0 0.0
    %2133 = vmatpush1.msra.mxu0 0.0
    %2134 = vmatprep.subr.mxu0 0.0
    %2135 = vmatpush1.msra.mxu0 0.0
    %2136 = vmatprep.subr.mxu0 0.0
    %2137 = vmatpush1.msra.mxu0 0.0
    %2138 = vmatprep.subr.mxu0 0.0
    %2139 = vmatpush1.msra.mxu0 0.0
    %2140 = vmatprep.subr.mxu0 0.0
    %2141 = vmatpush1.msra.mxu0 0.0
    %2142 = vmatprep.subr.mxu0 0.0
    %2143 = vmatpush1.msra.mxu0 0.0
    %2144 = vmatprep.subr.mxu0 0.0
    %2145 = vmatpush1.msra.mxu0 0.0
    %2146 = vmatprep.subr.mxu0 0.0
    %2147 = vmatpush1.msra.mxu0 0.0
    %2148 = vmatprep.subr.mxu0 0.0
    %2149 = vmatpush1.msra.mxu0 0.0
    %2150 = vmatprep.subr.mxu0 0.0
    %2151 = vmatpush1.msra.mxu0 0.0
    %2152 = vmatprep.subr.mxu0 0.0
    %2153 = vmatpush1.msra.mxu0 0.0
    %2154 = vmatprep.subr.mxu0 0.0
    %2155 = vmatpush1.msra.mxu0 0.0
    %2156 = vmatprep.subr.mxu0 0.0
    %2157 = vmatpush1.msra.mxu0 %v311
    %2158 = vmatprep.subr.mxu0 0.0
    %2159 = vmatpush2.msra.mxu0 0.0
    %2160 = vmatprep.subr.mxu0 0.0
    %2161 = vmatpush2.msra.mxu0 0.0
    %2162 = vmatprep.subr.mxu0 0.0
    %2163 = vmatpush2.msra.mxu0 0.0
    %2164 = vmatprep.subr.mxu0 0.0
    %2165 = vmatpush2.msra.mxu0 0.0
    %2166 = vmatprep.subr.mxu0 0.0
    %2167 = vmatpush2.msra.mxu0 0.0
    %2168 = vmatprep.subr.mxu0 0.0
    %2169 = vmatpush2.msra.mxu0 0.0
    %2170 = vmatprep.subr.mxu0 0.0
    %2171 = vmatpush2.msra.mxu0 0.0
    %2172 = vmatprep.subr.mxu0 0.0
    %2173 = vmatpush2.msra.mxu0 0.0
    %2174 = vmatprep.subr.mxu0 0.0
    %2175 = vmatpush2.msra.mxu0 0.0
    %2176 = vmatprep.subr.mxu0 0.0
    %2177 = vmatpush2.msra.mxu0 0.0
    %2178 = vmatprep.subr.mxu0 0.0
    %2179 = vmatpush2.msra.mxu0 0.0
    %2180 = vmatprep.subr.mxu0 0.0
    %2181 = vmatpush2.msra.mxu0 0.0
    %2182 = vmatprep.subr.mxu0 0.0
    %2183 = vmatpush2.msra.mxu0 0.0
    %2184 = vmatprep.subr.mxu0 0.0
    %2185 = vmatpush2.msra.mxu0 0.0
    %2186 = vmatprep.subr.mxu0 0.0
    %2187 = vmatpush2.msra.mxu0 0.0
    %2188 = vmatprep.subr.mxu0 0.0
    %2189 = vmatpush2.msra.mxu0 0.0
    %2190 = vmatprep.mubr.f32.mxu0 0.0
    %2191 = vmatmul.mubr.f32.gmra.mxu0 %v2121
    %v2192 = vpop.f32.mrf.mxu0
    %v2193 = vadd.f32 0.0, %v2192
    %v2194 = vpop.f32.mrf.mxu0
    %2195 = vmatprep.mubr.f32.mxu0 0.0
    %2196 = vmatmul.mubr.f32.gmra.mxu0 %v2124
    %v2197 = vpop.f32.mrf.mxu0
    %v2198 = vadd.f32 0.0, %v2197
    %v2199 = vpop.f32.mrf.mxu0
    %2200 = vdwg.mxu0
    %v2202 = vsel %vm711, %v1808, 0
    %v2205 = vsel %vm711, %v1884, 0
    %2207 = vmatprep.subr.mxu0 0.0
    %2208 = vmatpush1.msra.mxu0 0.0
    %2209 = vmatprep.subr.mxu0 0.0
    %2210 = vmatpush1.msra.mxu0 0.0
    %2211 = vmatprep.subr.mxu0 0.0
    %2212 = vmatpush1.msra.mxu0 0.0
    %2213 = vmatprep.subr.mxu0 0.0
    %2214 = vmatpush1.msra.mxu0 0.0
    %2215 = vmatprep.subr.mxu0 0.0
    %2216 = vmatpush1.msra.mxu0 0.0
    %2217 = vmatprep.subr.mxu0 0.0
    %2218 = vmatpush1.msra.mxu0 0.0
    %2219 = vmatprep.subr.mxu0 0.0
    %2220 = vmatpush1.msra.mxu0 0.0
    %2221 = vmatprep.subr.mxu0 0.0
    %2222 = vmatpush1.msra.mxu0 0.0
    %2223 = vmatprep.subr.mxu0 0.0
    %2224 = vmatpush1.msra.mxu0 0.0
    %2225 = vmatprep.subr.mxu0 0.0
    %2226 = vmatpush1.msra.mxu0 0.0
    %2227 = vmatprep.subr.mxu0 0.0
    %2228 = vmatpush1.msra.mxu0 0.0
    %2229 = vmatprep.subr.mxu0 0.0
    %2230 = vmatpush1.msra.mxu0 0.0
    %2231 = vmatprep.subr.mxu0 0.0
    %2232 = vmatpush1.msra.mxu0 0.0
    %2233 = vmatprep.subr.mxu0 0.0
    %2234 = vmatpush1.msra.mxu0 0.0
    %2235 = vmatprep.subr.mxu0 0.0
    %2236 = vmatpush1.msra.mxu0 0.0
    %2237 = vmatprep.subr.mxu0 0.0
    %2238 = vmatpush1.msra.mxu0 %v312
    %2239 = vmatprep.subr.mxu0 0.0
    %2240 = vmatpush2.msra.mxu0 0.0
    %2241 = vmatprep.subr.mxu0 0.0
    %2242 = vmatpush2.msra.mxu0 0.0
    %2243 = vmatprep.subr.mxu0 0.0
    %2244 = vmatpush2.msra.mxu0 0.0
    %2245 = vmatprep.subr.mxu0 0.0
    %2246 = vmatpush2.msra.mxu0 0.0
    %2247 = vmatprep.subr.mxu0 0.0
    %2248 = vmatpush2.msra.mxu0 0.0
    %2249 = vmatprep.subr.mxu0 0.0
    %2250 = vmatpush2.msra.mxu0 0.0
    %2251 = vmatprep.subr.mxu0 0.0
    %2252 = vmatpush2.msra.mxu0 0.0
    %2253 = vmatprep.subr.mxu0 0.0
    %2254 = vmatpush2.msra.mxu0 0.0
    %2255 = vmatprep.subr.mxu0 0.0
    %2256 = vmatpush2.msra.mxu0 0.0
    %2257 = vmatprep.subr.mxu0 0.0
    %2258 = vmatpush2.msra.mxu0 0.0
    %2259 = vmatprep.subr.mxu0 0.0
    %2260 = vmatpush2.msra.mxu0 0.0
    %2261 = vmatprep.subr.mxu0 0.0
    %2262 = vmatpush2.msra.mxu0 0.0
    %2263 = vmatprep.subr.mxu0 0.0
    %2264 = vmatpush2.msra.mxu0 0.0
    %2265 = vmatprep.subr.mxu0 0.0
    %2266 = vmatpush2.msra.mxu0 0.0
    %2267 = vmatprep.subr.mxu0 0.0
    %2268 = vmatpush2.msra.mxu0 0.0
    %2269 = vmatprep.subr.mxu0 0.0
    %2270 = vmatpush2.msra.mxu0 0.0
    %2271 = vmatprep.mubr.f32.mxu0 0.0
    %2272 = vmatmul.mubr.f32.gmra.mxu0 %v2202
    %v2273 = vpop.f32.mrf.mxu0
    %v2274 = vadd.f32 0.0, %v2273
    %v2275 = vpop.f32.mrf.mxu0
    %2276 = vmatprep.mubr.f32.mxu0 0.0
    %2277 = vmatmul.mubr.f32.gmra.mxu0 %v2205
    %v2278 = vpop.f32.mrf.mxu0
    %v2279 = vadd.f32 0.0, %v2278
    %v2280 = vpop.f32.mrf.mxu0
    %2281 = vdwg.mxu0
    %v2283 = vsel %vm711, %v1960, 0
    %v2286 = vsel %vm711, %v2036, 0
    %2288 = vmatprep.subr.mxu0 0.0
    %2289 = vmatpush1.msra.mxu0 0.0
    %2290 = vmatprep.subr.mxu0 0.0
    %2291 = vmatpush1.msra.mxu0 0.0
    %2292 = vmatprep.subr.mxu0 0.0
    %2293 = vmatpush1.msra.mxu0 0.0
    %2294 = vmatprep.subr.mxu0 0.0
    %2295 = vmatpush1.msra.mxu0 0.0
    %2296 = vmatprep.subr.mxu0 0.0
    %2297 = vmatpush1.msra.mxu0 0.0
    %2298 = vmatprep.subr.mxu0 0.0
    %2299 = vmatpush1.msra.mxu0 0.0
    %2300 = vmatprep.subr.mxu0 0.0
    %2301 = vmatpush1.msra.mxu0 0.0
    %2302 = vmatprep.subr.mxu0 0.0
    %2303 = vmatpush1.msra.mxu0 0.0
    %2304 = vmatprep.subr.mxu0 0.0
    %2305 = vmatpush1.msra.mxu0 0.0
    %2306 = vmatprep.subr.mxu0 0.0
    %2307 = vmatpush1.msra.mxu0 0.0
    %2308 = vmatprep.subr.mxu0 0.0
    %2309 = vmatpush1.msra.mxu0 0.0
    %2310 = vmatprep.subr.mxu0 0.0
    %2311 = vmatpush1.msra.mxu0 0.0
    %2312 = vmatprep.subr.mxu0 0.0
    %2313 = vmatpush1.msra.mxu0 0.0
    %2314 = vmatprep.subr.mxu0 0.0
    %2315 = vmatpush1.msra.mxu0 0.0
    %2316 = vmatprep.subr.mxu0 0.0
    %2317 = vmatpush1.msra.mxu0 0.0
    %2318 = vmatprep.subr.mxu0 0.0
    %2319 = vmatpush1.msra.mxu0 %v313
    %2320 = vmatprep.subr.mxu0 0.0
    %2321 = vmatpush2.msra.mxu0 0.0
    %2322 = vmatprep.subr.mxu0 0.0
    %2323 = vmatpush2.msra.mxu0 0.0
    %2324 = vmatprep.subr.mxu0 0.0
    %2325 = vmatpush2.msra.mxu0 0.0
    %2326 = vmatprep.subr.mxu0 0.0
    %2327 = vmatpush2.msra.mxu0 0.0
    %2328 = vmatprep.subr.mxu0 0.0
    %2329 = vmatpush2.msra.mxu0 0.0
    %2330 = vmatprep.subr.mxu0 0.0
    %2331 = vmatpush2.msra.mxu0 0.0
    %2332 = vmatprep.subr.mxu0 0.0
    %2333 = vmatpush2.msra.mxu0 0.0
    %2334 = vmatprep.subr.mxu0 0.0
    %2335 = vmatpush2.msra.mxu0 0.0
    %2336 = vmatprep.subr.mxu0 0.0
    %2337 = vmatpush2.msra.mxu0 0.0
    %2338 = vmatprep.subr.mxu0 0.0
    %2339 = vmatpush2.msra.mxu0 0.0
    %2340 = vmatprep.subr.mxu0 0.0
    %2341 = vmatpush2.msra.mxu0 0.0
    %2342 = vmatprep.subr.mxu0 0.0
    %2343 = vmatpush2.msra.mxu0 0.0
    %2344 = vmatprep.subr.mxu0 0.0
    %2345 = vmatpush2.msra.mxu0 0.0
    %2346 = vmatprep.subr.mxu0 0.0
    %2347 = vmatpush2.msra.mxu0 0.0
    %2348 = vmatprep.subr.mxu0 0.0
    %2349 = vmatpush2.msra.mxu0 0.0
    %2350 = vmatprep.subr.mxu0 0.0
    %2351 = vmatpush2.msra.mxu0 0.0
    %2352 = vmatprep.mubr.f32.mxu0 0.0
    %2353 = vmatmul.mubr.f32.gmra.mxu0 %v2283
    %v2354 = vpop.f32.mrf.mxu0
    %v2355 = vadd.f32 0.0, %v2354
    %v2356 = vpop.f32.mrf.mxu0
    %2357 = vmatprep.mubr.f32.mxu0 0.0
    %2358 = vmatmul.mubr.f32.gmra.mxu0 %v2286
    %v2359 = vpop.f32.mrf.mxu0
    %v2360 = vadd.f32 0.0, %v2359
    %v2361 = vpop.f32.mrf.mxu0
    %2362 = vdwg.mxu0
    %v2363 = vsel %vm354, %v2112, 0.0
    %v2364 = vsel %vm354, %v2193, 0.0
    %v2365 = vadd.f32 %v2363, %v2364
    %v2366 = vsel %vm354, %v2274, 0.0
    %v2367 = vadd.f32 %v2365, %v2366
    %v2368 = vsel %vm354, %v2355, 0.0
    %v2369 = vadd.f32 %v2367, %v2368
    %v2370 = vsel %vm354, %v2117, 0.0
    %v2371 = vsel %vm354, %v2198, 0.0
    %v2372 = vadd.f32 %v2370, %v2371
    %v2373 = vsel %vm354, %v2279, 0.0
    %v2374 = vadd.f32 %v2372, %v2373
    %v2375 = vsel %vm354, %v2360, 0.0
    %v2376 = vadd.f32 %v2374, %v2375
    %v2377 = vadd.f32 %v263, %v2369
    %v2378 = vadd.f32 %v268, %v2376
    %v2379 = vlaneseq
    %v2380 = vshrl.u32 %v2379, 7
    %v2381 = vsub.s32 0, %v2380
    %v2382 = vrot.slane %v273, %v2381
    %v2383 = vadd.f32 %v2377, %v2382
    %v2384 = vadd.f32 %v2378, %v2382
    %v2385 = vsel %vm354, %v2383, 0.0
    %2386 = vadd.xlane.f32.xlu0 %v2385
    %v2387 = vpop.xlane.xlu0 %2386
    %v2388 = vsel %vm354, %v2384, 0.0
    %2389 = vadd.xlane.f32.xlu0 %v2388
    %v2390 = vpop.xlane.xlu0 %2389
    %v2391 = vmul.f32 %v2387, %v361
    %v2392 = vmul.f32 %v2390, %v361
    %v2393 = vsub.f32 %v2383, %v2391
    %v2394 = vsub.f32 %v2384, %v2392
    %v2395 = vmul.f32 %v2393, %v2393
    %v2396 = vmul.f32 %v2394, %v2394
    %v2397 = vsel %vm354, %v2395, 0.0
    %2398 = vadd.xlane.f32.xlu0 %v2397
    %v2399 = vpop.xlane.xlu0 %2398
    %v2400 = vsel %vm354, %v2396, 0.0
    %2401 = vadd.xlane.f32.xlu0 %v2400
    %v2402 = vpop.xlane.xlu0 %2401
    %v2403 = vmul.f32 %v2399, %v361
    %v2404 = vmul.f32 %v2402, %v361
    %v2405 = vadd.f32 %v2403, 1e-05
    %v2406 = vadd.f32 %v2404, 1e-05
    %v2407 = vrsqrt.pop %v2405
    %v2408 = vrsqrt.pop %v2406
    %v2409 = vmul.f32 %v2393, %v2407
    %v2410 = vmul.f32 %v2394, %v2408
    %v2411 = vlaneseq
    %v2412 = vshrl.u32 %v2411, 7
    %v2413 = vsub.s32 2, %v2412
    %v2414 = vrot.slane %v272, %v2413
    %v2415 = vmul.f32 %v2409, %v2414
    %v2416 = vmul.f32 %v2410, %v2414
    %v2417 = vlaneseq
    %v2418 = vshrl.u32 %v2417, 7
    %v2419 = vsub.s32 3, %v2418
    %v2420 = vrot.slane %v272, %v2419
    %v2421 = vadd.f32 %v2415, %v2420
    %v2422 = vadd.f32 %v2416, %v2420
    %v2423 = vld [vmem:[%s10] sm:$0x1]
    %v2425 = vlaneseq
    %v2426 = vshrl.u32 %v2425, 7
    %v2427 = vsub.s32 0, %v2426
    %v2428 = vrot.slane %v2423, %v2427
    %v2431 = vsel %vm354, %v2421, 0
    %v2434 = vsel %vm354, %v2422, 0
    %2436 = vmatprep.subr.mxu0 0.0
    %2437 = vmatpush1.msra.mxu0 0.0
    %2438 = vmatprep.subr.mxu0 0.0
    %2439 = vmatpush1.msra.mxu0 0.0
    %2440 = vmatprep.subr.mxu0 0.0
    %2441 = vmatpush1.msra.mxu0 0.0
    %2442 = vmatprep.subr.mxu0 0.0
    %2443 = vmatpush1.msra.mxu0 0.0
    %2444 = vmatprep.subr.mxu0 0.0
    %2445 = vmatpush1.msra.mxu0 0.0
    %2446 = vmatprep.subr.mxu0 0.0
    %2447 = vmatpush1.msra.mxu0 0.0
    %2448 = vmatprep.subr.mxu0 0.0
    %2449 = vmatpush1.msra.mxu0 0.0
    %2450 = vmatprep.subr.mxu0 0.0
    %2451 = vmatpush1.msra.mxu0 0.0
    %2452 = vmatprep.subr.mxu0 0.0
    %2453 = vmatpush1.msra.mxu0 0.0
    %2454 = vmatprep.subr.mxu0 0.0
    %2455 = vmatpush1.msra.mxu0 0.0
    %2456 = vmatprep.subr.mxu0 0.0
    %2457 = vmatpush1.msra.mxu0 0.0
    %2458 = vmatprep.subr.mxu0 0.0
    %2459 = vmatpush1.msra.mxu0 0.0
    %2460 = vmatprep.subr.mxu0 0.0
    %2461 = vmatpush1.msra.mxu0 %v321
    %2462 = vmatprep.subr.mxu0 0.0
    %2463 = vmatpush1.msra.mxu0 %v320
    %2464 = vmatprep.subr.mxu0 0.0
    %2465 = vmatpush1.msra.mxu0 %v319
    %2466 = vmatprep.subr.mxu0 0.0
    %2467 = vmatpush1.msra.mxu0 %v318
    %2468 = vmatprep.subr.mxu0 0.0
    %2469 = vmatpush2.msra.mxu0 0.0
    %2470 = vmatprep.subr.mxu0 0.0
    %2471 = vmatpush2.msra.mxu0 0.0
    %2472 = vmatprep.subr.mxu0 0.0
    %2473 = vmatpush2.msra.mxu0 0.0
    %2474 = vmatprep.subr.mxu0 0.0
    %2475 = vmatpush2.msra.mxu0 0.0
    %2476 = vmatprep.subr.mxu0 0.0
    %2477 = vmatpush2.msra.mxu0 0.0
    %2478 = vmatprep.subr.mxu0 0.0
    %2479 = vmatpush2.msra.mxu0 0.0
    %2480 = vmatprep.subr.mxu0 0.0
    %2481 = vmatpush2.msra.mxu0 0.0
    %2482 = vmatprep.subr.mxu0 0.0
    %2483 = vmatpush2.msra.mxu0 0.0
    %2484 = vmatprep.subr.mxu0 0.0
    %2485 = vmatpush2.msra.mxu0 0.0
    %2486 = vmatprep.subr.mxu0 0.0
    %2487 = vmatpush2.msra.mxu0 0.0
    %2488 = vmatprep.subr.mxu0 0.0
    %2489 = vmatpush2.msra.mxu0 0.0
    %2490 = vmatprep.subr.mxu0 0.0
    %2491 = vmatpush2.msra.mxu0 0.0
    %2492 = vmatprep.subr.mxu0 0.0
    %2493 = vmatpush2.msra.mxu0 0.0
    %2494 = vmatprep.subr.mxu0 0.0
    %2495 = vmatpush2.msra.mxu0 0.0
    %2496 = vmatprep.subr.mxu0 0.0
    %2497 = vmatpush2.msra.mxu0 0.0
    %2498 = vmatprep.subr.mxu0 0.0
    %2499 = vmatpush2.msra.mxu0 0.0
    %2500 = vmatprep.mubr.f32.mxu0 0.0
    %2501 = vmatmul.mubr.f32.gmra.mxu0 %v2431
    %v2502 = vpop.f32.mrf.mxu0
    %v2503 = vadd.f32 %v2428, %v2502
    %v2504 = vpop.f32.mrf.mxu0
    %2505 = vmatprep.mubr.f32.mxu0 0.0
    %2506 = vmatmul.mubr.f32.gmra.mxu0 %v2434
    %v2507 = vpop.f32.mrf.mxu0
    %v2508 = vadd.f32 %v2428, %v2507
    %v2509 = vpop.f32.mrf.mxu0
    %2510 = vdwg.mxu0
    %v2511 = vmax.f32 %v2503, 0.0
    %v2512 = vmax.f32 %v2508, 0.0
    %2513 = vmatprep.subr.mxu0 0.0
    %2514 = vmatpush1.msra.mxu0 %v353
    %2515 = vmatprep.subr.mxu0 0.0
    %2516 = vmatpush1.msra.mxu0 %v352
    %2517 = vmatprep.subr.mxu0 0.0
    %2518 = vmatpush1.msra.mxu0 %v351
    %2519 = vmatprep.subr.mxu0 0.0
    %2520 = vmatpush1.msra.mxu0 %v350
    %2521 = vmatprep.subr.mxu0 0.0
    %2522 = vmatpush1.msra.mxu0 %v349
    %2523 = vmatprep.subr.mxu0 0.0
    %2524 = vmatpush1.msra.mxu0 %v348
    %2525 = vmatprep.subr.mxu0 0.0
    %2526 = vmatpush1.msra.mxu0 %v347
    %2527 = vmatprep.subr.mxu0 0.0
    %2528 = vmatpush1.msra.mxu0 %v346
    %2529 = vmatprep.subr.mxu0 0.0
    %2530 = vmatpush1.msra.mxu0 %v345
    %2531 = vmatprep.subr.mxu0 0.0
    %2532 = vmatpush1.msra.mxu0 %v344
    %2533 = vmatprep.subr.mxu0 0.0
    %2534 = vmatpush1.msra.mxu0 %v343
    %2535 = vmatprep.subr.mxu0 0.0
    %2536 = vmatpush1.msra.mxu0 %v342
    %2537 = vmatprep.subr.mxu0 0.0
    %2538 = vmatpush1.msra.mxu0 %v341
    %2539 = vmatprep.subr.mxu0 0.0
    %2540 = vmatpush1.msra.mxu0 %v340
    %2541 = vmatprep.subr.mxu0 0.0
    %2542 = vmatpush1.msra.mxu0 %v339
    %2543 = vmatprep.subr.mxu0 0.0
    %2544 = vmatpush1.msra.mxu0 %v338
    %2545 = vmatprep.subr.mxu0 0.0
    %2546 = vmatpush2.msra.mxu0 0.0
    %2547 = vmatprep.subr.mxu0 0.0
    %2548 = vmatpush2.msra.mxu0 0.0
    %2549 = vmatprep.subr.mxu0 0.0
    %2550 = vmatpush2.msra.mxu0 0.0
    %2551 = vmatprep.subr.mxu0 0.0
    %2552 = vmatpush2.msra.mxu0 0.0
    %2553 = vmatprep.subr.mxu0 0.0
    %2554 = vmatpush2.msra.mxu0 0.0
    %2555 = vmatprep.subr.mxu0 0.0
    %2556 = vmatpush2.msra.mxu0 0.0
    %2557 = vmatprep.subr.mxu0 0.0
    %2558 = vmatpush2.msra.mxu0 0.0
    %2559 = vmatprep.subr.mxu0 0.0
    %2560 = vmatpush2.msra.mxu0 0.0
    %2561 = vmatprep.subr.mxu0 0.0
    %2562 = vmatpush2.msra.mxu0 0.0
    %2563 = vmatprep.subr.mxu0 0.0
    %2564 = vmatpush2.msra.mxu0 0.0
    %2565 = vmatprep.subr.mxu0 0.0
    %2566 = vmatpush2.msra.mxu0 0.0
    %2567 = vmatprep.subr.mxu0 0.0
    %2568 = vmatpush2.msra.mxu0 0.0
    %2569 = vmatprep.subr.mxu0 0.0
    %2570 = vmatpush2.msra.mxu0 0.0
    %2571 = vmatprep.subr.mxu0 0.0
    %2572 = vmatpush2.msra.mxu0 0.0
    %2573 = vmatprep.subr.mxu0 0.0
    %2574 = vmatpush2.msra.mxu0 0.0
    %2575 = vmatprep.subr.mxu0 0.0
    %2576 = vmatpush2.msra.mxu0 0.0
    %2577 = vmatprep.mubr.f32.mxu0 0.0
    %2578 = vmatmul.mubr.f32.gmra.mxu0 %v2511
    %v2579 = vpop.f32.mrf.mxu0
    %v2580 = vadd.f32 0.0, %v2579
    %v2581 = vpop.f32.mrf.mxu0
    %2582 = vmatprep.mubr.f32.mxu0 0.0
    %2583 = vmatmul.mubr.f32.gmra.mxu0 %v2512
    %v2584 = vpop.f32.mrf.mxu0
    %v2585 = vadd.f32 0.0, %v2584
    %v2586 = vpop.f32.mrf.mxu0
    %2587 = vdwg.mxu0
    %v2588 = vadd.f32 %v2383, %v2580
    %v2589 = vadd.f32 %v2384, %v2585
    %v2590 = vlaneseq
    %v2591 = vshrl.u32 %v2590, 7
    %v2592 = vsub.s32 1, %v2591
    %v2593 = vrot.slane %v273, %v2592
    %v2594 = vadd.f32 %v2588, %v2593
    %v2595 = vadd.f32 %v2589, %v2593
    %s2596 = scalar_lea.vmem %s4, 4
    %v2597 = vld [vmem:[%s2596] sm:$0xf]
    %s2598 = scalar_lea.vmem %s9, 2
    %v2599 = vld [vmem:[%s2598] sm:$0x3]
    %s2600 = scalar_lea.vmem %s5, 64
    %v2601 = vld [vmem:[%s2600] sm:$0xf]
    %v2602 = vld [vmem:[%s2600 + $0x4] sm:$0xf]
    %v2603 = vld [vmem:[%s2600 + $0x8] sm:$0xf]
    %v2604 = vld [vmem:[%s2600 + $0xc] sm:$0xf]
    %v2605 = vld [vmem:[%s2600 + $0x10] sm:$0xf]
    %v2606 = vld [vmem:[%s2600 + $0x14] sm:$0xf]
    %v2607 = vld [vmem:[%s2600 + $0x18] sm:$0xf]
    %v2608 = vld [vmem:[%s2600 + $0x1c] sm:$0xf]
    %v2609 = vld [vmem:[%s2600 + $0x20] sm:$0xf]
    %v2610 = vld [vmem:[%s2600 + $0x24] sm:$0xf]
    %v2611 = vld [vmem:[%s2600 + $0x28] sm:$0xf]
    %v2612 = vld [vmem:[%s2600 + $0x2c] sm:$0xf]
    %v2613 = vld [vmem:[%s2600 + $0x30] sm:$0xf]
    %v2614 = vld [vmem:[%s2600 + $0x34] sm:$0xf]
    %v2615 = vld [vmem:[%s2600 + $0x38] sm:$0xf]
    %v2616 = vld [vmem:[%s2600 + $0x3c] sm:$0xf]
    %v2617 = vunpack.c.l.bf16 %v2601
    %v2618 = vunpack.c.l.bf16 %v2602
    %v2619 = vunpack.c.l.bf16 %v2603
    %v2620 = vunpack.c.l.bf16 %v2604
    %v2621 = vunpack.c.l.bf16 %v2605
    %v2622 = vunpack.c.l.bf16 %v2606
    %v2623 = vunpack.c.l.bf16 %v2607
    %v2624 = vunpack.c.l.bf16 %v2608
    %v2625 = vunpack.c.l.bf16 %v2609
    %v2626 = vunpack.c.l.bf16 %v2610
    %v2627 = vunpack.c.l.bf16 %v2611
    %v2628 = vunpack.c.l.bf16 %v2612
    %v2629 = vunpack.c.l.bf16 %v2613
    %v2630 = vunpack.c.l.bf16 %v2614
    %v2631 = vunpack.c.l.bf16 %v2615
    %v2632 = vunpack.c.l.bf16 %v2616
    %s2633 = scalar_lea.vmem %s6, 16
    %v2634 = vld [vmem:[%s2633] sm:$0xf]
    %v2635 = vld [vmem:[%s2633 + $0x4] sm:$0xf]
    %v2636 = vld [vmem:[%s2633 + $0x8] sm:$0xf]
    %v2637 = vld [vmem:[%s2633 + $0xc] sm:$0xf]
    %v2638 = vunpack.c.l.bf16 %v2634
    %v2639 = vunpack.c.l.bf16 %v2635
    %v2640 = vunpack.c.l.bf16 %v2636
    %v2641 = vunpack.c.l.bf16 %v2637
    %s2642 = scalar_lea.vmem %s7, 16
    %v2643 = vld [vmem:[%s2642] sm:$0xf]
    %v2644 = vld [vmem:[%s2642 + $0x4] sm:$0xf]
    %v2645 = vld [vmem:[%s2642 + $0x8] sm:$0xf]
    %v2646 = vld [vmem:[%s2642 + $0xc] sm:$0xf]
    %v2647 = vunpack.c.l.bf16 %v2643
    %v2648 = vunpack.c.l.bf16 %v2644
    %v2649 = vunpack.c.l.bf16 %v2645
    %v2650 = vunpack.c.l.bf16 %v2646
    %s2651 = scalar_lea.vmem %s8, 64
    %v2652 = vld [vmem:[%s2651] sm:$0xf]
    %v2653 = vld [vmem:[%s2651 + $0x4] sm:$0xf]
    %v2654 = vld [vmem:[%s2651 + $0x8] sm:$0xf]
    %v2655 = vld [vmem:[%s2651 + $0xc] sm:$0xf]
    %v2656 = vld [vmem:[%s2651 + $0x10] sm:$0xf]
    %v2657 = vld [vmem:[%s2651 + $0x14] sm:$0xf]
    %v2658 = vld [vmem:[%s2651 + $0x18] sm:$0xf]
    %v2659 = vld [vmem:[%s2651 + $0x1c] sm:$0xf]
    %v2660 = vld [vmem:[%s2651 + $0x20] sm:$0xf]
    %v2661 = vld [vmem:[%s2651 + $0x24] sm:$0xf]
    %v2662 = vld [vmem:[%s2651 + $0x28] sm:$0xf]
    %v2663 = vld [vmem:[%s2651 + $0x2c] sm:$0xf]
    %v2664 = vld [vmem:[%s2651 + $0x30] sm:$0xf]
    %v2665 = vld [vmem:[%s2651 + $0x34] sm:$0xf]
    %v2666 = vld [vmem:[%s2651 + $0x38] sm:$0xf]
    %v2667 = vld [vmem:[%s2651 + $0x3c] sm:$0xf]
    %v2668 = vunpack.c.l.bf16 %v2652
    %v2669 = vunpack.c.l.bf16 %v2653
    %v2670 = vunpack.c.l.bf16 %v2654
    %v2671 = vunpack.c.l.bf16 %v2655
    %v2672 = vunpack.c.l.bf16 %v2656
    %v2673 = vunpack.c.l.bf16 %v2657
    %v2674 = vunpack.c.l.bf16 %v2658
    %v2675 = vunpack.c.l.bf16 %v2659
    %v2676 = vunpack.c.l.bf16 %v2660
    %v2677 = vunpack.c.l.bf16 %v2661
    %v2678 = vunpack.c.l.bf16 %v2662
    %v2679 = vunpack.c.l.bf16 %v2663
    %v2680 = vunpack.c.l.bf16 %v2664
    %v2681 = vunpack.c.l.bf16 %v2665
    %v2682 = vunpack.c.l.bf16 %v2666
    %v2683 = vunpack.c.l.bf16 %v2667
    %v2684 = vsel %vm354, %v2594, 0.0
    %2685 = vadd.xlane.f32.xlu0 %v2684
    %v2686 = vpop.xlane.xlu0 %2685
    %v2687 = vsel %vm354, %v2595, 0.0
    %2688 = vadd.xlane.f32.xlu0 %v2687
    %v2689 = vpop.xlane.xlu0 %2688
    %v2690 = vmul.f32 %v2686, %v361
    %v2691 = vmul.f32 %v2689, %v361
    %v2692 = vsub.f32 %v2594, %v2690
    %v2693 = vsub.f32 %v2595, %v2691
    %v2694 = vmul.f32 %v2692, %v2692
    %v2695 = vmul.f32 %v2693, %v2693
    %v2696 = vsel %vm354, %v2694, 0.0
    %2697 = vadd.xlane.f32.xlu0 %v2696
    %v2698 = vpop.xlane.xlu0 %2697
    %v2699 = vsel %vm354, %v2695, 0.0
    %2700 = vadd.xlane.f32.xlu0 %v2699
    %v2701 = vpop.xlane.xlu0 %2700
    %v2702 = vmul.f32 %v2698, %v361
    %v2703 = vmul.f32 %v2701, %v361
    %v2704 = vadd.f32 %v2702, 1e-05
    %v2705 = vadd.f32 %v2703, 1e-05
    %v2706 = vrsqrt.pop %v2704
    %v2707 = vrsqrt.pop %v2705
    %v2708 = vmul.f32 %v2692, %v2706
    %v2709 = vmul.f32 %v2693, %v2707
    %v2710 = vlaneseq
    %v2711 = vshrl.u32 %v2710, 7
    %v2712 = vsub.s32 0, %v2711
    %v2713 = vrot.slane %v2597, %v2712
    %v2714 = vmul.f32 %v2708, %v2713
    %v2715 = vmul.f32 %v2709, %v2713
    %v2716 = vlaneseq
    %v2717 = vshrl.u32 %v2716, 7
    %v2718 = vsub.s32 1, %v2717
    %v2719 = vrot.slane %v2597, %v2718
    %v2720 = vadd.f32 %v2714, %v2719
    %v2721 = vadd.f32 %v2715, %v2719
    %v2723 = vsel %vm354, %v2720, 0
    %v2726 = vsel %vm354, %v2721, 0
    %2728 = vmatprep.subr.mxu0 0.0
    %2729 = vmatpush1.msra.mxu0 0.0
    %2730 = vmatprep.subr.mxu0 0.0
    %2731 = vmatpush1.msra.mxu0 0.0
    %2732 = vmatprep.subr.mxu0 0.0
    %2733 = vmatpush1.msra.mxu0 0.0
    %2734 = vmatprep.subr.mxu0 0.0
    %2735 = vmatpush1.msra.mxu0 0.0
    %2736 = vmatprep.subr.mxu0 0.0
    %2737 = vmatpush1.msra.mxu0 0.0
    %2738 = vmatprep.subr.mxu0 0.0
    %2739 = vmatpush1.msra.mxu0 0.0
    %2740 = vmatprep.subr.mxu0 0.0
    %2741 = vmatpush1.msra.mxu0 0.0
    %2742 = vmatprep.subr.mxu0 0.0
    %2743 = vmatpush1.msra.mxu0 0.0
    %2744 = vmatprep.subr.mxu0 0.0
    %2745 = vmatpush1.msra.mxu0 0.0
    %2746 = vmatprep.subr.mxu0 0.0
    %2747 = vmatpush1.msra.mxu0 0.0
    %2748 = vmatprep.subr.mxu0 0.0
    %2749 = vmatpush1.msra.mxu0 0.0
    %2750 = vmatprep.subr.mxu0 0.0
    %2751 = vmatpush1.msra.mxu0 0.0
    %2752 = vmatprep.subr.mxu0 0.0
    %2753 = vmatpush1.msra.mxu0 %v2620
    %2754 = vmatprep.subr.mxu0 0.0
    %2755 = vmatpush1.msra.mxu0 %v2619
    %2756 = vmatprep.subr.mxu0 0.0
    %2757 = vmatpush1.msra.mxu0 %v2618
    %2758 = vmatprep.subr.mxu0 0.0
    %2759 = vmatpush1.msra.mxu0 %v2617
    %2760 = vmatprep.subr.mxu0 0.0
    %2761 = vmatpush2.msra.mxu0 0.0
    %2762 = vmatprep.subr.mxu0 0.0
    %2763 = vmatpush2.msra.mxu0 0.0
    %2764 = vmatprep.subr.mxu0 0.0
    %2765 = vmatpush2.msra.mxu0 0.0
    %2766 = vmatprep.subr.mxu0 0.0
    %2767 = vmatpush2.msra.mxu0 0.0
    %2768 = vmatprep.subr.mxu0 0.0
    %2769 = vmatpush2.msra.mxu0 0.0
    %2770 = vmatprep.subr.mxu0 0.0
    %2771 = vmatpush2.msra.mxu0 0.0
    %2772 = vmatprep.subr.mxu0 0.0
    %2773 = vmatpush2.msra.mxu0 0.0
    %2774 = vmatprep.subr.mxu0 0.0
    %2775 = vmatpush2.msra.mxu0 0.0
    %2776 = vmatprep.subr.mxu0 0.0
    %2777 = vmatpush2.msra.mxu0 0.0
    %2778 = vmatprep.subr.mxu0 0.0
    %2779 = vmatpush2.msra.mxu0 0.0
    %2780 = vmatprep.subr.mxu0 0.0
    %2781 = vmatpush2.msra.mxu0 0.0
    %2782 = vmatprep.subr.mxu0 0.0
    %2783 = vmatpush2.msra.mxu0 0.0
    %2784 = vmatprep.subr.mxu0 0.0
    %2785 = vmatpush2.msra.mxu0 0.0
    %2786 = vmatprep.subr.mxu0 0.0
    %2787 = vmatpush2.msra.mxu0 0.0
    %2788 = vmatprep.subr.mxu0 0.0
    %2789 = vmatpush2.msra.mxu0 0.0
    %2790 = vmatprep.subr.mxu0 0.0
    %2791 = vmatpush2.msra.mxu0 0.0
    %2792 = vmatprep.mubr.f32.mxu0 0.0
    %2793 = vmatmul.mubr.f32.gmra.mxu0 %v2723
    %v2794 = vpop.f32.mrf.mxu0
    %v2795 = vadd.f32 0.0, %v2794
    %v2796 = vpop.f32.mrf.mxu0
    %2797 = vmatprep.mubr.f32.mxu0 0.0
    %2798 = vmatmul.mubr.f32.gmra.mxu0 %v2726
    %v2799 = vpop.f32.mrf.mxu0
    %v2800 = vadd.f32 0.0, %v2799
    %v2801 = vpop.f32.mrf.mxu0
    %2802 = vdwg.mxu0
    %2803 = vmatprep.subr.mxu0 0.0
    %2804 = vmatpush1.msra.mxu0 0.0
    %2805 = vmatprep.subr.mxu0 0.0
    %2806 = vmatpush1.msra.mxu0 0.0
    %2807 = vmatprep.subr.mxu0 0.0
    %2808 = vmatpush1.msra.mxu0 0.0
    %2809 = vmatprep.subr.mxu0 0.0
    %2810 = vmatpush1.msra.mxu0 0.0
    %2811 = vmatprep.subr.mxu0 0.0
    %2812 = vmatpush1.msra.mxu0 0.0
    %2813 = vmatprep.subr.mxu0 0.0
    %2814 = vmatpush1.msra.mxu0 0.0
    %2815 = vmatprep.subr.mxu0 0.0
    %2816 = vmatpush1.msra.mxu0 0.0
    %2817 = vmatprep.subr.mxu0 0.0
    %2818 = vmatpush1.msra.mxu0 0.0
    %2819 = vmatprep.subr.mxu0 0.0
    %2820 = vmatpush1.msra.mxu0 0.0
    %2821 = vmatprep.subr.mxu0 0.0
    %2822 = vmatpush1.msra.mxu0 0.0
    %2823 = vmatprep.subr.mxu0 0.0
    %2824 = vmatpush1.msra.mxu0 0.0
    %2825 = vmatprep.subr.mxu0 0.0
    %2826 = vmatpush1.msra.mxu0 0.0
    %2827 = vmatprep.subr.mxu0 0.0
    %2828 = vmatpush1.msra.mxu0 %v2624
    %2829 = vmatprep.subr.mxu0 0.0
    %2830 = vmatpush1.msra.mxu0 %v2623
    %2831 = vmatprep.subr.mxu0 0.0
    %2832 = vmatpush1.msra.mxu0 %v2622
    %2833 = vmatprep.subr.mxu0 0.0
    %2834 = vmatpush1.msra.mxu0 %v2621
    %2835 = vmatprep.subr.mxu0 0.0
    %2836 = vmatpush2.msra.mxu0 0.0
    %2837 = vmatprep.subr.mxu0 0.0
    %2838 = vmatpush2.msra.mxu0 0.0
    %2839 = vmatprep.subr.mxu0 0.0
    %2840 = vmatpush2.msra.mxu0 0.0
    %2841 = vmatprep.subr.mxu0 0.0
    %2842 = vmatpush2.msra.mxu0 0.0
    %2843 = vmatprep.subr.mxu0 0.0
    %2844 = vmatpush2.msra.mxu0 0.0
    %2845 = vmatprep.subr.mxu0 0.0
    %2846 = vmatpush2.msra.mxu0 0.0
    %2847 = vmatprep.subr.mxu0 0.0
    %2848 = vmatpush2.msra.mxu0 0.0
    %2849 = vmatprep.subr.mxu0 0.0
    %2850 = vmatpush2.msra.mxu0 0.0
    %2851 = vmatprep.subr.mxu0 0.0
    %2852 = vmatpush2.msra.mxu0 0.0
    %2853 = vmatprep.subr.mxu0 0.0
    %2854 = vmatpush2.msra.mxu0 0.0
    %2855 = vmatprep.subr.mxu0 0.0
    %2856 = vmatpush2.msra.mxu0 0.0
    %2857 = vmatprep.subr.mxu0 0.0
    %2858 = vmatpush2.msra.mxu0 0.0
    %2859 = vmatprep.subr.mxu0 0.0
    %2860 = vmatpush2.msra.mxu0 0.0
    %2861 = vmatprep.subr.mxu0 0.0
    %2862 = vmatpush2.msra.mxu0 0.0
    %2863 = vmatprep.subr.mxu0 0.0
    %2864 = vmatpush2.msra.mxu0 0.0
    %2865 = vmatprep.subr.mxu0 0.0
    %2866 = vmatpush2.msra.mxu0 0.0
    %2867 = vmatprep.mubr.f32.mxu0 0.0
    %2868 = vmatmul.mubr.f32.gmra.mxu0 %v2723
    %v2869 = vpop.f32.mrf.mxu0
    %v2870 = vadd.f32 0.0, %v2869
    %v2871 = vpop.f32.mrf.mxu0
    %2872 = vmatprep.mubr.f32.mxu0 0.0
    %2873 = vmatmul.mubr.f32.gmra.mxu0 %v2726
    %v2874 = vpop.f32.mrf.mxu0
    %v2875 = vadd.f32 0.0, %v2874
    %v2876 = vpop.f32.mrf.mxu0
    %2877 = vdwg.mxu0
    %2878 = vmatprep.subr.mxu0 0.0
    %2879 = vmatpush1.msra.mxu0 0.0
    %2880 = vmatprep.subr.mxu0 0.0
    %2881 = vmatpush1.msra.mxu0 0.0
    %2882 = vmatprep.subr.mxu0 0.0
    %2883 = vmatpush1.msra.mxu0 0.0
    %2884 = vmatprep.subr.mxu0 0.0
    %2885 = vmatpush1.msra.mxu0 0.0
    %2886 = vmatprep.subr.mxu0 0.0
    %2887 = vmatpush1.msra.mxu0 0.0
    %2888 = vmatprep.subr.mxu0 0.0
    %2889 = vmatpush1.msra.mxu0 0.0
    %2890 = vmatprep.subr.mxu0 0.0
    %2891 = vmatpush1.msra.mxu0 0.0
    %2892 = vmatprep.subr.mxu0 0.0
    %2893 = vmatpush1.msra.mxu0 0.0
    %2894 = vmatprep.subr.mxu0 0.0
    %2895 = vmatpush1.msra.mxu0 0.0
    %2896 = vmatprep.subr.mxu0 0.0
    %2897 = vmatpush1.msra.mxu0 0.0
    %2898 = vmatprep.subr.mxu0 0.0
    %2899 = vmatpush1.msra.mxu0 0.0
    %2900 = vmatprep.subr.mxu0 0.0
    %2901 = vmatpush1.msra.mxu0 0.0
    %2902 = vmatprep.subr.mxu0 0.0
    %2903 = vmatpush1.msra.mxu0 %v2628
    %2904 = vmatprep.subr.mxu0 0.0
    %2905 = vmatpush1.msra.mxu0 %v2627
    %2906 = vmatprep.subr.mxu0 0.0
    %2907 = vmatpush1.msra.mxu0 %v2626
    %2908 = vmatprep.subr.mxu0 0.0
    %2909 = vmatpush1.msra.mxu0 %v2625
    %2910 = vmatprep.subr.mxu0 0.0
    %2911 = vmatpush2.msra.mxu0 0.0
    %2912 = vmatprep.subr.mxu0 0.0
    %2913 = vmatpush2.msra.mxu0 0.0
    %2914 = vmatprep.subr.mxu0 0.0
    %2915 = vmatpush2.msra.mxu0 0.0
    %2916 = vmatprep.subr.mxu0 0.0
    %2917 = vmatpush2.msra.mxu0 0.0
    %2918 = vmatprep.subr.mxu0 0.0
    %2919 = vmatpush2.msra.mxu0 0.0
    %2920 = vmatprep.subr.mxu0 0.0
    %2921 = vmatpush2.msra.mxu0 0.0
    %2922 = vmatprep.subr.mxu0 0.0
    %2923 = vmatpush2.msra.mxu0 0.0
    %2924 = vmatprep.subr.mxu0 0.0
    %2925 = vmatpush2.msra.mxu0 0.0
    %2926 = vmatprep.subr.mxu0 0.0
    %2927 = vmatpush2.msra.mxu0 0.0
    %2928 = vmatprep.subr.mxu0 0.0
    %2929 = vmatpush2.msra.mxu0 0.0
    %2930 = vmatprep.subr.mxu0 0.0
    %2931 = vmatpush2.msra.mxu0 0.0
    %2932 = vmatprep.subr.mxu0 0.0
    %2933 = vmatpush2.msra.mxu0 0.0
    %2934 = vmatprep.subr.mxu0 0.0
    %2935 = vmatpush2.msra.mxu0 0.0
    %2936 = vmatprep.subr.mxu0 0.0
    %2937 = vmatpush2.msra.mxu0 0.0
    %2938 = vmatprep.subr.mxu0 0.0
    %2939 = vmatpush2.msra.mxu0 0.0
    %2940 = vmatprep.subr.mxu0 0.0
    %2941 = vmatpush2.msra.mxu0 0.0
    %2942 = vmatprep.mubr.f32.mxu0 0.0
    %2943 = vmatmul.mubr.f32.gmra.mxu0 %v2723
    %v2944 = vpop.f32.mrf.mxu0
    %v2945 = vadd.f32 0.0, %v2944
    %v2946 = vpop.f32.mrf.mxu0
    %2947 = vmatprep.mubr.f32.mxu0 0.0
    %2948 = vmatmul.mubr.f32.gmra.mxu0 %v2726
    %v2949 = vpop.f32.mrf.mxu0
    %v2950 = vadd.f32 0.0, %v2949
    %v2951 = vpop.f32.mrf.mxu0
    %2952 = vdwg.mxu0
    %2953 = vmatprep.subr.mxu0 0.0
    %2954 = vmatpush1.msra.mxu0 0.0
    %2955 = vmatprep.subr.mxu0 0.0
    %2956 = vmatpush1.msra.mxu0 0.0
    %2957 = vmatprep.subr.mxu0 0.0
    %2958 = vmatpush1.msra.mxu0 0.0
    %2959 = vmatprep.subr.mxu0 0.0
    %2960 = vmatpush1.msra.mxu0 0.0
    %2961 = vmatprep.subr.mxu0 0.0
    %2962 = vmatpush1.msra.mxu0 0.0
    %2963 = vmatprep.subr.mxu0 0.0
    %2964 = vmatpush1.msra.mxu0 0.0
    %2965 = vmatprep.subr.mxu0 0.0
    %2966 = vmatpush1.msra.mxu0 0.0
    %2967 = vmatprep.subr.mxu0 0.0
    %2968 = vmatpush1.msra.mxu0 0.0
    %2969 = vmatprep.subr.mxu0 0.0
    %2970 = vmatpush1.msra.mxu0 0.0
    %2971 = vmatprep.subr.mxu0 0.0
    %2972 = vmatpush1.msra.mxu0 0.0
    %2973 = vmatprep.subr.mxu0 0.0
    %2974 = vmatpush1.msra.mxu0 0.0
    %2975 = vmatprep.subr.mxu0 0.0
    %2976 = vmatpush1.msra.mxu0 0.0
    %2977 = vmatprep.subr.mxu0 0.0
    %2978 = vmatpush1.msra.mxu0 %v2632
    %2979 = vmatprep.subr.mxu0 0.0
    %2980 = vmatpush1.msra.mxu0 %v2631
    %2981 = vmatprep.subr.mxu0 0.0
    %2982 = vmatpush1.msra.mxu0 %v2630
    %2983 = vmatprep.subr.mxu0 0.0
    %2984 = vmatpush1.msra.mxu0 %v2629
    %2985 = vmatprep.subr.mxu0 0.0
    %2986 = vmatpush2.msra.mxu0 0.0
    %2987 = vmatprep.subr.mxu0 0.0
    %2988 = vmatpush2.msra.mxu0 0.0
    %2989 = vmatprep.subr.mxu0 0.0
    %2990 = vmatpush2.msra.mxu0 0.0
    %2991 = vmatprep.subr.mxu0 0.0
    %2992 = vmatpush2.msra.mxu0 0.0
    %2993 = vmatprep.subr.mxu0 0.0
    %2994 = vmatpush2.msra.mxu0 0.0
    %2995 = vmatprep.subr.mxu0 0.0
    %2996 = vmatpush2.msra.mxu0 0.0
    %2997 = vmatprep.subr.mxu0 0.0
    %2998 = vmatpush2.msra.mxu0 0.0
    %2999 = vmatprep.subr.mxu0 0.0
    %3000 = vmatpush2.msra.mxu0 0.0
    %3001 = vmatprep.subr.mxu0 0.0
    %3002 = vmatpush2.msra.mxu0 0.0
    %3003 = vmatprep.subr.mxu0 0.0
    %3004 = vmatpush2.msra.mxu0 0.0
    %3005 = vmatprep.subr.mxu0 0.0
    %3006 = vmatpush2.msra.mxu0 0.0
    %3007 = vmatprep.subr.mxu0 0.0
    %3008 = vmatpush2.msra.mxu0 0.0
    %3009 = vmatprep.subr.mxu0 0.0
    %3010 = vmatpush2.msra.mxu0 0.0
    %3011 = vmatprep.subr.mxu0 0.0
    %3012 = vmatpush2.msra.mxu0 0.0
    %3013 = vmatprep.subr.mxu0 0.0
    %3014 = vmatpush2.msra.mxu0 0.0
    %3015 = vmatprep.subr.mxu0 0.0
    %3016 = vmatpush2.msra.mxu0 0.0
    %3017 = vmatprep.mubr.f32.mxu0 0.0
    %3018 = vmatmul.mubr.f32.gmra.mxu0 %v2723
    %v3019 = vpop.f32.mrf.mxu0
    %v3020 = vadd.f32 0.0, %v3019
    %v3021 = vpop.f32.mrf.mxu0
    %3022 = vmatprep.mubr.f32.mxu0 0.0
    %3023 = vmatmul.mubr.f32.gmra.mxu0 %v2726
    %v3024 = vpop.f32.mrf.mxu0
    %v3025 = vadd.f32 0.0, %v3024
    %v3026 = vpop.f32.mrf.mxu0
    %3027 = vdwg.mxu0
    %v3028 = vmul.f32 %v2795, 0.35355338
    %v3029 = vmul.f32 %v2800, 0.35355338
    %v3030 = vmul.f32 %v2870, 0.35355338
    %v3031 = vmul.f32 %v2875, 0.35355338
    %v3032 = vmul.f32 %v2945, 0.35355338
    %v3033 = vmul.f32 %v2950, 0.35355338
    %v3034 = vmul.f32 %v3020, 0.35355338
    %v3035 = vmul.f32 %v3025, 0.35355338
    %3037 = vrot.lane.b32.xlu0 %v2795, 120
    %v3038 = vpop.permute.xlu0 %3037
    %v3040 = vsel %vm711, %v3028, 0
    %v3042 = vsel %vm711, %v3038, 0
    %3044 = vmatprep.subr.mxu0 0.0
    %3045 = vmatpush1.xpose.msra.mxu0 0.0
    %3046 = vmatprep.subr.mxu0 0.0
    %3047 = vmatpush1.xpose.msra.mxu0 0.0
    %3048 = vmatprep.subr.mxu0 0.0
    %3049 = vmatpush1.xpose.msra.mxu0 0.0
    %3050 = vmatprep.subr.mxu0 0.0
    %3051 = vmatpush1.xpose.msra.mxu0 0.0
    %3052 = vmatprep.subr.mxu0 0.0
    %3053 = vmatpush1.xpose.msra.mxu0 0.0
    %3054 = vmatprep.subr.mxu0 0.0
    %3055 = vmatpush1.xpose.msra.mxu0 0.0
    %3056 = vmatprep.subr.mxu0 0.0
    %3057 = vmatpush1.xpose.msra.mxu0 0.0
    %3058 = vmatprep.subr.mxu0 0.0
    %3059 = vmatpush1.xpose.msra.mxu0 0.0
    %3060 = vmatprep.subr.mxu0 0.0
    %3061 = vmatpush1.xpose.msra.mxu0 0.0
    %3062 = vmatprep.subr.mxu0 0.0
    %3063 = vmatpush1.xpose.msra.mxu0 0.0
    %3064 = vmatprep.subr.mxu0 0.0
    %3065 = vmatpush1.xpose.msra.mxu0 0.0
    %3066 = vmatprep.subr.mxu0 0.0
    %3067 = vmatpush1.xpose.msra.mxu0 0.0
    %3068 = vmatprep.subr.mxu0 0.0
    %3069 = vmatpush1.xpose.msra.mxu0 0.0
    %3070 = vmatprep.subr.mxu0 0.0
    %3071 = vmatpush1.xpose.msra.mxu0 0.0
    %3072 = vmatprep.subr.mxu0 0.0
    %3073 = vmatpush1.xpose.msra.mxu0 0.0
    %3074 = vmatprep.subr.mxu0 0.0
    %3075 = vmatpush1.xpose.msra.mxu0 %v3042
    %3076 = vmatprep.subr.mxu0 0.0
    %3077 = vmatpush2.xpose.msra.mxu0 0.0
    %3078 = vmatprep.subr.mxu0 0.0
    %3079 = vmatpush2.xpose.msra.mxu0 0.0
    %3080 = vmatprep.subr.mxu0 0.0
    %3081 = vmatpush2.xpose.msra.mxu0 0.0
    %3082 = vmatprep.subr.mxu0 0.0
    %3083 = vmatpush2.xpose.msra.mxu0 0.0
    %3084 = vmatprep.subr.mxu0 0.0
    %3085 = vmatpush2.xpose.msra.mxu0 0.0
    %3086 = vmatprep.subr.mxu0 0.0
    %3087 = vmatpush2.xpose.msra.mxu0 0.0
    %3088 = vmatprep.subr.mxu0 0.0
    %3089 = vmatpush2.xpose.msra.mxu0 0.0
    %3090 = vmatprep.subr.mxu0 0.0
    %3091 = vmatpush2.xpose.msra.mxu0 0.0
    %3092 = vmatprep.subr.mxu0 0.0
    %3093 = vmatpush2.xpose.msra.mxu0 0.0
    %3094 = vmatprep.subr.mxu0 0.0
    %3095 = vmatpush2.xpose.msra.mxu0 0.0
    %3096 = vmatprep.subr.mxu0 0.0
    %3097 = vmatpush2.xpose.msra.mxu0 0.0
    %3098 = vmatprep.subr.mxu0 0.0
    %3099 = vmatpush2.xpose.msra.mxu0 0.0
    %3100 = vmatprep.subr.mxu0 0.0
    %3101 = vmatpush2.xpose.msra.mxu0 0.0
    %3102 = vmatprep.subr.mxu0 0.0
    %3103 = vmatpush2.xpose.msra.mxu0 0.0
    %3104 = vmatprep.subr.mxu0 0.0
    %3105 = vmatpush2.xpose.msra.mxu0 0.0
    %3106 = vmatprep.subr.mxu0 0.0
    %3107 = vmatpush2.xpose.msra.mxu0 0.0
    %3108 = vmatprep.mubr.f32.mxu0 0.0
    %3109 = vmatmul.mubr.f32.gmra.mxu0 %v3040
    %v3110 = vpop.f32.mrf.mxu0
    %v3111 = vadd.f32 0.0, %v3110
    %v3112 = vpop.f32.mrf.mxu0
    %3113 = vdwg.mxu0
    %3115 = vrot.lane.b32.xlu0 %v2800, 120
    %v3116 = vpop.permute.xlu0 %3115
    %v3118 = vsel %vm711, %v3029, 0
    %v3120 = vsel %vm711, %v3116, 0
    %3122 = vmatprep.subr.mxu0 0.0
    %3123 = vmatpush1.xpose.msra.mxu0 0.0
    %3124 = vmatprep.subr.mxu0 0.0
    %3125 = vmatpush1.xpose.msra.mxu0 0.0
    %3126 = vmatprep.subr.mxu0 0.0
    %3127 = vmatpush1.xpose.msra.mxu0 0.0
    %3128 = vmatprep.subr.mxu0 0.0
    %3129 = vmatpush1.xpose.msra.mxu0 0.0
    %3130 = vmatprep.subr.mxu0 0.0
    %3131 = vmatpush1.xpose.msra.mxu0 0.0
    %3132 = vmatprep.subr.mxu0 0.0
    %3133 = vmatpush1.xpose.msra.mxu0 0.0
    %3134 = vmatprep.subr.mxu0 0.0
    %3135 = vmatpush1.xpose.msra.mxu0 0.0
    %3136 = vmatprep.subr.mxu0 0.0
    %3137 = vmatpush1.xpose.msra.mxu0 0.0
    %3138 = vmatprep.subr.mxu0 0.0
    %3139 = vmatpush1.xpose.msra.mxu0 0.0
    %3140 = vmatprep.subr.mxu0 0.0
    %3141 = vmatpush1.xpose.msra.mxu0 0.0
    %3142 = vmatprep.subr.mxu0 0.0
    %3143 = vmatpush1.xpose.msra.mxu0 0.0
    %3144 = vmatprep.subr.mxu0 0.0
    %3145 = vmatpush1.xpose.msra.mxu0 0.0
    %3146 = vmatprep.subr.mxu0 0.0
    %3147 = vmatpush1.xpose.msra.mxu0 0.0
    %3148 = vmatprep.subr.mxu0 0.0
    %3149 = vmatpush1.xpose.msra.mxu0 0.0
    %3150 = vmatprep.subr.mxu0 0.0
    %3151 = vmatpush1.xpose.msra.mxu0 0.0
    %3152 = vmatprep.subr.mxu0 0.0
    %3153 = vmatpush1.xpose.msra.mxu0 %v3120
    %3154 = vmatprep.subr.mxu0 0.0
    %3155 = vmatpush2.xpose.msra.mxu0 0.0
    %3156 = vmatprep.subr.mxu0 0.0
    %3157 = vmatpush2.xpose.msra.mxu0 0.0
    %3158 = vmatprep.subr.mxu0 0.0
    %3159 = vmatpush2.xpose.msra.mxu0 0.0
    %3160 = vmatprep.subr.mxu0 0.0
    %3161 = vmatpush2.xpose.msra.mxu0 0.0
    %3162 = vmatprep.subr.mxu0 0.0
    %3163 = vmatpush2.xpose.msra.mxu0 0.0
    %3164 = vmatprep.subr.mxu0 0.0
    %3165 = vmatpush2.xpose.msra.mxu0 0.0
    %3166 = vmatprep.subr.mxu0 0.0
    %3167 = vmatpush2.xpose.msra.mxu0 0.0
    %3168 = vmatprep.subr.mxu0 0.0
    %3169 = vmatpush2.xpose.msra.mxu0 0.0
    %3170 = vmatprep.subr.mxu0 0.0
    %3171 = vmatpush2.xpose.msra.mxu0 0.0
    %3172 = vmatprep.subr.mxu0 0.0
    %3173 = vmatpush2.xpose.msra.mxu0 0.0
    %3174 = vmatprep.subr.mxu0 0.0
    %3175 = vmatpush2.xpose.msra.mxu0 0.0
    %3176 = vmatprep.subr.mxu0 0.0
    %3177 = vmatpush2.xpose.msra.mxu0 0.0
    %3178 = vmatprep.subr.mxu0 0.0
    %3179 = vmatpush2.xpose.msra.mxu0 0.0
    %3180 = vmatprep.subr.mxu0 0.0
    %3181 = vmatpush2.xpose.msra.mxu0 0.0
    %3182 = vmatprep.subr.mxu0 0.0
    %3183 = vmatpush2.xpose.msra.mxu0 0.0
    %3184 = vmatprep.subr.mxu0 0.0
    %3185 = vmatpush2.xpose.msra.mxu0 0.0
    %3186 = vmatprep.mubr.f32.mxu0 0.0
    %3187 = vmatmul.mubr.f32.gmra.mxu0 %v3118
    %v3188 = vpop.f32.mrf.mxu0
    %v3189 = vadd.f32 0.0, %v3188
    %v3190 = vpop.f32.mrf.mxu0
    %3191 = vdwg.mxu0
    %3193 = vrot.lane.b32.xlu0 %v2870, 120
    %v3194 = vpop.permute.xlu0 %3193
    %v3196 = vsel %vm711, %v3030, 0
    %v3198 = vsel %vm711, %v3194, 0
    %3200 = vmatprep.subr.mxu0 0.0
    %3201 = vmatpush1.xpose.msra.mxu0 0.0
    %3202 = vmatprep.subr.mxu0 0.0
    %3203 = vmatpush1.xpose.msra.mxu0 0.0
    %3204 = vmatprep.subr.mxu0 0.0
    %3205 = vmatpush1.xpose.msra.mxu0 0.0
    %3206 = vmatprep.subr.mxu0 0.0
    %3207 = vmatpush1.xpose.msra.mxu0 0.0
    %3208 = vmatprep.subr.mxu0 0.0
    %3209 = vmatpush1.xpose.msra.mxu0 0.0
    %3210 = vmatprep.subr.mxu0 0.0
    %3211 = vmatpush1.xpose.msra.mxu0 0.0
    %3212 = vmatprep.subr.mxu0 0.0
    %3213 = vmatpush1.xpose.msra.mxu0 0.0
    %3214 = vmatprep.subr.mxu0 0.0
    %3215 = vmatpush1.xpose.msra.mxu0 0.0
    %3216 = vmatprep.subr.mxu0 0.0
    %3217 = vmatpush1.xpose.msra.mxu0 0.0
    %3218 = vmatprep.subr.mxu0 0.0
    %3219 = vmatpush1.xpose.msra.mxu0 0.0
    %3220 = vmatprep.subr.mxu0 0.0
    %3221 = vmatpush1.xpose.msra.mxu0 0.0
    %3222 = vmatprep.subr.mxu0 0.0
    %3223 = vmatpush1.xpose.msra.mxu0 0.0
    %3224 = vmatprep.subr.mxu0 0.0
    %3225 = vmatpush1.xpose.msra.mxu0 0.0
    %3226 = vmatprep.subr.mxu0 0.0
    %3227 = vmatpush1.xpose.msra.mxu0 0.0
    %3228 = vmatprep.subr.mxu0 0.0
    %3229 = vmatpush1.xpose.msra.mxu0 0.0
    %3230 = vmatprep.subr.mxu0 0.0
    %3231 = vmatpush1.xpose.msra.mxu0 %v3198
    %3232 = vmatprep.subr.mxu0 0.0
    %3233 = vmatpush2.xpose.msra.mxu0 0.0
    %3234 = vmatprep.subr.mxu0 0.0
    %3235 = vmatpush2.xpose.msra.mxu0 0.0
    %3236 = vmatprep.subr.mxu0 0.0
    %3237 = vmatpush2.xpose.msra.mxu0 0.0
    %3238 = vmatprep.subr.mxu0 0.0
    %3239 = vmatpush2.xpose.msra.mxu0 0.0
    %3240 = vmatprep.subr.mxu0 0.0
    %3241 = vmatpush2.xpose.msra.mxu0 0.0
    %3242 = vmatprep.subr.mxu0 0.0
    %3243 = vmatpush2.xpose.msra.mxu0 0.0
    %3244 = vmatprep.subr.mxu0 0.0
    %3245 = vmatpush2.xpose.msra.mxu0 0.0
    %3246 = vmatprep.subr.mxu0 0.0
    %3247 = vmatpush2.xpose.msra.mxu0 0.0
    %3248 = vmatprep.subr.mxu0 0.0
    %3249 = vmatpush2.xpose.msra.mxu0 0.0
    %3250 = vmatprep.subr.mxu0 0.0
    %3251 = vmatpush2.xpose.msra.mxu0 0.0
    %3252 = vmatprep.subr.mxu0 0.0
    %3253 = vmatpush2.xpose.msra.mxu0 0.0
    %3254 = vmatprep.subr.mxu0 0.0
    %3255 = vmatpush2.xpose.msra.mxu0 0.0
    %3256 = vmatprep.subr.mxu0 0.0
    %3257 = vmatpush2.xpose.msra.mxu0 0.0
    %3258 = vmatprep.subr.mxu0 0.0
    %3259 = vmatpush2.xpose.msra.mxu0 0.0
    %3260 = vmatprep.subr.mxu0 0.0
    %3261 = vmatpush2.xpose.msra.mxu0 0.0
    %3262 = vmatprep.subr.mxu0 0.0
    %3263 = vmatpush2.xpose.msra.mxu0 0.0
    %3264 = vmatprep.mubr.f32.mxu0 0.0
    %3265 = vmatmul.mubr.f32.gmra.mxu0 %v3196
    %v3266 = vpop.f32.mrf.mxu0
    %v3267 = vadd.f32 0.0, %v3266
    %v3268 = vpop.f32.mrf.mxu0
    %3269 = vdwg.mxu0
    %3271 = vrot.lane.b32.xlu0 %v2875, 120
    %v3272 = vpop.permute.xlu0 %3271
    %v3274 = vsel %vm711, %v3031, 0
    %v3276 = vsel %vm711, %v3272, 0
    %3278 = vmatprep.subr.mxu0 0.0
    %3279 = vmatpush1.xpose.msra.mxu0 0.0
    %3280 = vmatprep.subr.mxu0 0.0
    %3281 = vmatpush1.xpose.msra.mxu0 0.0
    %3282 = vmatprep.subr.mxu0 0.0
    %3283 = vmatpush1.xpose.msra.mxu0 0.0
    %3284 = vmatprep.subr.mxu0 0.0
    %3285 = vmatpush1.xpose.msra.mxu0 0.0
    %3286 = vmatprep.subr.mxu0 0.0
    %3287 = vmatpush1.xpose.msra.mxu0 0.0
    %3288 = vmatprep.subr.mxu0 0.0
    %3289 = vmatpush1.xpose.msra.mxu0 0.0
    %3290 = vmatprep.subr.mxu0 0.0
    %3291 = vmatpush1.xpose.msra.mxu0 0.0
    %3292 = vmatprep.subr.mxu0 0.0
    %3293 = vmatpush1.xpose.msra.mxu0 0.0
    %3294 = vmatprep.subr.mxu0 0.0
    %3295 = vmatpush1.xpose.msra.mxu0 0.0
    %3296 = vmatprep.subr.mxu0 0.0
    %3297 = vmatpush1.xpose.msra.mxu0 0.0
    %3298 = vmatprep.subr.mxu0 0.0
    %3299 = vmatpush1.xpose.msra.mxu0 0.0
    %3300 = vmatprep.subr.mxu0 0.0
    %3301 = vmatpush1.xpose.msra.mxu0 0.0
    %3302 = vmatprep.subr.mxu0 0.0
    %3303 = vmatpush1.xpose.msra.mxu0 0.0
    %3304 = vmatprep.subr.mxu0 0.0
    %3305 = vmatpush1.xpose.msra.mxu0 0.0
    %3306 = vmatprep.subr.mxu0 0.0
    %3307 = vmatpush1.xpose.msra.mxu0 0.0
    %3308 = vmatprep.subr.mxu0 0.0
    %3309 = vmatpush1.xpose.msra.mxu0 %v3276
    %3310 = vmatprep.subr.mxu0 0.0
    %3311 = vmatpush2.xpose.msra.mxu0 0.0
    %3312 = vmatprep.subr.mxu0 0.0
    %3313 = vmatpush2.xpose.msra.mxu0 0.0
    %3314 = vmatprep.subr.mxu0 0.0
    %3315 = vmatpush2.xpose.msra.mxu0 0.0
    %3316 = vmatprep.subr.mxu0 0.0
    %3317 = vmatpush2.xpose.msra.mxu0 0.0
    %3318 = vmatprep.subr.mxu0 0.0
    %3319 = vmatpush2.xpose.msra.mxu0 0.0
    %3320 = vmatprep.subr.mxu0 0.0
    %3321 = vmatpush2.xpose.msra.mxu0 0.0
    %3322 = vmatprep.subr.mxu0 0.0
    %3323 = vmatpush2.xpose.msra.mxu0 0.0
    %3324 = vmatprep.subr.mxu0 0.0
    %3325 = vmatpush2.xpose.msra.mxu0 0.0
    %3326 = vmatprep.subr.mxu0 0.0
    %3327 = vmatpush2.xpose.msra.mxu0 0.0
    %3328 = vmatprep.subr.mxu0 0.0
    %3329 = vmatpush2.xpose.msra.mxu0 0.0
    %3330 = vmatprep.subr.mxu0 0.0
    %3331 = vmatpush2.xpose.msra.mxu0 0.0
    %3332 = vmatprep.subr.mxu0 0.0
    %3333 = vmatpush2.xpose.msra.mxu0 0.0
    %3334 = vmatprep.subr.mxu0 0.0
    %3335 = vmatpush2.xpose.msra.mxu0 0.0
    %3336 = vmatprep.subr.mxu0 0.0
    %3337 = vmatpush2.xpose.msra.mxu0 0.0
    %3338 = vmatprep.subr.mxu0 0.0
    %3339 = vmatpush2.xpose.msra.mxu0 0.0
    %3340 = vmatprep.subr.mxu0 0.0
    %3341 = vmatpush2.xpose.msra.mxu0 0.0
    %3342 = vmatprep.mubr.f32.mxu0 0.0
    %3343 = vmatmul.mubr.f32.gmra.mxu0 %v3274
    %v3344 = vpop.f32.mrf.mxu0
    %v3345 = vadd.f32 0.0, %v3344
    %v3346 = vpop.f32.mrf.mxu0
    %3347 = vdwg.mxu0
    %3349 = vrot.lane.b32.xlu0 %v2945, 120
    %v3350 = vpop.permute.xlu0 %3349
    %v3352 = vsel %vm711, %v3032, 0
    %v3354 = vsel %vm711, %v3350, 0
    %3356 = vmatprep.subr.mxu0 0.0
    %3357 = vmatpush1.xpose.msra.mxu0 0.0
    %3358 = vmatprep.subr.mxu0 0.0
    %3359 = vmatpush1.xpose.msra.mxu0 0.0
    %3360 = vmatprep.subr.mxu0 0.0
    %3361 = vmatpush1.xpose.msra.mxu0 0.0
    %3362 = vmatprep.subr.mxu0 0.0
    %3363 = vmatpush1.xpose.msra.mxu0 0.0
    %3364 = vmatprep.subr.mxu0 0.0
    %3365 = vmatpush1.xpose.msra.mxu0 0.0
    %3366 = vmatprep.subr.mxu0 0.0
    %3367 = vmatpush1.xpose.msra.mxu0 0.0
    %3368 = vmatprep.subr.mxu0 0.0
    %3369 = vmatpush1.xpose.msra.mxu0 0.0
    %3370 = vmatprep.subr.mxu0 0.0
    %3371 = vmatpush1.xpose.msra.mxu0 0.0
    %3372 = vmatprep.subr.mxu0 0.0
    %3373 = vmatpush1.xpose.msra.mxu0 0.0
    %3374 = vmatprep.subr.mxu0 0.0
    %3375 = vmatpush1.xpose.msra.mxu0 0.0
    %3376 = vmatprep.subr.mxu0 0.0
    %3377 = vmatpush1.xpose.msra.mxu0 0.0
    %3378 = vmatprep.subr.mxu0 0.0
    %3379 = vmatpush1.xpose.msra.mxu0 0.0
    %3380 = vmatprep.subr.mxu0 0.0
    %3381 = vmatpush1.xpose.msra.mxu0 0.0
    %3382 = vmatprep.subr.mxu0 0.0
    %3383 = vmatpush1.xpose.msra.mxu0 0.0
    %3384 = vmatprep.subr.mxu0 0.0
    %3385 = vmatpush1.xpose.msra.mxu0 0.0
    %3386 = vmatprep.subr.mxu0 0.0
    %3387 = vmatpush1.xpose.msra.mxu0 %v3354
    %3388 = vmatprep.subr.mxu0 0.0
    %3389 = vmatpush2.xpose.msra.mxu0 0.0
    %3390 = vmatprep.subr.mxu0 0.0
    %3391 = vmatpush2.xpose.msra.mxu0 0.0
    %3392 = vmatprep.subr.mxu0 0.0
    %3393 = vmatpush2.xpose.msra.mxu0 0.0
    %3394 = vmatprep.subr.mxu0 0.0
    %3395 = vmatpush2.xpose.msra.mxu0 0.0
    %3396 = vmatprep.subr.mxu0 0.0
    %3397 = vmatpush2.xpose.msra.mxu0 0.0
    %3398 = vmatprep.subr.mxu0 0.0
    %3399 = vmatpush2.xpose.msra.mxu0 0.0
    %3400 = vmatprep.subr.mxu0 0.0
    %3401 = vmatpush2.xpose.msra.mxu0 0.0
    %3402 = vmatprep.subr.mxu0 0.0
    %3403 = vmatpush2.xpose.msra.mxu0 0.0
    %3404 = vmatprep.subr.mxu0 0.0
    %3405 = vmatpush2.xpose.msra.mxu0 0.0
    %3406 = vmatprep.subr.mxu0 0.0
    %3407 = vmatpush2.xpose.msra.mxu0 0.0
    %3408 = vmatprep.subr.mxu0 0.0
    %3409 = vmatpush2.xpose.msra.mxu0 0.0
    %3410 = vmatprep.subr.mxu0 0.0
    %3411 = vmatpush2.xpose.msra.mxu0 0.0
    %3412 = vmatprep.subr.mxu0 0.0
    %3413 = vmatpush2.xpose.msra.mxu0 0.0
    %3414 = vmatprep.subr.mxu0 0.0
    %3415 = vmatpush2.xpose.msra.mxu0 0.0
    %3416 = vmatprep.subr.mxu0 0.0
    %3417 = vmatpush2.xpose.msra.mxu0 0.0
    %3418 = vmatprep.subr.mxu0 0.0
    %3419 = vmatpush2.xpose.msra.mxu0 0.0
    %3420 = vmatprep.mubr.f32.mxu0 0.0
    %3421 = vmatmul.mubr.f32.gmra.mxu0 %v3352
    %v3422 = vpop.f32.mrf.mxu0
    %v3423 = vadd.f32 0.0, %v3422
    %v3424 = vpop.f32.mrf.mxu0
    %3425 = vdwg.mxu0
    %3427 = vrot.lane.b32.xlu0 %v2950, 120
    %v3428 = vpop.permute.xlu0 %3427
    %v3430 = vsel %vm711, %v3033, 0
    %v3432 = vsel %vm711, %v3428, 0
    %3434 = vmatprep.subr.mxu0 0.0
    %3435 = vmatpush1.xpose.msra.mxu0 0.0
    %3436 = vmatprep.subr.mxu0 0.0
    %3437 = vmatpush1.xpose.msra.mxu0 0.0
    %3438 = vmatprep.subr.mxu0 0.0
    %3439 = vmatpush1.xpose.msra.mxu0 0.0
    %3440 = vmatprep.subr.mxu0 0.0
    %3441 = vmatpush1.xpose.msra.mxu0 0.0
    %3442 = vmatprep.subr.mxu0 0.0
    %3443 = vmatpush1.xpose.msra.mxu0 0.0
    %3444 = vmatprep.subr.mxu0 0.0
    %3445 = vmatpush1.xpose.msra.mxu0 0.0
    %3446 = vmatprep.subr.mxu0 0.0
    %3447 = vmatpush1.xpose.msra.mxu0 0.0
    %3448 = vmatprep.subr.mxu0 0.0
    %3449 = vmatpush1.xpose.msra.mxu0 0.0
    %3450 = vmatprep.subr.mxu0 0.0
    %3451 = vmatpush1.xpose.msra.mxu0 0.0
    %3452 = vmatprep.subr.mxu0 0.0
    %3453 = vmatpush1.xpose.msra.mxu0 0.0
    %3454 = vmatprep.subr.mxu0 0.0
    %3455 = vmatpush1.xpose.msra.mxu0 0.0
    %3456 = vmatprep.subr.mxu0 0.0
    %3457 = vmatpush1.xpose.msra.mxu0 0.0
    %3458 = vmatprep.subr.mxu0 0.0
    %3459 = vmatpush1.xpose.msra.mxu0 0.0
    %3460 = vmatprep.subr.mxu0 0.0
    %3461 = vmatpush1.xpose.msra.mxu0 0.0
    %3462 = vmatprep.subr.mxu0 0.0
    %3463 = vmatpush1.xpose.msra.mxu0 0.0
    %3464 = vmatprep.subr.mxu0 0.0
    %3465 = vmatpush1.xpose.msra.mxu0 %v3432
    %3466 = vmatprep.subr.mxu0 0.0
    %3467 = vmatpush2.xpose.msra.mxu0 0.0
    %3468 = vmatprep.subr.mxu0 0.0
    %3469 = vmatpush2.xpose.msra.mxu0 0.0
    %3470 = vmatprep.subr.mxu0 0.0
    %3471 = vmatpush2.xpose.msra.mxu0 0.0
    %3472 = vmatprep.subr.mxu0 0.0
    %3473 = vmatpush2.xpose.msra.mxu0 0.0
    %3474 = vmatprep.subr.mxu0 0.0
    %3475 = vmatpush2.xpose.msra.mxu0 0.0
    %3476 = vmatprep.subr.mxu0 0.0
    %3477 = vmatpush2.xpose.msra.mxu0 0.0
    %3478 = vmatprep.subr.mxu0 0.0
    %3479 = vmatpush2.xpose.msra.mxu0 0.0
    %3480 = vmatprep.subr.mxu0 0.0
    %3481 = vmatpush2.xpose.msra.mxu0 0.0
    %3482 = vmatprep.subr.mxu0 0.0
    %3483 = vmatpush2.xpose.msra.mxu0 0.0
    %3484 = vmatprep.subr.mxu0 0.0
    %3485 = vmatpush2.xpose.msra.mxu0 0.0
    %3486 = vmatprep.subr.mxu0 0.0
    %3487 = vmatpush2.xpose.msra.mxu0 0.0
    %3488 = vmatprep.subr.mxu0 0.0
    %3489 = vmatpush2.xpose.msra.mxu0 0.0
    %3490 = vmatprep.subr.mxu0 0.0
    %3491 = vmatpush2.xpose.msra.mxu0 0.0
    %3492 = vmatprep.subr.mxu0 0.0
    %3493 = vmatpush2.xpose.msra.mxu0 0.0
    %3494 = vmatprep.subr.mxu0 0.0
    %3495 = vmatpush2.xpose.msra.mxu0 0.0
    %3496 = vmatprep.subr.mxu0 0.0
    %3497 = vmatpush2.xpose.msra.mxu0 0.0
    %3498 = vmatprep.mubr.f32.mxu0 0.0
    %3499 = vmatmul.mubr.f32.gmra.mxu0 %v3430
    %v3500 = vpop.f32.mrf.mxu0
    %v3501 = vadd.f32 0.0, %v3500
    %v3502 = vpop.f32.mrf.mxu0
    %3503 = vdwg.mxu0
    %3505 = vrot.lane.b32.xlu0 %v3020, 120
    %v3506 = vpop.permute.xlu0 %3505
    %v3508 = vsel %vm711, %v3034, 0
    %v3510 = vsel %vm711, %v3506, 0
    %3512 = vmatprep.subr.mxu0 0.0
    %3513 = vmatpush1.xpose.msra.mxu0 0.0
    %3514 = vmatprep.subr.mxu0 0.0
    %3515 = vmatpush1.xpose.msra.mxu0 0.0
    %3516 = vmatprep.subr.mxu0 0.0
    %3517 = vmatpush1.xpose.msra.mxu0 0.0
    %3518 = vmatprep.subr.mxu0 0.0
    %3519 = vmatpush1.xpose.msra.mxu0 0.0
    %3520 = vmatprep.subr.mxu0 0.0
    %3521 = vmatpush1.xpose.msra.mxu0 0.0
    %3522 = vmatprep.subr.mxu0 0.0
    %3523 = vmatpush1.xpose.msra.mxu0 0.0
    %3524 = vmatprep.subr.mxu0 0.0
    %3525 = vmatpush1.xpose.msra.mxu0 0.0
    %3526 = vmatprep.subr.mxu0 0.0
    %3527 = vmatpush1.xpose.msra.mxu0 0.0
    %3528 = vmatprep.subr.mxu0 0.0
    %3529 = vmatpush1.xpose.msra.mxu0 0.0
    %3530 = vmatprep.subr.mxu0 0.0
    %3531 = vmatpush1.xpose.msra.mxu0 0.0
    %3532 = vmatprep.subr.mxu0 0.0
    %3533 = vmatpush1.xpose.msra.mxu0 0.0
    %3534 = vmatprep.subr.mxu0 0.0
    %3535 = vmatpush1.xpose.msra.mxu0 0.0
    %3536 = vmatprep.subr.mxu0 0.0
    %3537 = vmatpush1.xpose.msra.mxu0 0.0
    %3538 = vmatprep.subr.mxu0 0.0
    %3539 = vmatpush1.xpose.msra.mxu0 0.0
    %3540 = vmatprep.subr.mxu0 0.0
    %3541 = vmatpush1.xpose.msra.mxu0 0.0
    %3542 = vmatprep.subr.mxu0 0.0
    %3543 = vmatpush1.xpose.msra.mxu0 %v3510
    %3544 = vmatprep.subr.mxu0 0.0
    %3545 = vmatpush2.xpose.msra.mxu0 0.0
    %3546 = vmatprep.subr.mxu0 0.0
    %3547 = vmatpush2.xpose.msra.mxu0 0.0
    %3548 = vmatprep.subr.mxu0 0.0
    %3549 = vmatpush2.xpose.msra.mxu0 0.0
    %3550 = vmatprep.subr.mxu0 0.0
    %3551 = vmatpush2.xpose.msra.mxu0 0.0
    %3552 = vmatprep.subr.mxu0 0.0
    %3553 = vmatpush2.xpose.msra.mxu0 0.0
    %3554 = vmatprep.subr.mxu0 0.0
    %3555 = vmatpush2.xpose.msra.mxu0 0.0
    %3556 = vmatprep.subr.mxu0 0.0
    %3557 = vmatpush2.xpose.msra.mxu0 0.0
    %3558 = vmatprep.subr.mxu0 0.0
    %3559 = vmatpush2.xpose.msra.mxu0 0.0
    %3560 = vmatprep.subr.mxu0 0.0
    %3561 = vmatpush2.xpose.msra.mxu0 0.0
    %3562 = vmatprep.subr.mxu0 0.0
    %3563 = vmatpush2.xpose.msra.mxu0 0.0
    %3564 = vmatprep.subr.mxu0 0.0
    %3565 = vmatpush2.xpose.msra.mxu0 0.0
    %3566 = vmatprep.subr.mxu0 0.0
    %3567 = vmatpush2.xpose.msra.mxu0 0.0
    %3568 = vmatprep.subr.mxu0 0.0
    %3569 = vmatpush2.xpose.msra.mxu0 0.0
    %3570 = vmatprep.subr.mxu0 0.0
    %3571 = vmatpush2.xpose.msra.mxu0 0.0
    %3572 = vmatprep.subr.mxu0 0.0
    %3573 = vmatpush2.xpose.msra.mxu0 0.0
    %3574 = vmatprep.subr.mxu0 0.0
    %3575 = vmatpush2.xpose.msra.mxu0 0.0
    %3576 = vmatprep.mubr.f32.mxu0 0.0
    %3577 = vmatmul.mubr.f32.gmra.mxu0 %v3508
    %v3578 = vpop.f32.mrf.mxu0
    %v3579 = vadd.f32 0.0, %v3578
    %v3580 = vpop.f32.mrf.mxu0
    %3581 = vdwg.mxu0
    %3583 = vrot.lane.b32.xlu0 %v3025, 120
    %v3584 = vpop.permute.xlu0 %3583
    %v3586 = vsel %vm711, %v3035, 0
    %v3588 = vsel %vm711, %v3584, 0
    %3590 = vmatprep.subr.mxu0 0.0
    %3591 = vmatpush1.xpose.msra.mxu0 0.0
    %3592 = vmatprep.subr.mxu0 0.0
    %3593 = vmatpush1.xpose.msra.mxu0 0.0
    %3594 = vmatprep.subr.mxu0 0.0
    %3595 = vmatpush1.xpose.msra.mxu0 0.0
    %3596 = vmatprep.subr.mxu0 0.0
    %3597 = vmatpush1.xpose.msra.mxu0 0.0
    %3598 = vmatprep.subr.mxu0 0.0
    %3599 = vmatpush1.xpose.msra.mxu0 0.0
    %3600 = vmatprep.subr.mxu0 0.0
    %3601 = vmatpush1.xpose.msra.mxu0 0.0
    %3602 = vmatprep.subr.mxu0 0.0
    %3603 = vmatpush1.xpose.msra.mxu0 0.0
    %3604 = vmatprep.subr.mxu0 0.0
    %3605 = vmatpush1.xpose.msra.mxu0 0.0
    %3606 = vmatprep.subr.mxu0 0.0
    %3607 = vmatpush1.xpose.msra.mxu0 0.0
    %3608 = vmatprep.subr.mxu0 0.0
    %3609 = vmatpush1.xpose.msra.mxu0 0.0
    %3610 = vmatprep.subr.mxu0 0.0
    %3611 = vmatpush1.xpose.msra.mxu0 0.0
    %3612 = vmatprep.subr.mxu0 0.0
    %3613 = vmatpush1.xpose.msra.mxu0 0.0
    %3614 = vmatprep.subr.mxu0 0.0
    %3615 = vmatpush1.xpose.msra.mxu0 0.0
    %3616 = vmatprep.subr.mxu0 0.0
    %3617 = vmatpush1.xpose.msra.mxu0 0.0
    %3618 = vmatprep.subr.mxu0 0.0
    %3619 = vmatpush1.xpose.msra.mxu0 0.0
    %3620 = vmatprep.subr.mxu0 0.0
    %3621 = vmatpush1.xpose.msra.mxu0 %v3588
    %3622 = vmatprep.subr.mxu0 0.0
    %3623 = vmatpush2.xpose.msra.mxu0 0.0
    %3624 = vmatprep.subr.mxu0 0.0
    %3625 = vmatpush2.xpose.msra.mxu0 0.0
    %3626 = vmatprep.subr.mxu0 0.0
    %3627 = vmatpush2.xpose.msra.mxu0 0.0
    %3628 = vmatprep.subr.mxu0 0.0
    %3629 = vmatpush2.xpose.msra.mxu0 0.0
    %3630 = vmatprep.subr.mxu0 0.0
    %3631 = vmatpush2.xpose.msra.mxu0 0.0
    %3632 = vmatprep.subr.mxu0 0.0
    %3633 = vmatpush2.xpose.msra.mxu0 0.0
    %3634 = vmatprep.subr.mxu0 0.0
    %3635 = vmatpush2.xpose.msra.mxu0 0.0
    %3636 = vmatprep.subr.mxu0 0.0
    %3637 = vmatpush2.xpose.msra.mxu0 0.0
    %3638 = vmatprep.subr.mxu0 0.0
    %3639 = vmatpush2.xpose.msra.mxu0 0.0
    %3640 = vmatprep.subr.mxu0 0.0
    %3641 = vmatpush2.xpose.msra.mxu0 0.0
    %3642 = vmatprep.subr.mxu0 0.0
    %3643 = vmatpush2.xpose.msra.mxu0 0.0
    %3644 = vmatprep.subr.mxu0 0.0
    %3645 = vmatpush2.xpose.msra.mxu0 0.0
    %3646 = vmatprep.subr.mxu0 0.0
    %3647 = vmatpush2.xpose.msra.mxu0 0.0
    %3648 = vmatprep.subr.mxu0 0.0
    %3649 = vmatpush2.xpose.msra.mxu0 0.0
    %3650 = vmatprep.subr.mxu0 0.0
    %3651 = vmatpush2.xpose.msra.mxu0 0.0
    %3652 = vmatprep.subr.mxu0 0.0
    %3653 = vmatpush2.xpose.msra.mxu0 0.0
    %3654 = vmatprep.mubr.f32.mxu0 0.0
    %3655 = vmatmul.mubr.f32.gmra.mxu0 %v3586
    %v3656 = vpop.f32.mrf.mxu0
    %v3657 = vadd.f32 0.0, %v3656
    %v3658 = vpop.f32.mrf.mxu0
    %3659 = vdwg.mxu0
    %v3660 = vsel %vm1334, %v3111, -1e+30
    %v3661 = vsel %vm1334, %v3189, -1e+30
    %v3662 = vsel %vm1334, %v3267, -1e+30
    %v3663 = vsel %vm1334, %v3345, -1e+30
    %v3664 = vsel %vm1334, %v3423, -1e+30
    %v3665 = vsel %vm1334, %v3501, -1e+30
    %v3666 = vsel %vm1334, %v3579, -1e+30
    %v3667 = vsel %vm1334, %v3657, -1e+30
    %v3668 = vsel %vm711, %v3660, -inf
    %3669 = vmax.xlane.f32.xlu0 %v3668
    %v3670 = vpop.xlane.xlu0 %3669
    %v3671 = vsel %vm711, %v3661, -inf
    %3672 = vmax.xlane.f32.xlu0 %v3671
    %v3673 = vpop.xlane.xlu0 %3672
    %v3674 = vsel %vm711, %v3662, -inf
    %3675 = vmax.xlane.f32.xlu0 %v3674
    %v3676 = vpop.xlane.xlu0 %3675
    %v3677 = vsel %vm711, %v3663, -inf
    %3678 = vmax.xlane.f32.xlu0 %v3677
    %v3679 = vpop.xlane.xlu0 %3678
    %v3680 = vsel %vm711, %v3664, -inf
    %3681 = vmax.xlane.f32.xlu0 %v3680
    %v3682 = vpop.xlane.xlu0 %3681
    %v3683 = vsel %vm711, %v3665, -inf
    %3684 = vmax.xlane.f32.xlu0 %v3683
    %v3685 = vpop.xlane.xlu0 %3684
    %v3686 = vsel %vm711, %v3666, -inf
    %3687 = vmax.xlane.f32.xlu0 %v3686
    %v3688 = vpop.xlane.xlu0 %3687
    %v3689 = vsel %vm711, %v3667, -inf
    %3690 = vmax.xlane.f32.xlu0 %v3689
    %v3691 = vpop.xlane.xlu0 %3690
    %v3692 = vsub.f32 %v3660, %v3670
    %v3693 = vsub.f32 %v3661, %v3673
    %v3694 = vsub.f32 %v3662, %v3676
    %v3695 = vsub.f32 %v3663, %v3679
    %v3696 = vsub.f32 %v3664, %v3682
    %v3697 = vsub.f32 %v3665, %v3685
    %v3698 = vsub.f32 %v3666, %v3688
    %v3699 = vsub.f32 %v3667, %v3691
    %v3700 = vmul.f32 %v3692, 1.442695
    %v3701 = vpow.pop %v3700
    %v3702 = vmul.f32 %v3693, 1.442695
    %v3703 = vpow.pop %v3702
    %v3704 = vmul.f32 %v3694, 1.442695
    %v3705 = vpow.pop %v3704
    %v3706 = vmul.f32 %v3695, 1.442695
    %v3707 = vpow.pop %v3706
    %v3708 = vmul.f32 %v3696, 1.442695
    %v3709 = vpow.pop %v3708
    %v3710 = vmul.f32 %v3697, 1.442695
    %v3711 = vpow.pop %v3710
    %v3712 = vmul.f32 %v3698, 1.442695
    %v3713 = vpow.pop %v3712
    %v3714 = vmul.f32 %v3699, 1.442695
    %v3715 = vpow.pop %v3714
    %v3716 = vsel %vm711, %v3701, 0.0
    %3717 = vadd.xlane.f32.xlu0 %v3716
    %v3718 = vpop.xlane.xlu0 %3717
    %v3719 = vsel %vm711, %v3703, 0.0
    %3720 = vadd.xlane.f32.xlu0 %v3719
    %v3721 = vpop.xlane.xlu0 %3720
    %v3722 = vsel %vm711, %v3705, 0.0
    %3723 = vadd.xlane.f32.xlu0 %v3722
    %v3724 = vpop.xlane.xlu0 %3723
    %v3725 = vsel %vm711, %v3707, 0.0
    %3726 = vadd.xlane.f32.xlu0 %v3725
    %v3727 = vpop.xlane.xlu0 %3726
    %v3728 = vsel %vm711, %v3709, 0.0
    %3729 = vadd.xlane.f32.xlu0 %v3728
    %v3730 = vpop.xlane.xlu0 %3729
    %v3731 = vsel %vm711, %v3711, 0.0
    %3732 = vadd.xlane.f32.xlu0 %v3731
    %v3733 = vpop.xlane.xlu0 %3732
    %v3734 = vsel %vm711, %v3713, 0.0
    %3735 = vadd.xlane.f32.xlu0 %v3734
    %v3736 = vpop.xlane.xlu0 %3735
    %v3737 = vsel %vm711, %v3715, 0.0
    %3738 = vadd.xlane.f32.xlu0 %v3737
    %v3739 = vpop.xlane.xlu0 %3738
    %v3740 = vrcp.pop %v3718
    %v3741 = vrcp.pop %v3721
    %v3742 = vrcp.pop %v3724
    %v3743 = vrcp.pop %v3727
    %v3744 = vrcp.pop %v3730
    %v3745 = vrcp.pop %v3733
    %v3746 = vrcp.pop %v3736
    %v3747 = vrcp.pop %v3739
    %v3748 = vmul.f32 %v3701, %v3740
    %v3749 = vmul.f32 %v3703, %v3741
    %v3750 = vmul.f32 %v3705, %v3742
    %v3751 = vmul.f32 %v3707, %v3743
    %v3752 = vmul.f32 %v3709, %v3744
    %v3753 = vmul.f32 %v3711, %v3745
    %v3754 = vmul.f32 %v3713, %v3746
    %v3755 = vmul.f32 %v3715, %v3747
    %3756 = vrot.lane.b32.xlu0 %v2795, 112
    %v3757 = vpop.permute.xlu0 %3756
    %v3760 = vsel %vm711, %v3748, 0
    %3762 = vmatprep.subr.mxu0 0.0
    %3763 = vmatpush1.msra.mxu0 0.0
    %3764 = vmatprep.subr.mxu0 0.0
    %3765 = vmatpush1.msra.mxu0 0.0
    %3766 = vmatprep.subr.mxu0 0.0
    %3767 = vmatpush1.msra.mxu0 0.0
    %3768 = vmatprep.subr.mxu0 0.0
    %3769 = vmatpush1.msra.mxu0 0.0
    %3770 = vmatprep.subr.mxu0 0.0
    %3771 = vmatpush1.msra.mxu0 0.0
    %3772 = vmatprep.subr.mxu0 0.0
    %3773 = vmatpush1.msra.mxu0 0.0
    %3774 = vmatprep.subr.mxu0 0.0
    %3775 = vmatpush1.msra.mxu0 0.0
    %3776 = vmatprep.subr.mxu0 0.0
    %3777 = vmatpush1.msra.mxu0 0.0
    %3778 = vmatprep.subr.mxu0 0.0
    %3779 = vmatpush1.msra.mxu0 0.0
    %3780 = vmatprep.subr.mxu0 0.0
    %3781 = vmatpush1.msra.mxu0 0.0
    %3782 = vmatprep.subr.mxu0 0.0
    %3783 = vmatpush1.msra.mxu0 0.0
    %3784 = vmatprep.subr.mxu0 0.0
    %3785 = vmatpush1.msra.mxu0 0.0
    %3786 = vmatprep.subr.mxu0 0.0
    %3787 = vmatpush1.msra.mxu0 0.0
    %3788 = vmatprep.subr.mxu0 0.0
    %3789 = vmatpush1.msra.mxu0 0.0
    %3790 = vmatprep.subr.mxu0 0.0
    %3791 = vmatpush1.msra.mxu0 0.0
    %3792 = vmatprep.subr.mxu0 0.0
    %3793 = vmatpush1.msra.mxu0 %v3757
    %3794 = vmatprep.subr.mxu0 0.0
    %3795 = vmatpush2.msra.mxu0 0.0
    %3796 = vmatprep.subr.mxu0 0.0
    %3797 = vmatpush2.msra.mxu0 0.0
    %3798 = vmatprep.subr.mxu0 0.0
    %3799 = vmatpush2.msra.mxu0 0.0
    %3800 = vmatprep.subr.mxu0 0.0
    %3801 = vmatpush2.msra.mxu0 0.0
    %3802 = vmatprep.subr.mxu0 0.0
    %3803 = vmatpush2.msra.mxu0 0.0
    %3804 = vmatprep.subr.mxu0 0.0
    %3805 = vmatpush2.msra.mxu0 0.0
    %3806 = vmatprep.subr.mxu0 0.0
    %3807 = vmatpush2.msra.mxu0 0.0
    %3808 = vmatprep.subr.mxu0 0.0
    %3809 = vmatpush2.msra.mxu0 0.0
    %3810 = vmatprep.subr.mxu0 0.0
    %3811 = vmatpush2.msra.mxu0 0.0
    %3812 = vmatprep.subr.mxu0 0.0
    %3813 = vmatpush2.msra.mxu0 0.0
    %3814 = vmatprep.subr.mxu0 0.0
    %3815 = vmatpush2.msra.mxu0 0.0
    %3816 = vmatprep.subr.mxu0 0.0
    %3817 = vmatpush2.msra.mxu0 0.0
    %3818 = vmatprep.subr.mxu0 0.0
    %3819 = vmatpush2.msra.mxu0 0.0
    %3820 = vmatprep.subr.mxu0 0.0
    %3821 = vmatpush2.msra.mxu0 0.0
    %3822 = vmatprep.subr.mxu0 0.0
    %3823 = vmatpush2.msra.mxu0 0.0
    %3824 = vmatprep.subr.mxu0 0.0
    %3825 = vmatpush2.msra.mxu0 0.0
    %3826 = vmatprep.mubr.f32.mxu0 0.0
    %3827 = vmatmul.mubr.f32.gmra.mxu0 %v3760
    %v3828 = vpop.f32.mrf.mxu0
    %v3829 = vadd.f32 0.0, %v3828
    %v3830 = vpop.f32.mrf.mxu0
    %3831 = vdwg.mxu0
    %3832 = vrot.lane.b32.xlu0 %v2800, 112
    %v3833 = vpop.permute.xlu0 %3832
    %v3836 = vsel %vm711, %v3749, 0
    %3838 = vmatprep.subr.mxu0 0.0
    %3839 = vmatpush1.msra.mxu0 0.0
    %3840 = vmatprep.subr.mxu0 0.0
    %3841 = vmatpush1.msra.mxu0 0.0
    %3842 = vmatprep.subr.mxu0 0.0
    %3843 = vmatpush1.msra.mxu0 0.0
    %3844 = vmatprep.subr.mxu0 0.0
    %3845 = vmatpush1.msra.mxu0 0.0
    %3846 = vmatprep.subr.mxu0 0.0
    %3847 = vmatpush1.msra.mxu0 0.0
    %3848 = vmatprep.subr.mxu0 0.0
    %3849 = vmatpush1.msra.mxu0 0.0
    %3850 = vmatprep.subr.mxu0 0.0
    %3851 = vmatpush1.msra.mxu0 0.0
    %3852 = vmatprep.subr.mxu0 0.0
    %3853 = vmatpush1.msra.mxu0 0.0
    %3854 = vmatprep.subr.mxu0 0.0
    %3855 = vmatpush1.msra.mxu0 0.0
    %3856 = vmatprep.subr.mxu0 0.0
    %3857 = vmatpush1.msra.mxu0 0.0
    %3858 = vmatprep.subr.mxu0 0.0
    %3859 = vmatpush1.msra.mxu0 0.0
    %3860 = vmatprep.subr.mxu0 0.0
    %3861 = vmatpush1.msra.mxu0 0.0
    %3862 = vmatprep.subr.mxu0 0.0
    %3863 = vmatpush1.msra.mxu0 0.0
    %3864 = vmatprep.subr.mxu0 0.0
    %3865 = vmatpush1.msra.mxu0 0.0
    %3866 = vmatprep.subr.mxu0 0.0
    %3867 = vmatpush1.msra.mxu0 0.0
    %3868 = vmatprep.subr.mxu0 0.0
    %3869 = vmatpush1.msra.mxu0 %v3833
    %3870 = vmatprep.subr.mxu0 0.0
    %3871 = vmatpush2.msra.mxu0 0.0
    %3872 = vmatprep.subr.mxu0 0.0
    %3873 = vmatpush2.msra.mxu0 0.0
    %3874 = vmatprep.subr.mxu0 0.0
    %3875 = vmatpush2.msra.mxu0 0.0
    %3876 = vmatprep.subr.mxu0 0.0
    %3877 = vmatpush2.msra.mxu0 0.0
    %3878 = vmatprep.subr.mxu0 0.0
    %3879 = vmatpush2.msra.mxu0 0.0
    %3880 = vmatprep.subr.mxu0 0.0
    %3881 = vmatpush2.msra.mxu0 0.0
    %3882 = vmatprep.subr.mxu0 0.0
    %3883 = vmatpush2.msra.mxu0 0.0
    %3884 = vmatprep.subr.mxu0 0.0
    %3885 = vmatpush2.msra.mxu0 0.0
    %3886 = vmatprep.subr.mxu0 0.0
    %3887 = vmatpush2.msra.mxu0 0.0
    %3888 = vmatprep.subr.mxu0 0.0
    %3889 = vmatpush2.msra.mxu0 0.0
    %3890 = vmatprep.subr.mxu0 0.0
    %3891 = vmatpush2.msra.mxu0 0.0
    %3892 = vmatprep.subr.mxu0 0.0
    %3893 = vmatpush2.msra.mxu0 0.0
    %3894 = vmatprep.subr.mxu0 0.0
    %3895 = vmatpush2.msra.mxu0 0.0
    %3896 = vmatprep.subr.mxu0 0.0
    %3897 = vmatpush2.msra.mxu0 0.0
    %3898 = vmatprep.subr.mxu0 0.0
    %3899 = vmatpush2.msra.mxu0 0.0
    %3900 = vmatprep.subr.mxu0 0.0
    %3901 = vmatpush2.msra.mxu0 0.0
    %3902 = vmatprep.mubr.f32.mxu0 0.0
    %3903 = vmatmul.mubr.f32.gmra.mxu0 %v3836
    %v3904 = vpop.f32.mrf.mxu0
    %v3905 = vadd.f32 0.0, %v3904
    %v3906 = vpop.f32.mrf.mxu0
    %3907 = vdwg.mxu0
    %3908 = vrot.lane.b32.xlu0 %v2870, 112
    %v3909 = vpop.permute.xlu0 %3908
    %v3912 = vsel %vm711, %v3750, 0
    %3914 = vmatprep.subr.mxu0 0.0
    %3915 = vmatpush1.msra.mxu0 0.0
    %3916 = vmatprep.subr.mxu0 0.0
    %3917 = vmatpush1.msra.mxu0 0.0
    %3918 = vmatprep.subr.mxu0 0.0
    %3919 = vmatpush1.msra.mxu0 0.0
    %3920 = vmatprep.subr.mxu0 0.0
    %3921 = vmatpush1.msra.mxu0 0.0
    %3922 = vmatprep.subr.mxu0 0.0
    %3923 = vmatpush1.msra.mxu0 0.0
    %3924 = vmatprep.subr.mxu0 0.0
    %3925 = vmatpush1.msra.mxu0 0.0
    %3926 = vmatprep.subr.mxu0 0.0
    %3927 = vmatpush1.msra.mxu0 0.0
    %3928 = vmatprep.subr.mxu0 0.0
    %3929 = vmatpush1.msra.mxu0 0.0
    %3930 = vmatprep.subr.mxu0 0.0
    %3931 = vmatpush1.msra.mxu0 0.0
    %3932 = vmatprep.subr.mxu0 0.0
    %3933 = vmatpush1.msra.mxu0 0.0
    %3934 = vmatprep.subr.mxu0 0.0
    %3935 = vmatpush1.msra.mxu0 0.0
    %3936 = vmatprep.subr.mxu0 0.0
    %3937 = vmatpush1.msra.mxu0 0.0
    %3938 = vmatprep.subr.mxu0 0.0
    %3939 = vmatpush1.msra.mxu0 0.0
    %3940 = vmatprep.subr.mxu0 0.0
    %3941 = vmatpush1.msra.mxu0 0.0
    %3942 = vmatprep.subr.mxu0 0.0
    %3943 = vmatpush1.msra.mxu0 0.0
    %3944 = vmatprep.subr.mxu0 0.0
    %3945 = vmatpush1.msra.mxu0 %v3909
    %3946 = vmatprep.subr.mxu0 0.0
    %3947 = vmatpush2.msra.mxu0 0.0
    %3948 = vmatprep.subr.mxu0 0.0
    %3949 = vmatpush2.msra.mxu0 0.0
    %3950 = vmatprep.subr.mxu0 0.0
    %3951 = vmatpush2.msra.mxu0 0.0
    %3952 = vmatprep.subr.mxu0 0.0
    %3953 = vmatpush2.msra.mxu0 0.0
    %3954 = vmatprep.subr.mxu0 0.0
    %3955 = vmatpush2.msra.mxu0 0.0
    %3956 = vmatprep.subr.mxu0 0.0
    %3957 = vmatpush2.msra.mxu0 0.0
    %3958 = vmatprep.subr.mxu0 0.0
    %3959 = vmatpush2.msra.mxu0 0.0
    %3960 = vmatprep.subr.mxu0 0.0
    %3961 = vmatpush2.msra.mxu0 0.0
    %3962 = vmatprep.subr.mxu0 0.0
    %3963 = vmatpush2.msra.mxu0 0.0
    %3964 = vmatprep.subr.mxu0 0.0
    %3965 = vmatpush2.msra.mxu0 0.0
    %3966 = vmatprep.subr.mxu0 0.0
    %3967 = vmatpush2.msra.mxu0 0.0
    %3968 = vmatprep.subr.mxu0 0.0
    %3969 = vmatpush2.msra.mxu0 0.0
    %3970 = vmatprep.subr.mxu0 0.0
    %3971 = vmatpush2.msra.mxu0 0.0
    %3972 = vmatprep.subr.mxu0 0.0
    %3973 = vmatpush2.msra.mxu0 0.0
    %3974 = vmatprep.subr.mxu0 0.0
    %3975 = vmatpush2.msra.mxu0 0.0
    %3976 = vmatprep.subr.mxu0 0.0
    %3977 = vmatpush2.msra.mxu0 0.0
    %3978 = vmatprep.mubr.f32.mxu0 0.0
    %3979 = vmatmul.mubr.f32.gmra.mxu0 %v3912
    %v3980 = vpop.f32.mrf.mxu0
    %v3981 = vadd.f32 0.0, %v3980
    %v3982 = vpop.f32.mrf.mxu0
    %3983 = vdwg.mxu0
    %3984 = vrot.lane.b32.xlu0 %v2875, 112
    %v3985 = vpop.permute.xlu0 %3984
    %v3988 = vsel %vm711, %v3751, 0
    %3990 = vmatprep.subr.mxu0 0.0
    %3991 = vmatpush1.msra.mxu0 0.0
    %3992 = vmatprep.subr.mxu0 0.0
    %3993 = vmatpush1.msra.mxu0 0.0
    %3994 = vmatprep.subr.mxu0 0.0
    %3995 = vmatpush1.msra.mxu0 0.0
    %3996 = vmatprep.subr.mxu0 0.0
    %3997 = vmatpush1.msra.mxu0 0.0
    %3998 = vmatprep.subr.mxu0 0.0
    %3999 = vmatpush1.msra.mxu0 0.0
    %4000 = vmatprep.subr.mxu0 0.0
    %4001 = vmatpush1.msra.mxu0 0.0
    %4002 = vmatprep.subr.mxu0 0.0
    %4003 = vmatpush1.msra.mxu0 0.0
    %4004 = vmatprep.subr.mxu0 0.0
    %4005 = vmatpush1.msra.mxu0 0.0
    %4006 = vmatprep.subr.mxu0 0.0
    %4007 = vmatpush1.msra.mxu0 0.0
    %4008 = vmatprep.subr.mxu0 0.0
    %4009 = vmatpush1.msra.mxu0 0.0
    %4010 = vmatprep.subr.mxu0 0.0
    %4011 = vmatpush1.msra.mxu0 0.0
    %4012 = vmatprep.subr.mxu0 0.0
    %4013 = vmatpush1.msra.mxu0 0.0
    %4014 = vmatprep.subr.mxu0 0.0
    %4015 = vmatpush1.msra.mxu0 0.0
    %4016 = vmatprep.subr.mxu0 0.0
    %4017 = vmatpush1.msra.mxu0 0.0
    %4018 = vmatprep.subr.mxu0 0.0
    %4019 = vmatpush1.msra.mxu0 0.0
    %4020 = vmatprep.subr.mxu0 0.0
    %4021 = vmatpush1.msra.mxu0 %v3985
    %4022 = vmatprep.subr.mxu0 0.0
    %4023 = vmatpush2.msra.mxu0 0.0
    %4024 = vmatprep.subr.mxu0 0.0
    %4025 = vmatpush2.msra.mxu0 0.0
    %4026 = vmatprep.subr.mxu0 0.0
    %4027 = vmatpush2.msra.mxu0 0.0
    %4028 = vmatprep.subr.mxu0 0.0
    %4029 = vmatpush2.msra.mxu0 0.0
    %4030 = vmatprep.subr.mxu0 0.0
    %4031 = vmatpush2.msra.mxu0 0.0
    %4032 = vmatprep.subr.mxu0 0.0
    %4033 = vmatpush2.msra.mxu0 0.0
    %4034 = vmatprep.subr.mxu0 0.0
    %4035 = vmatpush2.msra.mxu0 0.0
    %4036 = vmatprep.subr.mxu0 0.0
    %4037 = vmatpush2.msra.mxu0 0.0
    %4038 = vmatprep.subr.mxu0 0.0
    %4039 = vmatpush2.msra.mxu0 0.0
    %4040 = vmatprep.subr.mxu0 0.0
    %4041 = vmatpush2.msra.mxu0 0.0
    %4042 = vmatprep.subr.mxu0 0.0
    %4043 = vmatpush2.msra.mxu0 0.0
    %4044 = vmatprep.subr.mxu0 0.0
    %4045 = vmatpush2.msra.mxu0 0.0
    %4046 = vmatprep.subr.mxu0 0.0
    %4047 = vmatpush2.msra.mxu0 0.0
    %4048 = vmatprep.subr.mxu0 0.0
    %4049 = vmatpush2.msra.mxu0 0.0
    %4050 = vmatprep.subr.mxu0 0.0
    %4051 = vmatpush2.msra.mxu0 0.0
    %4052 = vmatprep.subr.mxu0 0.0
    %4053 = vmatpush2.msra.mxu0 0.0
    %4054 = vmatprep.mubr.f32.mxu0 0.0
    %4055 = vmatmul.mubr.f32.gmra.mxu0 %v3988
    %v4056 = vpop.f32.mrf.mxu0
    %v4057 = vadd.f32 0.0, %v4056
    %v4058 = vpop.f32.mrf.mxu0
    %4059 = vdwg.mxu0
    %4060 = vrot.lane.b32.xlu0 %v2945, 112
    %v4061 = vpop.permute.xlu0 %4060
    %v4064 = vsel %vm711, %v3752, 0
    %4066 = vmatprep.subr.mxu0 0.0
    %4067 = vmatpush1.msra.mxu0 0.0
    %4068 = vmatprep.subr.mxu0 0.0
    %4069 = vmatpush1.msra.mxu0 0.0
    %4070 = vmatprep.subr.mxu0 0.0
    %4071 = vmatpush1.msra.mxu0 0.0
    %4072 = vmatprep.subr.mxu0 0.0
    %4073 = vmatpush1.msra.mxu0 0.0
    %4074 = vmatprep.subr.mxu0 0.0
    %4075 = vmatpush1.msra.mxu0 0.0
    %4076 = vmatprep.subr.mxu0 0.0
    %4077 = vmatpush1.msra.mxu0 0.0
    %4078 = vmatprep.subr.mxu0 0.0
    %4079 = vmatpush1.msra.mxu0 0.0
    %4080 = vmatprep.subr.mxu0 0.0
    %4081 = vmatpush1.msra.mxu0 0.0
    %4082 = vmatprep.subr.mxu0 0.0
    %4083 = vmatpush1.msra.mxu0 0.0
    %4084 = vmatprep.subr.mxu0 0.0
    %4085 = vmatpush1.msra.mxu0 0.0
    %4086 = vmatprep.subr.mxu0 0.0
    %4087 = vmatpush1.msra.mxu0 0.0
    %4088 = vmatprep.subr.mxu0 0.0
    %4089 = vmatpush1.msra.mxu0 0.0
    %4090 = vmatprep.subr.mxu0 0.0
    %4091 = vmatpush1.msra.mxu0 0.0
    %4092 = vmatprep.subr.mxu0 0.0
    %4093 = vmatpush1.msra.mxu0 0.0
    %4094 = vmatprep.subr.mxu0 0.0
    %4095 = vmatpush1.msra.mxu0 0.0
    %4096 = vmatprep.subr.mxu0 0.0
    %4097 = vmatpush1.msra.mxu0 %v4061
    %4098 = vmatprep.subr.mxu0 0.0
    %4099 = vmatpush2.msra.mxu0 0.0
    %4100 = vmatprep.subr.mxu0 0.0
    %4101 = vmatpush2.msra.mxu0 0.0
    %4102 = vmatprep.subr.mxu0 0.0
    %4103 = vmatpush2.msra.mxu0 0.0
    %4104 = vmatprep.subr.mxu0 0.0
    %4105 = vmatpush2.msra.mxu0 0.0
    %4106 = vmatprep.subr.mxu0 0.0
    %4107 = vmatpush2.msra.mxu0 0.0
    %4108 = vmatprep.subr.mxu0 0.0
    %4109 = vmatpush2.msra.mxu0 0.0
    %4110 = vmatprep.subr.mxu0 0.0
    %4111 = vmatpush2.msra.mxu0 0.0
    %4112 = vmatprep.subr.mxu0 0.0
    %4113 = vmatpush2.msra.mxu0 0.0
    %4114 = vmatprep.subr.mxu0 0.0
    %4115 = vmatpush2.msra.mxu0 0.0
    %4116 = vmatprep.subr.mxu0 0.0
    %4117 = vmatpush2.msra.mxu0 0.0
    %4118 = vmatprep.subr.mxu0 0.0
    %4119 = vmatpush2.msra.mxu0 0.0
    %4120 = vmatprep.subr.mxu0 0.0
    %4121 = vmatpush2.msra.mxu0 0.0
    %4122 = vmatprep.subr.mxu0 0.0
    %4123 = vmatpush2.msra.mxu0 0.0
    %4124 = vmatprep.subr.mxu0 0.0
    %4125 = vmatpush2.msra.mxu0 0.0
    %4126 = vmatprep.subr.mxu0 0.0
    %4127 = vmatpush2.msra.mxu0 0.0
    %4128 = vmatprep.subr.mxu0 0.0
    %4129 = vmatpush2.msra.mxu0 0.0
    %4130 = vmatprep.mubr.f32.mxu0 0.0
    %4131 = vmatmul.mubr.f32.gmra.mxu0 %v4064
    %v4132 = vpop.f32.mrf.mxu0
    %v4133 = vadd.f32 0.0, %v4132
    %v4134 = vpop.f32.mrf.mxu0
    %4135 = vdwg.mxu0
    %4136 = vrot.lane.b32.xlu0 %v2950, 112
    %v4137 = vpop.permute.xlu0 %4136
    %v4140 = vsel %vm711, %v3753, 0
    %4142 = vmatprep.subr.mxu0 0.0
    %4143 = vmatpush1.msra.mxu0 0.0
    %4144 = vmatprep.subr.mxu0 0.0
    %4145 = vmatpush1.msra.mxu0 0.0
    %4146 = vmatprep.subr.mxu0 0.0
    %4147 = vmatpush1.msra.mxu0 0.0
    %4148 = vmatprep.subr.mxu0 0.0
    %4149 = vmatpush1.msra.mxu0 0.0
    %4150 = vmatprep.subr.mxu0 0.0
    %4151 = vmatpush1.msra.mxu0 0.0
    %4152 = vmatprep.subr.mxu0 0.0
    %4153 = vmatpush1.msra.mxu0 0.0
    %4154 = vmatprep.subr.mxu0 0.0
    %4155 = vmatpush1.msra.mxu0 0.0
    %4156 = vmatprep.subr.mxu0 0.0
    %4157 = vmatpush1.msra.mxu0 0.0
    %4158 = vmatprep.subr.mxu0 0.0
    %4159 = vmatpush1.msra.mxu0 0.0
    %4160 = vmatprep.subr.mxu0 0.0
    %4161 = vmatpush1.msra.mxu0 0.0
    %4162 = vmatprep.subr.mxu0 0.0
    %4163 = vmatpush1.msra.mxu0 0.0
    %4164 = vmatprep.subr.mxu0 0.0
    %4165 = vmatpush1.msra.mxu0 0.0
    %4166 = vmatprep.subr.mxu0 0.0
    %4167 = vmatpush1.msra.mxu0 0.0
    %4168 = vmatprep.subr.mxu0 0.0
    %4169 = vmatpush1.msra.mxu0 0.0
    %4170 = vmatprep.subr.mxu0 0.0
    %4171 = vmatpush1.msra.mxu0 0.0
    %4172 = vmatprep.subr.mxu0 0.0
    %4173 = vmatpush1.msra.mxu0 %v4137
    %4174 = vmatprep.subr.mxu0 0.0
    %4175 = vmatpush2.msra.mxu0 0.0
    %4176 = vmatprep.subr.mxu0 0.0
    %4177 = vmatpush2.msra.mxu0 0.0
    %4178 = vmatprep.subr.mxu0 0.0
    %4179 = vmatpush2.msra.mxu0 0.0
    %4180 = vmatprep.subr.mxu0 0.0
    %4181 = vmatpush2.msra.mxu0 0.0
    %4182 = vmatprep.subr.mxu0 0.0
    %4183 = vmatpush2.msra.mxu0 0.0
    %4184 = vmatprep.subr.mxu0 0.0
    %4185 = vmatpush2.msra.mxu0 0.0
    %4186 = vmatprep.subr.mxu0 0.0
    %4187 = vmatpush2.msra.mxu0 0.0
    %4188 = vmatprep.subr.mxu0 0.0
    %4189 = vmatpush2.msra.mxu0 0.0
    %4190 = vmatprep.subr.mxu0 0.0
    %4191 = vmatpush2.msra.mxu0 0.0
    %4192 = vmatprep.subr.mxu0 0.0
    %4193 = vmatpush2.msra.mxu0 0.0
    %4194 = vmatprep.subr.mxu0 0.0
    %4195 = vmatpush2.msra.mxu0 0.0
    %4196 = vmatprep.subr.mxu0 0.0
    %4197 = vmatpush2.msra.mxu0 0.0
    %4198 = vmatprep.subr.mxu0 0.0
    %4199 = vmatpush2.msra.mxu0 0.0
    %4200 = vmatprep.subr.mxu0 0.0
    %4201 = vmatpush2.msra.mxu0 0.0
    %4202 = vmatprep.subr.mxu0 0.0
    %4203 = vmatpush2.msra.mxu0 0.0
    %4204 = vmatprep.subr.mxu0 0.0
    %4205 = vmatpush2.msra.mxu0 0.0
    %4206 = vmatprep.mubr.f32.mxu0 0.0
    %4207 = vmatmul.mubr.f32.gmra.mxu0 %v4140
    %v4208 = vpop.f32.mrf.mxu0
    %v4209 = vadd.f32 0.0, %v4208
    %v4210 = vpop.f32.mrf.mxu0
    %4211 = vdwg.mxu0
    %4212 = vrot.lane.b32.xlu0 %v3020, 112
    %v4213 = vpop.permute.xlu0 %4212
    %v4216 = vsel %vm711, %v3754, 0
    %4218 = vmatprep.subr.mxu0 0.0
    %4219 = vmatpush1.msra.mxu0 0.0
    %4220 = vmatprep.subr.mxu0 0.0
    %4221 = vmatpush1.msra.mxu0 0.0
    %4222 = vmatprep.subr.mxu0 0.0
    %4223 = vmatpush1.msra.mxu0 0.0
    %4224 = vmatprep.subr.mxu0 0.0
    %4225 = vmatpush1.msra.mxu0 0.0
    %4226 = vmatprep.subr.mxu0 0.0
    %4227 = vmatpush1.msra.mxu0 0.0
    %4228 = vmatprep.subr.mxu0 0.0
    %4229 = vmatpush1.msra.mxu0 0.0
    %4230 = vmatprep.subr.mxu0 0.0
    %4231 = vmatpush1.msra.mxu0 0.0
    %4232 = vmatprep.subr.mxu0 0.0
    %4233 = vmatpush1.msra.mxu0 0.0
    %4234 = vmatprep.subr.mxu0 0.0
    %4235 = vmatpush1.msra.mxu0 0.0
    %4236 = vmatprep.subr.mxu0 0.0
    %4237 = vmatpush1.msra.mxu0 0.0
    %4238 = vmatprep.subr.mxu0 0.0
    %4239 = vmatpush1.msra.mxu0 0.0
    %4240 = vmatprep.subr.mxu0 0.0
    %4241 = vmatpush1.msra.mxu0 0.0
    %4242 = vmatprep.subr.mxu0 0.0
    %4243 = vmatpush1.msra.mxu0 0.0
    %4244 = vmatprep.subr.mxu0 0.0
    %4245 = vmatpush1.msra.mxu0 0.0
    %4246 = vmatprep.subr.mxu0 0.0
    %4247 = vmatpush1.msra.mxu0 0.0
    %4248 = vmatprep.subr.mxu0 0.0
    %4249 = vmatpush1.msra.mxu0 %v4213
    %4250 = vmatprep.subr.mxu0 0.0
    %4251 = vmatpush2.msra.mxu0 0.0
    %4252 = vmatprep.subr.mxu0 0.0
    %4253 = vmatpush2.msra.mxu0 0.0
    %4254 = vmatprep.subr.mxu0 0.0
    %4255 = vmatpush2.msra.mxu0 0.0
    %4256 = vmatprep.subr.mxu0 0.0
    %4257 = vmatpush2.msra.mxu0 0.0
    %4258 = vmatprep.subr.mxu0 0.0
    %4259 = vmatpush2.msra.mxu0 0.0
    %4260 = vmatprep.subr.mxu0 0.0
    %4261 = vmatpush2.msra.mxu0 0.0
    %4262 = vmatprep.subr.mxu0 0.0
    %4263 = vmatpush2.msra.mxu0 0.0
    %4264 = vmatprep.subr.mxu0 0.0
    %4265 = vmatpush2.msra.mxu0 0.0
    %4266 = vmatprep.subr.mxu0 0.0
    %4267 = vmatpush2.msra.mxu0 0.0
    %4268 = vmatprep.subr.mxu0 0.0
    %4269 = vmatpush2.msra.mxu0 0.0
    %4270 = vmatprep.subr.mxu0 0.0
    %4271 = vmatpush2.msra.mxu0 0.0
    %4272 = vmatprep.subr.mxu0 0.0
    %4273 = vmatpush2.msra.mxu0 0.0
    %4274 = vmatprep.subr.mxu0 0.0
    %4275 = vmatpush2.msra.mxu0 0.0
    %4276 = vmatprep.subr.mxu0 0.0
    %4277 = vmatpush2.msra.mxu0 0.0
    %4278 = vmatprep.subr.mxu0 0.0
    %4279 = vmatpush2.msra.mxu0 0.0
    %4280 = vmatprep.subr.mxu0 0.0
    %4281 = vmatpush2.msra.mxu0 0.0
    %4282 = vmatprep.mubr.f32.mxu0 0.0
    %4283 = vmatmul.mubr.f32.gmra.mxu0 %v4216
    %v4284 = vpop.f32.mrf.mxu0
    %v4285 = vadd.f32 0.0, %v4284
    %v4286 = vpop.f32.mrf.mxu0
    %4287 = vdwg.mxu0
    %4288 = vrot.lane.b32.xlu0 %v3025, 112
    %v4289 = vpop.permute.xlu0 %4288
    %v4292 = vsel %vm711, %v3755, 0
    %4294 = vmatprep.subr.mxu0 0.0
    %4295 = vmatpush1.msra.mxu0 0.0
    %4296 = vmatprep.subr.mxu0 0.0
    %4297 = vmatpush1.msra.mxu0 0.0
    %4298 = vmatprep.subr.mxu0 0.0
    %4299 = vmatpush1.msra.mxu0 0.0
    %4300 = vmatprep.subr.mxu0 0.0
    %4301 = vmatpush1.msra.mxu0 0.0
    %4302 = vmatprep.subr.mxu0 0.0
    %4303 = vmatpush1.msra.mxu0 0.0
    %4304 = vmatprep.subr.mxu0 0.0
    %4305 = vmatpush1.msra.mxu0 0.0
    %4306 = vmatprep.subr.mxu0 0.0
    %4307 = vmatpush1.msra.mxu0 0.0
    %4308 = vmatprep.subr.mxu0 0.0
    %4309 = vmatpush1.msra.mxu0 0.0
    %4310 = vmatprep.subr.mxu0 0.0
    %4311 = vmatpush1.msra.mxu0 0.0
    %4312 = vmatprep.subr.mxu0 0.0
    %4313 = vmatpush1.msra.mxu0 0.0
    %4314 = vmatprep.subr.mxu0 0.0
    %4315 = vmatpush1.msra.mxu0 0.0
    %4316 = vmatprep.subr.mxu0 0.0
    %4317 = vmatpush1.msra.mxu0 0.0
    %4318 = vmatprep.subr.mxu0 0.0
    %4319 = vmatpush1.msra.mxu0 0.0
    %4320 = vmatprep.subr.mxu0 0.0
    %4321 = vmatpush1.msra.mxu0 0.0
    %4322 = vmatprep.subr.mxu0 0.0
    %4323 = vmatpush1.msra.mxu0 0.0
    %4324 = vmatprep.subr.mxu0 0.0
    %4325 = vmatpush1.msra.mxu0 %v4289
    %4326 = vmatprep.subr.mxu0 0.0
    %4327 = vmatpush2.msra.mxu0 0.0
    %4328 = vmatprep.subr.mxu0 0.0
    %4329 = vmatpush2.msra.mxu0 0.0
    %4330 = vmatprep.subr.mxu0 0.0
    %4331 = vmatpush2.msra.mxu0 0.0
    %4332 = vmatprep.subr.mxu0 0.0
    %4333 = vmatpush2.msra.mxu0 0.0
    %4334 = vmatprep.subr.mxu0 0.0
    %4335 = vmatpush2.msra.mxu0 0.0
    %4336 = vmatprep.subr.mxu0 0.0
    %4337 = vmatpush2.msra.mxu0 0.0
    %4338 = vmatprep.subr.mxu0 0.0
    %4339 = vmatpush2.msra.mxu0 0.0
    %4340 = vmatprep.subr.mxu0 0.0
    %4341 = vmatpush2.msra.mxu0 0.0
    %4342 = vmatprep.subr.mxu0 0.0
    %4343 = vmatpush2.msra.mxu0 0.0
    %4344 = vmatprep.subr.mxu0 0.0
    %4345 = vmatpush2.msra.mxu0 0.0
    %4346 = vmatprep.subr.mxu0 0.0
    %4347 = vmatpush2.msra.mxu0 0.0
    %4348 = vmatprep.subr.mxu0 0.0
    %4349 = vmatpush2.msra.mxu0 0.0
    %4350 = vmatprep.subr.mxu0 0.0
    %4351 = vmatpush2.msra.mxu0 0.0
    %4352 = vmatprep.subr.mxu0 0.0
    %4353 = vmatpush2.msra.mxu0 0.0
    %4354 = vmatprep.subr.mxu0 0.0
    %4355 = vmatpush2.msra.mxu0 0.0
    %4356 = vmatprep.subr.mxu0 0.0
    %4357 = vmatpush2.msra.mxu0 0.0
    %4358 = vmatprep.mubr.f32.mxu0 0.0
    %4359 = vmatmul.mubr.f32.gmra.mxu0 %v4292
    %v4360 = vpop.f32.mrf.mxu0
    %v4361 = vadd.f32 0.0, %v4360
    %v4362 = vpop.f32.mrf.mxu0
    %4363 = vdwg.mxu0
    %v4365 = vsel %vm711, %v3829, 0
    %v4368 = vsel %vm711, %v3905, 0
    %4370 = vmatprep.subr.mxu0 0.0
    %4371 = vmatpush1.msra.mxu0 0.0
    %4372 = vmatprep.subr.mxu0 0.0
    %4373 = vmatpush1.msra.mxu0 0.0
    %4374 = vmatprep.subr.mxu0 0.0
    %4375 = vmatpush1.msra.mxu0 0.0
    %4376 = vmatprep.subr.mxu0 0.0
    %4377 = vmatpush1.msra.mxu0 0.0
    %4378 = vmatprep.subr.mxu0 0.0
    %4379 = vmatpush1.msra.mxu0 0.0
    %4380 = vmatprep.subr.mxu0 0.0
    %4381 = vmatpush1.msra.mxu0 0.0
    %4382 = vmatprep.subr.mxu0 0.0
    %4383 = vmatpush1.msra.mxu0 0.0
    %4384 = vmatprep.subr.mxu0 0.0
    %4385 = vmatpush1.msra.mxu0 0.0
    %4386 = vmatprep.subr.mxu0 0.0
    %4387 = vmatpush1.msra.mxu0 0.0
    %4388 = vmatprep.subr.mxu0 0.0
    %4389 = vmatpush1.msra.mxu0 0.0
    %4390 = vmatprep.subr.mxu0 0.0
    %4391 = vmatpush1.msra.mxu0 0.0
    %4392 = vmatprep.subr.mxu0 0.0
    %4393 = vmatpush1.msra.mxu0 0.0
    %4394 = vmatprep.subr.mxu0 0.0
    %4395 = vmatpush1.msra.mxu0 0.0
    %4396 = vmatprep.subr.mxu0 0.0
    %4397 = vmatpush1.msra.mxu0 0.0
    %4398 = vmatprep.subr.mxu0 0.0
    %4399 = vmatpush1.msra.mxu0 0.0
    %4400 = vmatprep.subr.mxu0 0.0
    %4401 = vmatpush1.msra.mxu0 %v2638
    %4402 = vmatprep.subr.mxu0 0.0
    %4403 = vmatpush2.msra.mxu0 0.0
    %4404 = vmatprep.subr.mxu0 0.0
    %4405 = vmatpush2.msra.mxu0 0.0
    %4406 = vmatprep.subr.mxu0 0.0
    %4407 = vmatpush2.msra.mxu0 0.0
    %4408 = vmatprep.subr.mxu0 0.0
    %4409 = vmatpush2.msra.mxu0 0.0
    %4410 = vmatprep.subr.mxu0 0.0
    %4411 = vmatpush2.msra.mxu0 0.0
    %4412 = vmatprep.subr.mxu0 0.0
    %4413 = vmatpush2.msra.mxu0 0.0
    %4414 = vmatprep.subr.mxu0 0.0
    %4415 = vmatpush2.msra.mxu0 0.0
    %4416 = vmatprep.subr.mxu0 0.0
    %4417 = vmatpush2.msra.mxu0 0.0
    %4418 = vmatprep.subr.mxu0 0.0
    %4419 = vmatpush2.msra.mxu0 0.0
    %4420 = vmatprep.subr.mxu0 0.0
    %4421 = vmatpush2.msra.mxu0 0.0
    %4422 = vmatprep.subr.mxu0 0.0
    %4423 = vmatpush2.msra.mxu0 0.0
    %4424 = vmatprep.subr.mxu0 0.0
    %4425 = vmatpush2.msra.mxu0 0.0
    %4426 = vmatprep.subr.mxu0 0.0
    %4427 = vmatpush2.msra.mxu0 0.0
    %4428 = vmatprep.subr.mxu0 0.0
    %4429 = vmatpush2.msra.mxu0 0.0
    %4430 = vmatprep.subr.mxu0 0.0
    %4431 = vmatpush2.msra.mxu0 0.0
    %4432 = vmatprep.subr.mxu0 0.0
    %4433 = vmatpush2.msra.mxu0 0.0
    %4434 = vmatprep.mubr.f32.mxu0 0.0
    %4435 = vmatmul.mubr.f32.gmra.mxu0 %v4365
    %v4436 = vpop.f32.mrf.mxu0
    %v4437 = vadd.f32 0.0, %v4436
    %v4438 = vpop.f32.mrf.mxu0
    %4439 = vmatprep.mubr.f32.mxu0 0.0
    %4440 = vmatmul.mubr.f32.gmra.mxu0 %v4368
    %v4441 = vpop.f32.mrf.mxu0
    %v4442 = vadd.f32 0.0, %v4441
    %v4443 = vpop.f32.mrf.mxu0
    %4444 = vdwg.mxu0
    %v4446 = vsel %vm711, %v3981, 0
    %v4449 = vsel %vm711, %v4057, 0
    %4451 = vmatprep.subr.mxu0 0.0
    %4452 = vmatpush1.msra.mxu0 0.0
    %4453 = vmatprep.subr.mxu0 0.0
    %4454 = vmatpush1.msra.mxu0 0.0
    %4455 = vmatprep.subr.mxu0 0.0
    %4456 = vmatpush1.msra.mxu0 0.0
    %4457 = vmatprep.subr.mxu0 0.0
    %4458 = vmatpush1.msra.mxu0 0.0
    %4459 = vmatprep.subr.mxu0 0.0
    %4460 = vmatpush1.msra.mxu0 0.0
    %4461 = vmatprep.subr.mxu0 0.0
    %4462 = vmatpush1.msra.mxu0 0.0
    %4463 = vmatprep.subr.mxu0 0.0
    %4464 = vmatpush1.msra.mxu0 0.0
    %4465 = vmatprep.subr.mxu0 0.0
    %4466 = vmatpush1.msra.mxu0 0.0
    %4467 = vmatprep.subr.mxu0 0.0
    %4468 = vmatpush1.msra.mxu0 0.0
    %4469 = vmatprep.subr.mxu0 0.0
    %4470 = vmatpush1.msra.mxu0 0.0
    %4471 = vmatprep.subr.mxu0 0.0
    %4472 = vmatpush1.msra.mxu0 0.0
    %4473 = vmatprep.subr.mxu0 0.0
    %4474 = vmatpush1.msra.mxu0 0.0
    %4475 = vmatprep.subr.mxu0 0.0
    %4476 = vmatpush1.msra.mxu0 0.0
    %4477 = vmatprep.subr.mxu0 0.0
    %4478 = vmatpush1.msra.mxu0 0.0
    %4479 = vmatprep.subr.mxu0 0.0
    %4480 = vmatpush1.msra.mxu0 0.0
    %4481 = vmatprep.subr.mxu0 0.0
    %4482 = vmatpush1.msra.mxu0 %v2639
    %4483 = vmatprep.subr.mxu0 0.0
    %4484 = vmatpush2.msra.mxu0 0.0
    %4485 = vmatprep.subr.mxu0 0.0
    %4486 = vmatpush2.msra.mxu0 0.0
    %4487 = vmatprep.subr.mxu0 0.0
    %4488 = vmatpush2.msra.mxu0 0.0
    %4489 = vmatprep.subr.mxu0 0.0
    %4490 = vmatpush2.msra.mxu0 0.0
    %4491 = vmatprep.subr.mxu0 0.0
    %4492 = vmatpush2.msra.mxu0 0.0
    %4493 = vmatprep.subr.mxu0 0.0
    %4494 = vmatpush2.msra.mxu0 0.0
    %4495 = vmatprep.subr.mxu0 0.0
    %4496 = vmatpush2.msra.mxu0 0.0
    %4497 = vmatprep.subr.mxu0 0.0
    %4498 = vmatpush2.msra.mxu0 0.0
    %4499 = vmatprep.subr.mxu0 0.0
    %4500 = vmatpush2.msra.mxu0 0.0
    %4501 = vmatprep.subr.mxu0 0.0
    %4502 = vmatpush2.msra.mxu0 0.0
    %4503 = vmatprep.subr.mxu0 0.0
    %4504 = vmatpush2.msra.mxu0 0.0
    %4505 = vmatprep.subr.mxu0 0.0
    %4506 = vmatpush2.msra.mxu0 0.0
    %4507 = vmatprep.subr.mxu0 0.0
    %4508 = vmatpush2.msra.mxu0 0.0
    %4509 = vmatprep.subr.mxu0 0.0
    %4510 = vmatpush2.msra.mxu0 0.0
    %4511 = vmatprep.subr.mxu0 0.0
    %4512 = vmatpush2.msra.mxu0 0.0
    %4513 = vmatprep.subr.mxu0 0.0
    %4514 = vmatpush2.msra.mxu0 0.0
    %4515 = vmatprep.mubr.f32.mxu0 0.0
    %4516 = vmatmul.mubr.f32.gmra.mxu0 %v4446
    %v4517 = vpop.f32.mrf.mxu0
    %v4518 = vadd.f32 0.0, %v4517
    %v4519 = vpop.f32.mrf.mxu0
    %4520 = vmatprep.mubr.f32.mxu0 0.0
    %4521 = vmatmul.mubr.f32.gmra.mxu0 %v4449
    %v4522 = vpop.f32.mrf.mxu0
    %v4523 = vadd.f32 0.0, %v4522
    %v4524 = vpop.f32.mrf.mxu0
    %4525 = vdwg.mxu0
    %v4527 = vsel %vm711, %v4133, 0
    %v4530 = vsel %vm711, %v4209, 0
    %4532 = vmatprep.subr.mxu0 0.0
    %4533 = vmatpush1.msra.mxu0 0.0
    %4534 = vmatprep.subr.mxu0 0.0
    %4535 = vmatpush1.msra.mxu0 0.0
    %4536 = vmatprep.subr.mxu0 0.0
    %4537 = vmatpush1.msra.mxu0 0.0
    %4538 = vmatprep.subr.mxu0 0.0
    %4539 = vmatpush1.msra.mxu0 0.0
    %4540 = vmatprep.subr.mxu0 0.0
    %4541 = vmatpush1.msra.mxu0 0.0
    %4542 = vmatprep.subr.mxu0 0.0
    %4543 = vmatpush1.msra.mxu0 0.0
    %4544 = vmatprep.subr.mxu0 0.0
    %4545 = vmatpush1.msra.mxu0 0.0
    %4546 = vmatprep.subr.mxu0 0.0
    %4547 = vmatpush1.msra.mxu0 0.0
    %4548 = vmatprep.subr.mxu0 0.0
    %4549 = vmatpush1.msra.mxu0 0.0
    %4550 = vmatprep.subr.mxu0 0.0
    %4551 = vmatpush1.msra.mxu0 0.0
    %4552 = vmatprep.subr.mxu0 0.0
    %4553 = vmatpush1.msra.mxu0 0.0
    %4554 = vmatprep.subr.mxu0 0.0
    %4555 = vmatpush1.msra.mxu0 0.0
    %4556 = vmatprep.subr.mxu0 0.0
    %4557 = vmatpush1.msra.mxu0 0.0
    %4558 = vmatprep.subr.mxu0 0.0
    %4559 = vmatpush1.msra.mxu0 0.0
    %4560 = vmatprep.subr.mxu0 0.0
    %4561 = vmatpush1.msra.mxu0 0.0
    %4562 = vmatprep.subr.mxu0 0.0
    %4563 = vmatpush1.msra.mxu0 %v2640
    %4564 = vmatprep.subr.mxu0 0.0
    %4565 = vmatpush2.msra.mxu0 0.0
    %4566 = vmatprep.subr.mxu0 0.0
    %4567 = vmatpush2.msra.mxu0 0.0
    %4568 = vmatprep.subr.mxu0 0.0
    %4569 = vmatpush2.msra.mxu0 0.0
    %4570 = vmatprep.subr.mxu0 0.0
    %4571 = vmatpush2.msra.mxu0 0.0
    %4572 = vmatprep.subr.mxu0 0.0
    %4573 = vmatpush2.msra.mxu0 0.0
    %4574 = vmatprep.subr.mxu0 0.0
    %4575 = vmatpush2.msra.mxu0 0.0
    %4576 = vmatprep.subr.mxu0 0.0
    %4577 = vmatpush2.msra.mxu0 0.0
    %4578 = vmatprep.subr.mxu0 0.0
    %4579 = vmatpush2.msra.mxu0 0.0
    %4580 = vmatprep.subr.mxu0 0.0
    %4581 = vmatpush2.msra.mxu0 0.0
    %4582 = vmatprep.subr.mxu0 0.0
    %4583 = vmatpush2.msra.mxu0 0.0
    %4584 = vmatprep.subr.mxu0 0.0
    %4585 = vmatpush2.msra.mxu0 0.0
    %4586 = vmatprep.subr.mxu0 0.0
    %4587 = vmatpush2.msra.mxu0 0.0
    %4588 = vmatprep.subr.mxu0 0.0
    %4589 = vmatpush2.msra.mxu0 0.0
    %4590 = vmatprep.subr.mxu0 0.0
    %4591 = vmatpush2.msra.mxu0 0.0
    %4592 = vmatprep.subr.mxu0 0.0
    %4593 = vmatpush2.msra.mxu0 0.0
    %4594 = vmatprep.subr.mxu0 0.0
    %4595 = vmatpush2.msra.mxu0 0.0
    %4596 = vmatprep.mubr.f32.mxu0 0.0
    %4597 = vmatmul.mubr.f32.gmra.mxu0 %v4527
    %v4598 = vpop.f32.mrf.mxu0
    %v4599 = vadd.f32 0.0, %v4598
    %v4600 = vpop.f32.mrf.mxu0
    %4601 = vmatprep.mubr.f32.mxu0 0.0
    %4602 = vmatmul.mubr.f32.gmra.mxu0 %v4530
    %v4603 = vpop.f32.mrf.mxu0
    %v4604 = vadd.f32 0.0, %v4603
    %v4605 = vpop.f32.mrf.mxu0
    %4606 = vdwg.mxu0
    %v4608 = vsel %vm711, %v4285, 0
    %v4611 = vsel %vm711, %v4361, 0
    %4613 = vmatprep.subr.mxu0 0.0
    %4614 = vmatpush1.msra.mxu0 0.0
    %4615 = vmatprep.subr.mxu0 0.0
    %4616 = vmatpush1.msra.mxu0 0.0
    %4617 = vmatprep.subr.mxu0 0.0
    %4618 = vmatpush1.msra.mxu0 0.0
    %4619 = vmatprep.subr.mxu0 0.0
    %4620 = vmatpush1.msra.mxu0 0.0
    %4621 = vmatprep.subr.mxu0 0.0
    %4622 = vmatpush1.msra.mxu0 0.0
    %4623 = vmatprep.subr.mxu0 0.0
    %4624 = vmatpush1.msra.mxu0 0.0
    %4625 = vmatprep.subr.mxu0 0.0
    %4626 = vmatpush1.msra.mxu0 0.0
    %4627 = vmatprep.subr.mxu0 0.0
    %4628 = vmatpush1.msra.mxu0 0.0
    %4629 = vmatprep.subr.mxu0 0.0
    %4630 = vmatpush1.msra.mxu0 0.0
    %4631 = vmatprep.subr.mxu0 0.0
    %4632 = vmatpush1.msra.mxu0 0.0
    %4633 = vmatprep.subr.mxu0 0.0
    %4634 = vmatpush1.msra.mxu0 0.0
    %4635 = vmatprep.subr.mxu0 0.0
    %4636 = vmatpush1.msra.mxu0 0.0
    %4637 = vmatprep.subr.mxu0 0.0
    %4638 = vmatpush1.msra.mxu0 0.0
    %4639 = vmatprep.subr.mxu0 0.0
    %4640 = vmatpush1.msra.mxu0 0.0
    %4641 = vmatprep.subr.mxu0 0.0
    %4642 = vmatpush1.msra.mxu0 0.0
    %4643 = vmatprep.subr.mxu0 0.0
    %4644 = vmatpush1.msra.mxu0 %v2641
    %4645 = vmatprep.subr.mxu0 0.0
    %4646 = vmatpush2.msra.mxu0 0.0
    %4647 = vmatprep.subr.mxu0 0.0
    %4648 = vmatpush2.msra.mxu0 0.0
    %4649 = vmatprep.subr.mxu0 0.0
    %4650 = vmatpush2.msra.mxu0 0.0
    %4651 = vmatprep.subr.mxu0 0.0
    %4652 = vmatpush2.msra.mxu0 0.0
    %4653 = vmatprep.subr.mxu0 0.0
    %4654 = vmatpush2.msra.mxu0 0.0
    %4655 = vmatprep.subr.mxu0 0.0
    %4656 = vmatpush2.msra.mxu0 0.0
    %4657 = vmatprep.subr.mxu0 0.0
    %4658 = vmatpush2.msra.mxu0 0.0
    %4659 = vmatprep.subr.mxu0 0.0
    %4660 = vmatpush2.msra.mxu0 0.0
    %4661 = vmatprep.subr.mxu0 0.0
    %4662 = vmatpush2.msra.mxu0 0.0
    %4663 = vmatprep.subr.mxu0 0.0
    %4664 = vmatpush2.msra.mxu0 0.0
    %4665 = vmatprep.subr.mxu0 0.0
    %4666 = vmatpush2.msra.mxu0 0.0
    %4667 = vmatprep.subr.mxu0 0.0
    %4668 = vmatpush2.msra.mxu0 0.0
    %4669 = vmatprep.subr.mxu0 0.0
    %4670 = vmatpush2.msra.mxu0 0.0
    %4671 = vmatprep.subr.mxu0 0.0
    %4672 = vmatpush2.msra.mxu0 0.0
    %4673 = vmatprep.subr.mxu0 0.0
    %4674 = vmatpush2.msra.mxu0 0.0
    %4675 = vmatprep.subr.mxu0 0.0
    %4676 = vmatpush2.msra.mxu0 0.0
    %4677 = vmatprep.mubr.f32.mxu0 0.0
    %4678 = vmatmul.mubr.f32.gmra.mxu0 %v4608
    %v4679 = vpop.f32.mrf.mxu0
    %v4680 = vadd.f32 0.0, %v4679
    %v4681 = vpop.f32.mrf.mxu0
    %4682 = vmatprep.mubr.f32.mxu0 0.0
    %4683 = vmatmul.mubr.f32.gmra.mxu0 %v4611
    %v4684 = vpop.f32.mrf.mxu0
    %v4685 = vadd.f32 0.0, %v4684
    %v4686 = vpop.f32.mrf.mxu0
    %4687 = vdwg.mxu0
    %v4688 = vsel %vm354, %v4437, 0.0
    %v4689 = vsel %vm354, %v4518, 0.0
    %v4690 = vadd.f32 %v4688, %v4689
    %v4691 = vsel %vm354, %v4599, 0.0
    %v4692 = vadd.f32 %v4690, %v4691
    %v4693 = vsel %vm354, %v4680, 0.0
    %v4694 = vadd.f32 %v4692, %v4693
    %v4695 = vsel %vm354, %v4442, 0.0
    %v4696 = vsel %vm354, %v4523, 0.0
    %v4697 = vadd.f32 %v4695, %v4696
    %v4698 = vsel %vm354, %v4604, 0.0
    %v4699 = vadd.f32 %v4697, %v4698
    %v4700 = vsel %vm354, %v4685, 0.0
    %v4701 = vadd.f32 %v4699, %v4700
    %v4702 = vadd.f32 %v2594, %v4694
    %v4703 = vadd.f32 %v2595, %v4701
    %v4704 = vlaneseq
    %v4705 = vshrl.u32 %v4704, 7
    %v4706 = vsub.s32 0, %v4705
    %v4707 = vrot.slane %v2599, %v4706
    %v4708 = vadd.f32 %v4702, %v4707
    %v4709 = vadd.f32 %v4703, %v4707
    %v4710 = vsel %vm354, %v4708, 0.0
    %4711 = vadd.xlane.f32.xlu0 %v4710
    %v4712 = vpop.xlane.xlu0 %4711
    %v4713 = vsel %vm354, %v4709, 0.0
    %4714 = vadd.xlane.f32.xlu0 %v4713
    %v4715 = vpop.xlane.xlu0 %4714
    %v4716 = vmul.f32 %v4712, %v361
    %v4717 = vmul.f32 %v4715, %v361
    %v4718 = vsub.f32 %v4708, %v4716
    %v4719 = vsub.f32 %v4709, %v4717
    %v4720 = vmul.f32 %v4718, %v4718
    %v4721 = vmul.f32 %v4719, %v4719
    %v4722 = vsel %vm354, %v4720, 0.0
    %4723 = vadd.xlane.f32.xlu0 %v4722
    %v4724 = vpop.xlane.xlu0 %4723
    %v4725 = vsel %vm354, %v4721, 0.0
    %4726 = vadd.xlane.f32.xlu0 %v4725
    %v4727 = vpop.xlane.xlu0 %4726
    %v4728 = vmul.f32 %v4724, %v361
    %v4729 = vmul.f32 %v4727, %v361
    %v4730 = vadd.f32 %v4728, 1e-05
    %v4731 = vadd.f32 %v4729, 1e-05
    %v4732 = vrsqrt.pop %v4730
    %v4733 = vrsqrt.pop %v4731
    %v4734 = vmul.f32 %v4718, %v4732
    %v4735 = vmul.f32 %v4719, %v4733
    %v4736 = vlaneseq
    %v4737 = vshrl.u32 %v4736, 7
    %v4738 = vsub.s32 2, %v4737
    %v4739 = vrot.slane %v2597, %v4738
    %v4740 = vmul.f32 %v4734, %v4739
    %v4741 = vmul.f32 %v4735, %v4739
    %v4742 = vlaneseq
    %v4743 = vshrl.u32 %v4742, 7
    %v4744 = vsub.s32 3, %v4743
    %v4745 = vrot.slane %v2597, %v4744
    %v4746 = vadd.f32 %v4740, %v4745
    %v4747 = vadd.f32 %v4741, %v4745
    %s4748 = scalar_lea.vmem %s10, 1
    %v4749 = vld [vmem:[%s4748] sm:$0x1]
    %v4751 = vlaneseq
    %v4752 = vshrl.u32 %v4751, 7
    %v4753 = vsub.s32 0, %v4752
    %v4754 = vrot.slane %v4749, %v4753
    %v4757 = vsel %vm354, %v4746, 0
    %v4760 = vsel %vm354, %v4747, 0
    %4762 = vmatprep.subr.mxu0 0.0
    %4763 = vmatpush1.msra.mxu0 0.0
    %4764 = vmatprep.subr.mxu0 0.0
    %4765 = vmatpush1.msra.mxu0 0.0
    %4766 = vmatprep.subr.mxu0 0.0
    %4767 = vmatpush1.msra.mxu0 0.0
    %4768 = vmatprep.subr.mxu0 0.0
    %4769 = vmatpush1.msra.mxu0 0.0
    %4770 = vmatprep.subr.mxu0 0.0
    %4771 = vmatpush1.msra.mxu0 0.0
    %4772 = vmatprep.subr.mxu0 0.0
    %4773 = vmatpush1.msra.mxu0 0.0
    %4774 = vmatprep.subr.mxu0 0.0
    %4775 = vmatpush1.msra.mxu0 0.0
    %4776 = vmatprep.subr.mxu0 0.0
    %4777 = vmatpush1.msra.mxu0 0.0
    %4778 = vmatprep.subr.mxu0 0.0
    %4779 = vmatpush1.msra.mxu0 0.0
    %4780 = vmatprep.subr.mxu0 0.0
    %4781 = vmatpush1.msra.mxu0 0.0
    %4782 = vmatprep.subr.mxu0 0.0
    %4783 = vmatpush1.msra.mxu0 0.0
    %4784 = vmatprep.subr.mxu0 0.0
    %4785 = vmatpush1.msra.mxu0 0.0
    %4786 = vmatprep.subr.mxu0 0.0
    %4787 = vmatpush1.msra.mxu0 %v2650
    %4788 = vmatprep.subr.mxu0 0.0
    %4789 = vmatpush1.msra.mxu0 %v2649
    %4790 = vmatprep.subr.mxu0 0.0
    %4791 = vmatpush1.msra.mxu0 %v2648
    %4792 = vmatprep.subr.mxu0 0.0
    %4793 = vmatpush1.msra.mxu0 %v2647
    %4794 = vmatprep.subr.mxu0 0.0
    %4795 = vmatpush2.msra.mxu0 0.0
    %4796 = vmatprep.subr.mxu0 0.0
    %4797 = vmatpush2.msra.mxu0 0.0
    %4798 = vmatprep.subr.mxu0 0.0
    %4799 = vmatpush2.msra.mxu0 0.0
    %4800 = vmatprep.subr.mxu0 0.0
    %4801 = vmatpush2.msra.mxu0 0.0
    %4802 = vmatprep.subr.mxu0 0.0
    %4803 = vmatpush2.msra.mxu0 0.0
    %4804 = vmatprep.subr.mxu0 0.0
    %4805 = vmatpush2.msra.mxu0 0.0
    %4806 = vmatprep.subr.mxu0 0.0
    %4807 = vmatpush2.msra.mxu0 0.0
    %4808 = vmatprep.subr.mxu0 0.0
    %4809 = vmatpush2.msra.mxu0 0.0
    %4810 = vmatprep.subr.mxu0 0.0
    %4811 = vmatpush2.msra.mxu0 0.0
    %4812 = vmatprep.subr.mxu0 0.0
    %4813 = vmatpush2.msra.mxu0 0.0
    %4814 = vmatprep.subr.mxu0 0.0
    %4815 = vmatpush2.msra.mxu0 0.0
    %4816 = vmatprep.subr.mxu0 0.0
    %4817 = vmatpush2.msra.mxu0 0.0
    %4818 = vmatprep.subr.mxu0 0.0
    %4819 = vmatpush2.msra.mxu0 0.0
    %4820 = vmatprep.subr.mxu0 0.0
    %4821 = vmatpush2.msra.mxu0 0.0
    %4822 = vmatprep.subr.mxu0 0.0
    %4823 = vmatpush2.msra.mxu0 0.0
    %4824 = vmatprep.subr.mxu0 0.0
    %4825 = vmatpush2.msra.mxu0 0.0
    %4826 = vmatprep.mubr.f32.mxu0 0.0
    %4827 = vmatmul.mubr.f32.gmra.mxu0 %v4757
    %v4828 = vpop.f32.mrf.mxu0
    %v4829 = vadd.f32 %v4754, %v4828
    %v4830 = vpop.f32.mrf.mxu0
    %4831 = vmatprep.mubr.f32.mxu0 0.0
    %4832 = vmatmul.mubr.f32.gmra.mxu0 %v4760
    %v4833 = vpop.f32.mrf.mxu0
    %v4834 = vadd.f32 %v4754, %v4833
    %v4835 = vpop.f32.mrf.mxu0
    %4836 = vdwg.mxu0
    %v4837 = vmax.f32 %v4829, 0.0
    %v4838 = vmax.f32 %v4834, 0.0
    %4839 = vmatprep.subr.mxu0 0.0
    %4840 = vmatpush1.msra.mxu0 %v2683
    %4841 = vmatprep.subr.mxu0 0.0
    %4842 = vmatpush1.msra.mxu0 %v2682
    %4843 = vmatprep.subr.mxu0 0.0
    %4844 = vmatpush1.msra.mxu0 %v2681
    %4845 = vmatprep.subr.mxu0 0.0
    %4846 = vmatpush1.msra.mxu0 %v2680
    %4847 = vmatprep.subr.mxu0 0.0
    %4848 = vmatpush1.msra.mxu0 %v2679
    %4849 = vmatprep.subr.mxu0 0.0
    %4850 = vmatpush1.msra.mxu0 %v2678
    %4851 = vmatprep.subr.mxu0 0.0
    %4852 = vmatpush1.msra.mxu0 %v2677
    %4853 = vmatprep.subr.mxu0 0.0
    %4854 = vmatpush1.msra.mxu0 %v2676
    %4855 = vmatprep.subr.mxu0 0.0
    %4856 = vmatpush1.msra.mxu0 %v2675
    %4857 = vmatprep.subr.mxu0 0.0
    %4858 = vmatpush1.msra.mxu0 %v2674
    %4859 = vmatprep.subr.mxu0 0.0
    %4860 = vmatpush1.msra.mxu0 %v2673
    %4861 = vmatprep.subr.mxu0 0.0
    %4862 = vmatpush1.msra.mxu0 %v2672
    %4863 = vmatprep.subr.mxu0 0.0
    %4864 = vmatpush1.msra.mxu0 %v2671
    %4865 = vmatprep.subr.mxu0 0.0
    %4866 = vmatpush1.msra.mxu0 %v2670
    %4867 = vmatprep.subr.mxu0 0.0
    %4868 = vmatpush1.msra.mxu0 %v2669
    %4869 = vmatprep.subr.mxu0 0.0
    %4870 = vmatpush1.msra.mxu0 %v2668
    %4871 = vmatprep.subr.mxu0 0.0
    %4872 = vmatpush2.msra.mxu0 0.0
    %4873 = vmatprep.subr.mxu0 0.0
    %4874 = vmatpush2.msra.mxu0 0.0
    %4875 = vmatprep.subr.mxu0 0.0
    %4876 = vmatpush2.msra.mxu0 0.0
    %4877 = vmatprep.subr.mxu0 0.0
    %4878 = vmatpush2.msra.mxu0 0.0
    %4879 = vmatprep.subr.mxu0 0.0
    %4880 = vmatpush2.msra.mxu0 0.0
    %4881 = vmatprep.subr.mxu0 0.0
    %4882 = vmatpush2.msra.mxu0 0.0
    %4883 = vmatprep.subr.mxu0 0.0
    %4884 = vmatpush2.msra.mxu0 0.0
    %4885 = vmatprep.subr.mxu0 0.0
    %4886 = vmatpush2.msra.mxu0 0.0
    %4887 = vmatprep.subr.mxu0 0.0
    %4888 = vmatpush2.msra.mxu0 0.0
    %4889 = vmatprep.subr.mxu0 0.0
    %4890 = vmatpush2.msra.mxu0 0.0
    %4891 = vmatprep.subr.mxu0 0.0
    %4892 = vmatpush2.msra.mxu0 0.0
    %4893 = vmatprep.subr.mxu0 0.0
    %4894 = vmatpush2.msra.mxu0 0.0
    %4895 = vmatprep.subr.mxu0 0.0
    %4896 = vmatpush2.msra.mxu0 0.0
    %4897 = vmatprep.subr.mxu0 0.0
    %4898 = vmatpush2.msra.mxu0 0.0
    %4899 = vmatprep.subr.mxu0 0.0
    %4900 = vmatpush2.msra.mxu0 0.0
    %4901 = vmatprep.subr.mxu0 0.0
    %4902 = vmatpush2.msra.mxu0 0.0
    %4903 = vmatprep.mubr.f32.mxu0 0.0
    %4904 = vmatmul.mubr.f32.gmra.mxu0 %v4837
    %v4905 = vpop.f32.mrf.mxu0
    %v4906 = vadd.f32 0.0, %v4905
    %v4907 = vpop.f32.mrf.mxu0
    %4908 = vmatprep.mubr.f32.mxu0 0.0
    %4909 = vmatmul.mubr.f32.gmra.mxu0 %v4838
    %v4910 = vpop.f32.mrf.mxu0
    %v4911 = vadd.f32 0.0, %v4910
    %v4912 = vpop.f32.mrf.mxu0
    %4913 = vdwg.mxu0
    %v4914 = vadd.f32 %v4708, %v4906
    %v4915 = vadd.f32 %v4709, %v4911
    %v4916 = vlaneseq
    %v4917 = vshrl.u32 %v4916, 7
    %v4918 = vsub.s32 1, %v4917
    %v4919 = vrot.slane %v2599, %v4918
    %v4920 = vadd.f32 %v4914, %v4919
    %v4921 = vadd.f32 %v4915, %v4919
    %v4922 = vld [vmem:[%s11] sm:$0xf]
    %v4923 = vld [vmem:[%s11 + $0x4] sm:$0xf]
    %v4924 = vld [vmem:[%s11 + $0x8] sm:$0xf]
    %v4925 = vld [vmem:[%s11 + $0xc] sm:$0xf]
    %v4926 = vunpack.c.l.bf16 %v4922
    %v4927 = vunpack.c.l.bf16 %v4923
    %v4928 = vunpack.c.l.bf16 %v4924
    %v4929 = vunpack.c.l.bf16 %v4925
    %v4930 = vld [vmem:[%s12] sm:$0x1]
    %v4932 = vlaneseq
    %v4933 = vshrl.u32 %v4932, 7
    %v4934 = vsub.s32 0, %v4933
    %v4935 = vrot.slane %v4930, %v4934
    %v4938 = vsel %vm354, %v4920, 0
    %v4941 = vsel %vm354, %v4921, 0
    %4943 = vmatprep.subr.mxu0 0.0
    %4944 = vmatpush1.msra.mxu0 0.0
    %4945 = vmatprep.subr.mxu0 0.0
    %4946 = vmatpush1.msra.mxu0 0.0
    %4947 = vmatprep.subr.mxu0 0.0
    %4948 = vmatpush1.msra.mxu0 0.0
    %4949 = vmatprep.subr.mxu0 0.0
    %4950 = vmatpush1.msra.mxu0 0.0
    %4951 = vmatprep.subr.mxu0 0.0
    %4952 = vmatpush1.msra.mxu0 0.0
    %4953 = vmatprep.subr.mxu0 0.0
    %4954 = vmatpush1.msra.mxu0 0.0
    %4955 = vmatprep.subr.mxu0 0.0
    %4956 = vmatpush1.msra.mxu0 0.0
    %4957 = vmatprep.subr.mxu0 0.0
    %4958 = vmatpush1.msra.mxu0 0.0
    %4959 = vmatprep.subr.mxu0 0.0
    %4960 = vmatpush1.msra.mxu0 0.0
    %4961 = vmatprep.subr.mxu0 0.0
    %4962 = vmatpush1.msra.mxu0 0.0
    %4963 = vmatprep.subr.mxu0 0.0
    %4964 = vmatpush1.msra.mxu0 0.0
    %4965 = vmatprep.subr.mxu0 0.0
    %4966 = vmatpush1.msra.mxu0 0.0
    %4967 = vmatprep.subr.mxu0 0.0
    %4968 = vmatpush1.msra.mxu0 %v4929
    %4969 = vmatprep.subr.mxu0 0.0
    %4970 = vmatpush1.msra.mxu0 %v4928
    %4971 = vmatprep.subr.mxu0 0.0
    %4972 = vmatpush1.msra.mxu0 %v4927
    %4973 = vmatprep.subr.mxu0 0.0
    %4974 = vmatpush1.msra.mxu0 %v4926
    %4975 = vmatprep.subr.mxu0 0.0
    %4976 = vmatpush2.msra.mxu0 0.0
    %4977 = vmatprep.subr.mxu0 0.0
    %4978 = vmatpush2.msra.mxu0 0.0
    %4979 = vmatprep.subr.mxu0 0.0
    %4980 = vmatpush2.msra.mxu0 0.0
    %4981 = vmatprep.subr.mxu0 0.0
    %4982 = vmatpush2.msra.mxu0 0.0
    %4983 = vmatprep.subr.mxu0 0.0
    %4984 = vmatpush2.msra.mxu0 0.0
    %4985 = vmatprep.subr.mxu0 0.0
    %4986 = vmatpush2.msra.mxu0 0.0
    %4987 = vmatprep.subr.mxu0 0.0
    %4988 = vmatpush2.msra.mxu0 0.0
    %4989 = vmatprep.subr.mxu0 0.0
    %4990 = vmatpush2.msra.mxu0 0.0
    %4991 = vmatprep.subr.mxu0 0.0
    %4992 = vmatpush2.msra.mxu0 0.0
    %4993 = vmatprep.subr.mxu0 0.0
    %4994 = vmatpush2.msra.mxu0 0.0
    %4995 = vmatprep.subr.mxu0 0.0
    %4996 = vmatpush2.msra.mxu0 0.0
    %4997 = vmatprep.subr.mxu0 0.0
    %4998 = vmatpush2.msra.mxu0 0.0
    %4999 = vmatprep.subr.mxu0 0.0
    %5000 = vmatpush2.msra.mxu0 0.0
    %5001 = vmatprep.subr.mxu0 0.0
    %5002 = vmatpush2.msra.mxu0 0.0
    %5003 = vmatprep.subr.mxu0 0.0
    %5004 = vmatpush2.msra.mxu0 0.0
    %5005 = vmatprep.subr.mxu0 0.0
    %5006 = vmatpush2.msra.mxu0 0.0
    %5007 = vmatprep.mubr.f32.mxu0 0.0
    %5008 = vmatmul.mubr.f32.gmra.mxu0 %v4938
    %v5009 = vpop.f32.mrf.mxu0
    %v5010 = vadd.f32 %v4935, %v5009
    %v5011 = vpop.f32.mrf.mxu0
    %5012 = vmatprep.mubr.f32.mxu0 0.0
    %5013 = vmatmul.mubr.f32.gmra.mxu0 %v4941
    %v5014 = vpop.f32.mrf.mxu0
    %v5015 = vadd.f32 %v4935, %v5014
    %v5016 = vpop.f32.mrf.mxu0
    %5017 = vdwg.mxu0
    %5018 = vst [vmem:[#allocation2] sm:$0xff] %v5010
    %5019 = vst [vmem:[#allocation2 + $0x8] sm:$0xff] %v5015
    %v5020 = vld [vmem:[%s1] sm:$0xff]
    %v5021 = vld [vmem:[%s1 + $0x8] sm:$0xff]
    %5022 = vmax.xlane.f32.xlu0 %v5010
    %v5023 = vpop.xlane.xlu0 %5022
    %5024 = vmax.xlane.f32.xlu0 %v5015
    %v5025 = vpop.xlane.xlu0 %5024
    %v5026 = vsub.f32 %v5010, %v5023
    %v5027 = vsub.f32 %v5015, %v5025
    %v5028 = vmul.f32 %v5026, 1.442695
    %v5029 = vpow.pop %v5028
    %v5030 = vmul.f32 %v5027, 1.442695
    %v5031 = vpow.pop %v5030
    %5032 = vadd.xlane.f32.xlu0 %v5029
    %v5033 = vpop.xlane.xlu0 %5032
    %5034 = vadd.xlane.f32.xlu0 %v5031
    %v5035 = vpop.xlane.xlu0 %5034
    %v5036 = vlog2.pop %v5033
    %v5037 = vmul.f32 %v5036, 0.6931472
    %v5038 = vlog2.pop %v5035
    %v5039 = vmul.f32 %v5038, 0.6931472
    %v5040 = vadd.f32 %v5037, %v5023
    %v5041 = vadd.f32 %v5039, %v5025
    %5042 = vset.pattern.permute.xlu0 0
    %5043 = vperm.xlu0 %5042, %v5020
    %v5044 = vpop.permute.xlu0 %5043
    %5045 = vset.pattern.permute.xlu0 0
    %5046 = vperm.xlu0 %5045, %v5021
    %v5047 = vpop.permute.xlu0 %5046
    %vm5048 = vcmp.eq.s32.totalorder %v59, %v5044
    %vm5049 = vcmp.eq.s32.totalorder %v59, %v5047
    %v5050 = vsel %vm5048, %v5010, 0.0
    %v5051 = vsel %vm5049, %v5015, 0.0
    %5052 = vadd.xlane.f32.xlu0 %v5050
    %v5053 = vpop.xlane.xlu0 %5052
    %5054 = vadd.xlane.f32.xlu0 %v5051
    %v5055 = vpop.xlane.xlu0 %5054
    %v5056 = vsub.f32 %v5040, %v5053
    %v5057 = vsub.f32 %v5041, %v5055
    %v5058 = vadd.f32 %v5056, %v5057
    %v5059 = vrot.slane %v5058, 4
    %v5060 = vadd.f32 %v5058, %v5059
    %v5061 = vrot.slane %v5060, 2
    %v5062 = vadd.f32 %v5060, %v5061
    %v5063 = vrot.slane %v5062, 1
    %v5064 = vadd.f32 %v5062, %v5063
    %v5065 = vmul.f32 %v5064, 0.0625
    %vm5066 = vcmask 0
    %5067 = vst.msk [vmem:[#allocation4] sm:$0x1] %vm5066, %v5065
    // Predicated region
    $region54: #{tpu_custom_call.1} parent=1 // pred_check
      _
    $region55: #{tpu_custom_call.1} parent=1 // pred_check_branch
      %5069 = sbr.rel (0) target = $region57
    $region56: #{tpu_custom_call.1} parent=1 // pred_region
      %s5071 = ssub.s32 256, 256
      %5072 = vsyncadd [#allocation3], %s5071
      %s5073 = sshll.u32 [#allocation2], 4
      %s5074 = int_to_ptr.vmem [resolvable:$true] %s5073
      %5079 = dma.vmem_to_hbm [thread:$0]  %s5074, 256, %s13, [#allocation3], 128, 128, 8
    $region57: #{tpu_custom_call.1} parent=1 // pred_fallthru
      _
    // Predicated region
    $region58: #{tpu_custom_call.1} parent=1 // pred_check
      _
    $region59: #{tpu_custom_call.1} parent=1 // pred_check_branch
      %5081 = sbr.rel (0) target = $region61
    $region60: #{tpu_custom_call.1} parent=1 // pred_region
      %s5083 = ssub.s32 16, 16
      %5084 = vsyncadd [#allocation5], %s5083
      %s5086 = sshll.u32 [#allocation4], 4
      %s5087 = int_to_ptr.vmem [resolvable:$true] %s5086
      %5089 = dma.vmem_to_hbm [thread:$0]  %s5087, 16, %s14, [#allocation5]
    $region61: #{tpu_custom_call.1} parent=1 // pred_fallthru
      _
    // Predicated region
    $region62: #{tpu_custom_call.1} parent=1 // pred_check
      _
    $region63: #{tpu_custom_call.1} parent=1 // pred_check_branch
      %5091 = sbr.rel (0) target = $region65
    $region64: #{tpu_custom_call.1} parent=1 // pred_region
      %5092 = dma.done [#allocation3], 256
    $region65: #{tpu_custom_call.1} parent=1 // pred_fallthru
      _
    // Predicated region
    $region66: #{tpu_custom_call.1} parent=1 // pred_check
      _
    $region67: #{tpu_custom_call.1} parent=1 // pred_check_branch
      %5094 = sbr.rel (0) target = $region69
    $region68: #{tpu_custom_call.1} parent=1 // pred_region
      %5095 = dma.done [#allocation5], 16
    $region69: #{tpu_custom_call.1} parent=1 // pred_fallthru
      _
    %5096 = vsyncpa [#allocation3], 1
    %5097 = vsyncpa [#allocation5], 1

</llo_original>
